<compile_context>
chip_gen: v7x
topology: tpu7x:2x2x1
jax: 0.10.0
libtpu: 0.0.40
codegen_flags: <defaults>
</compile_context>

<pallas_src>
import functools

import jax
import jax.numpy as jnp
from jax.experimental import pallas as pl
from jax.experimental.pallas import tpu as pltpu


# ----------------------------------------------------------------------------
# Fused forward kernel factory
# ----------------------------------------------------------------------------
def _make_fused_kernel(num_layers):
    def kernel(*refs):
        # inputs: tok, emb, [wih, whh_blockdiag, b_gates] * L, 6 head tensors
        # outputs: out_ref;  scratch: gx, y_ping, y_pong
        tok_ref, emb_ref = refs[0], refs[1]
        lstm_refs = refs[2:2 + 3 * num_layers]
        (w1_ref, b1_ref, bns_ref, bnb_ref, w2_ref, b2_ref,
         out_ref, gx_scr, ya_scr, yb_scr) = refs[2 + 3 * num_layers:]

        f32 = jnp.float32
        B = out_ref.shape[0]            # padded batch (multiple of 8)
        TB = tok_ref.shape[0]           # T * B, time-major rows
        T = TB // B
        V, H = emb_ref.shape
        G = 4 * H                       # gates per direction

        # ---- embedding lookup fused as a one-hot matmul (no dynamic gather) ----
        tok = tok_ref[...]                                              # (TB, 1) int32
        iota = jax.lax.broadcasted_iota(jnp.int32, (TB, V), 1)
        onehot = jnp.where(tok == iota, 1.0, 0.0).astype(f32)           # (TB, V)
        x = jnp.dot(onehot, emb_ref[...], preferred_element_type=f32)   # (TB, H)

        y_bufs = (ya_scr, yb_scr)
        for layer in range(num_layers):
            wih_ref, whh_ref, bg_ref = lstm_refs[3 * layer:3 * layer + 3]
            y_scr = y_bufs[layer % 2]

            # Hoisted input projection for BOTH directions at once:
            # (TB, Din) @ (Din, 8H) = [fwd gates | bwd gates], biases folded in.
            gx_scr[...] = (jnp.dot(x, wih_ref[...], preferred_element_type=f32)
                           + bg_ref[...])

            # Block-diagonal recurrent weight (2H, 8H): [h_f | h_b] feeds both
            # directions' gates with ONE MXU push per step.  Hoisted load.
            whh = whh_ref[...]
            h_f = jnp.zeros((B, H), f32); c_f = jnp.zeros((B, H), f32)
            h_b = jnp.zeros((B, H), f32); c_b = jnp.zeros((B, H), f32)

            # Static unroll over time: only [h_f|h_b] @ W_hh stays serial.
            for s in range(T):
                r = T - 1 - s            # reverse time index for the bwd direction
                h_cat = jnp.concatenate([h_f, h_b], axis=1)              # (B, 2H)
                g_cat = jnp.dot(h_cat, whh, preferred_element_type=f32)  # (B, 8H)
                # fwd/bwd slabs start at 128-lane boundaries (G = 4H = 128 at H=32)
                g_f = gx_scr[pl.ds(s * B, B), pl.ds(0, G)] + g_cat[:, :G]
                g_b = gx_scr[pl.ds(r * B, B), pl.ds(G, G)] + g_cat[:, G:]

                # TODO(synk): at realistic sizes pad H to 128 so these per-gate
                # slices are lane-aligned instead of 32-lane offsets.
                i_f = jax.nn.sigmoid(g_f[:, 0 * H:1 * H])
                f_f = jax.nn.sigmoid(g_f[:, 1 * H:2 * H])
                u_f = jnp.tanh(g_f[:, 2 * H:3 * H])
                o_f = jax.nn.sigmoid(g_f[:, 3 * H:4 * H])
                c_f = f_f * c_f + i_f * u_f
                h_f = o_f * jnp.tanh(c_f)

                i_b = jax.nn.sigmoid(g_b[:, 0 * H:1 * H])
                f_b = jax.nn.sigmoid(g_b[:, 1 * H:2 * H])
                u_b = jnp.tanh(g_b[:, 2 * H:3 * H])
                o_b = jax.nn.sigmoid(g_b[:, 3 * H:4 * H])
                c_b = f_b * c_b + i_b * u_b
                h_b = o_b * jnp.tanh(c_b)

                y_scr[pl.ds(s * B, B), pl.ds(0, H)] = h_f
                y_scr[pl.ds(r * B, B), pl.ds(H, H)] = h_b

            x = y_scr[...]               # (TB, 2H): input to next layer / head
            # TODO(synk): inter-layer LSTM dropout (p=0.2) is train-mode only.

        # ---- head: last-step + max-over-time pooling, tanh, fc1, BN(eval), tanh, fc2 ----
        last = x[(T - 1) * B:T * B, :]                                  # (B, 2H)
        mx = x[0:B, :]
        for s in range(1, T):
            mx = jnp.maximum(mx, x[s * B:(s + 1) * B, :])               # (B, 2H)

        # tanh(concat(last, max)) == concat(tanh(last), tanh(max)); 4H = 128 lanes
        feat = jnp.concatenate([jnp.tanh(last), jnp.tanh(mx)], axis=1)  # (B, 4H)
        z = jnp.dot(feat, w1_ref[...], preferred_element_type=f32) + b1_ref[...]
        # TODO(synk): nn.Dropout(p=0.3) is train-mode only; eval = identity.
        z = z * bns_ref[...] + bnb_ref[...]     # BatchNorm1d (eval, running stats)
        z = jnp.tanh(z)
        # lane-dense (128-wide, zero-padded) output store
        out_ref[...] = (jnp.dot(z, w2_ref[...], preferred_element_type=f32)
                        + b2_ref[...])

    return kernel


def _full_block_spec(shape):
    ndim = len(shape)

    def index_map(i):
        return (0,) * ndim

    return pl.BlockSpec(shape, index_map)


# ----------------------------------------------------------------------------
# Parameter construction (deterministic, synthetic)
# ----------------------------------------------------------------------------
def init_params(key, hidden_dim, vocab_size, num_classes, num_layers):
    H = hidden_dim
    params = {}
    key, k_emb = jax.random.split(key)
    params["embedding"] = jax.random.normal(k_emb, (vocab_size, H), jnp.float32) * 0.1

    lstm = []
    for layer in range(num_layers):
        din = H if layer == 0 else 2 * H
        scale = 1.0 / (H ** 0.5)
        wihs, biases = [], []
        whh_blk = jnp.zeros((2 * H, 8 * H), jnp.float32)
        for d_idx in range(2):  # 0 = fwd, 1 = bwd
            key, k1, k2, k3, k4 = jax.random.split(key, 5)
            # stored pre-transposed: (Din, 4H) / (H, 4H); gate order [i, f, g, o]
            wih = jax.random.uniform(k1, (din, 4 * H), jnp.float32, -scale, scale)
            whh = jax.random.uniform(k2, (H, 4 * H), jnp.float32, -scale, scale)
            b_ih = jax.random.uniform(k3, (4 * H,), jnp.float32, -scale, scale)
            b_hh = jax.random.uniform(k4, (4 * H,), jnp.float32, -scale, scale)
            wihs.append(wih)
            biases.append((b_ih + b_hh).reshape(1, 4 * H))
            whh_blk = whh_blk.at[d_idx * H:(d_idx + 1) * H,
                                 d_idx * 4 * H:(d_idx + 1) * 4 * H].set(whh)
        lstm.append({
            "wih": jnp.concatenate(wihs, axis=1),    # (Din, 8H): fwd | bwd packed
            "whh": whh_blk,                          # (2H, 8H): block-diagonal
            "b": jnp.concatenate(biases, axis=1),    # (1, 8H)
        })
    params["lstm"] = lstm

    key, k5, k6, k7, k8 = jax.random.split(key, 5)
    s1 = 1.0 / ((4 * H) ** 0.5)
    params["w1"] = jax.random.uniform(k5, (4 * H, H), jnp.float32, -s1, s1)
    params["b1"] = jax.random.uniform(k6, (1, H), jnp.float32, -s1, s1)
    s2 = 1.0 / (H ** 0.5)
    params["w2"] = jax.random.uniform(k7, (H, num_classes), jnp.float32, -s2, s2)
    params["b2"] = jax.random.uniform(k8, (1, num_classes), jnp.float32, -s2, s2)

    # BatchNorm1d at init: gamma=1, beta=0, running_mean=0, running_var=1, eps=1e-5
    eps = 1e-5
    gamma = jnp.ones((H,), jnp.float32)
    beta = jnp.zeros((H,), jnp.float32)
    rmean = jnp.zeros((H,), jnp.float32)
    rvar = jnp.ones((H,), jnp.float32)
    bn_scale = gamma / jnp.sqrt(rvar + eps)
    params["bn_scale"] = bn_scale.reshape(1, H)
    params["bn_shift"] = (beta - rmean * bn_scale).reshape(1, H)
    return params


# ----------------------------------------------------------------------------
# Full forward pass: one fused pallas_call
# ----------------------------------------------------------------------------
@functools.partial(jax.jit, static_argnames=("num_layers",))
def rnn_classiff_max_forward(tokens, params, num_layers):
    B, T = tokens.shape
    H = params["embedding"].shape[1]
    C = params["w2"].shape[1]
    B_pad = ((B + 7) // 8) * 8            # sublane-pad the batch (f32 sublane = 8)
    C_pad = ((C + 127) // 128) * 128      # lane-pad the classes (lane-dense store)

    tok_p = jnp.zeros((B_pad, T), jnp.int32).at[:B, :].set(tokens.astype(jnp.int32))
    tok_tm = jnp.transpose(tok_p, (1, 0)).reshape(T * B_pad, 1)   # time-major rows

    w2_p = jnp.zeros((H, C_pad), jnp.float32).at[:, :C].set(params["w2"])
    b2_p = jnp.zeros((1, C_pad), jnp.float32).at[:, :C].set(params["b2"])

    args = [tok_tm, params["embedding"]]
    for lp in params["lstm"]:
        args += [lp["wih"], lp["whh"], lp["b"]]
    args += [params["w1"], params["b1"],
             params["bn_scale"], params["bn_shift"],
             w2_p, b2_p]

    out = pl.pallas_call(
        _make_fused_kernel(num_layers),
        out_shape=jax.ShapeDtypeStruct((B_pad, C_pad), jnp.float32),
        grid=(1,),
        in_specs=[_full_block_spec(a.shape) for a in args],
        out_specs=pl.BlockSpec((B_pad, C_pad), lambda i: (0, 0)),
        scratch_shapes=[
            pltpu.VMEM((T * B_pad, 8 * H), jnp.float32),   # hoisted input-gate projections
            pltpu.VMEM((T * B_pad, 2 * H), jnp.float32),   # layer output (ping)
            pltpu.VMEM((T * B_pad, 2 * H), jnp.float32),   # layer output (pong)
        ],
        compiler_params=pltpu.CompilerParams(
            dimension_semantics=("arbitrary",)),
    )(*args)
    return out[:B, :C]


# ----------------------------------------------------------------------------
# Pure-JAX reference (numerical cross-check only)
# ----------------------------------------------------------------------------
def _reference_forward(tokens, params):
    H = params["embedding"].shape[1]
    hp = jax.lax.Precision.HIGHEST
    x = jnp.take(params["embedding"], tokens, axis=0)                  # (B, T, H)

    for lp in params["lstm"]:
        wih_f, wih_b = lp["wih"][:, :4 * H], lp["wih"][:, 4 * H:]
        whh_f = lp["whh"][:H, :4 * H]
        whh_b = lp["whh"][H:, 4 * H:]
        b_f, b_b = lp["b"][:, :4 * H], lp["b"][:, 4 * H:]

        def run(xs, wih, whh, b, reverse):
            Bb, Tt, _ = xs.shape
            h = jnp.zeros((Bb, H), jnp.float32)
            c = jnp.zeros((Bb, H), jnp.float32)
            outs = [None] * Tt
            order = range(Tt - 1, -1, -1) if reverse else range(Tt)
            for t in order:
                g = (jnp.dot(xs[:, t], wih, precision=hp)
                     + jnp.dot(h, whh, precision=hp) + b)
                i = jax.nn.sigmoid(g[:, :H])
                f = jax.nn.sigmoid(g[:, H:2 * H])
                u = jnp.tanh(g[:, 2 * H:3 * H])
                o = jax.nn.sigmoid(g[:, 3 * H:])
                c = f * c + i * u
                h = o * jnp.tanh(c)
                outs[t] = h
            return jnp.stack(outs, axis=1)                             # (B, T, H)

        of = run(x, wih_f, whh_f, b_f, reverse=False)
        ob = run(x, wih_b, whh_b, b_b, reverse=True)
        x = jnp.concatenate([of, ob], axis=-1)                         # (B, T, 2H)

    last = x[:, -1, :]
    mx = jnp.max(x, axis=1)
    cat = jnp.tanh(jnp.concatenate([last, mx], axis=1))
    z = jnp.dot(cat, params["w1"], precision=hp) + params["b1"]
    z = z * params["bn_scale"] + params["bn_shift"]
    z = jnp.tanh(z)
    return jnp.dot(z, params["w2"], precision=hp) + params["b2"]


if __name__ == "__main__":
    HIDDEN_DIM = 32
    VOCAB_SIZE = 50
    NUM_CLASSES = 5
    NUM_LAYERS = 2
    B, T = 2, 8

    key = jax.random.PRNGKey(0)
    key, k_tok = jax.random.split(key)
    tokens = jax.random.randint(k_tok, (B, T), 0, VOCAB_SIZE, dtype=jnp.int32)

    params = init_params(key, HIDDEN_DIM, VOCAB_SIZE, NUM_CLASSES, NUM_LAYERS)

    pred = rnn_classiff_max_forward(tokens, params, NUM_LAYERS)
    pred = jax.block_until_ready(pred)
    assert pred.shape == (B, NUM_CLASSES), pred.shape
    assert bool(jnp.all(jnp.isfinite(pred)))

    # sanity-check against a pure-JAX reference (tolerance covers MXU f32 paths)
    ref = _reference_forward(tokens, params)
    max_diff = float(jnp.max(jnp.abs(pred - ref)))
    assert jnp.allclose(pred, ref, atol=3e-2, rtol=3e-2), max_diff

    print("KERNEL_OK")
</pallas_src>

<mosaic_0001>
module attributes {stable_mosaic.version = 11 : i64} {
  func.func @kernel(%arg0: i32, %arg1: memref<64x1xi32, #tpu.memory_space<vmem>>, %arg2: memref<50x32xf32, #tpu.memory_space<vmem>>, %arg3: memref<32x256xf32, #tpu.memory_space<vmem>>, %arg4: memref<64x256xf32, #tpu.memory_space<vmem>>, %arg5: memref<1x256xf32, #tpu.memory_space<vmem>>, %arg6: memref<64x256xf32, #tpu.memory_space<vmem>>, %arg7: memref<64x256xf32, #tpu.memory_space<vmem>>, %arg8: memref<1x256xf32, #tpu.memory_space<vmem>>, %arg9: memref<128x32xf32, #tpu.memory_space<vmem>>, %arg10: memref<1x32xf32, #tpu.memory_space<vmem>>, %arg11: memref<1x32xf32, #tpu.memory_space<vmem>>, %arg12: memref<1x32xf32, #tpu.memory_space<vmem>>, %arg13: memref<32x128xf32, #tpu.memory_space<vmem>>, %arg14: memref<1x128xf32, #tpu.memory_space<vmem>>, %arg15: memref<8x128xf32, #tpu.memory_space<vmem>>, %arg16: memref<64x256xf32, #tpu.memory_space<vmem>>, %arg17: memref<64x64xf32, #tpu.memory_space<vmem>>, %arg18: memref<64x64xf32, #tpu.memory_space<vmem>>) attributes {dimension_semantics = [#tpu.dimension_semantics<arbitrary>], iteration_bounds = array<i64: 1>, scalar_prefetch = 0 : i64, scratch_operands = 3 : i64, tpu.core_type = #tpu.core_type<tc>, window_params = [{pipeline_mode = #tpu.pipeline_mode<synchronous>, transform_indices = @transform_0, window_bounds = array<i64: 64, 1>}, {pipeline_mode = #tpu.pipeline_mode<synchronous>, transform_indices = @transform_1, window_bounds = array<i64: 50, 32>}, {pipeline_mode = #tpu.pipeline_mode<synchronous>, transform_indices = @transform_2, window_bounds = array<i64: 32, 256>}, {pipeline_mode = #tpu.pipeline_mode<synchronous>, transform_indices = @transform_3, window_bounds = array<i64: 64, 256>}, {pipeline_mode = #tpu.pipeline_mode<synchronous>, transform_indices = @transform_4, window_bounds = array<i64: 1, 256>}, {pipeline_mode = #tpu.pipeline_mode<synchronous>, transform_indices = @transform_5, window_bounds = array<i64: 64, 256>}, {pipeline_mode = #tpu.pipeline_mode<synchronous>, transform_indices = @transform_6, window_bounds = array<i64: 64, 256>}, {pipeline_mode = #tpu.pipeline_mode<synchronous>, transform_indices = @transform_7, window_bounds = array<i64: 1, 256>}, {pipeline_mode = #tpu.pipeline_mode<synchronous>, transform_indices = @transform_8, window_bounds = array<i64: 128, 32>}, {pipeline_mode = #tpu.pipeline_mode<synchronous>, transform_indices = @transform_9, window_bounds = array<i64: 1, 32>}, {pipeline_mode = #tpu.pipeline_mode<synchronous>, transform_indices = @transform_10, window_bounds = array<i64: 1, 32>}, {pipeline_mode = #tpu.pipeline_mode<synchronous>, transform_indices = @transform_11, window_bounds = array<i64: 1, 32>}, {pipeline_mode = #tpu.pipeline_mode<synchronous>, transform_indices = @transform_12, window_bounds = array<i64: 32, 128>}, {pipeline_mode = #tpu.pipeline_mode<synchronous>, transform_indices = @transform_13, window_bounds = array<i64: 1, 128>}, {pipeline_mode = #tpu.pipeline_mode<synchronous>, transform_indices = @transform_14, window_bounds = array<i64: 8, 128>}]} {
    %c0 = arith.constant 0 : index
    %c0_0 = arith.constant 0 : index
    %0 = vector.load %arg1[%c0, %c0_0] : memref<64x1xi32, #tpu.memory_space<vmem>>, vector<64x1xi32>
    %1 = tpu.iota {dimensions = array<i32: 1>} : vector<64x50xi32>
    %2 = vector.broadcast %0 : vector<64x1xi32> to vector<64x50xi32>
    %3 = arith.cmpi eq, %2, %1 : vector<64x50xi32>
    %cst = arith.constant 1.000000e+00 : f32
    %cst_1 = arith.constant 0.000000e+00 : f32
    %4 = vector.broadcast %cst : f32 to vector<64x50xf32>
    %5 = vector.broadcast %cst_1 : f32 to vector<64x50xf32>
    %6 = arith.select %3, %4, %5 : vector<64x50xi1>, vector<64x50xf32>
    %c0_2 = arith.constant 0 : index
    %c0_3 = arith.constant 0 : index
    %7 = vector.load %arg2[%c0_2, %c0_3] : memref<50x32xf32, #tpu.memory_space<vmem>>, vector<50x32xf32>
    %cst_4 = arith.constant dense<0.000000e+00> : vector<64x32xf32>
    %8 = tpu.matmul %6, %7, %cst_4 {dimension_numbers = #tpu.dot_dimension_numbers<[1], [0], [0], [1], [0, 0, 1, 1], [], []>} : vector<64x50xf32>, vector<50x32xf32>, vector<64x32xf32> -> vector<64x32xf32>
    %c0_5 = arith.constant 0 : index
    %c0_6 = arith.constant 0 : index
    %9 = vector.load %arg3[%c0_5, %c0_6] : memref<32x256xf32, #tpu.memory_space<vmem>>, vector<32x256xf32>
    %cst_7 = arith.constant dense<0.000000e+00> : vector<64x256xf32>
    %10 = tpu.matmul %8, %9, %cst_7 {dimension_numbers = #tpu.dot_dimension_numbers<[1], [0], [0], [1], [0, 0, 1, 1], [], []>} : vector<64x32xf32>, vector<32x256xf32>, vector<64x256xf32> -> vector<64x256xf32>
    %c0_8 = arith.constant 0 : index
    %c0_9 = arith.constant 0 : index
    %11 = vector.load %arg5[%c0_8, %c0_9] : memref<1x256xf32, #tpu.memory_space<vmem>>, vector<1x256xf32>
    %12 = vector.broadcast %11 : vector<1x256xf32> to vector<64x256xf32>
    %13 = arith.addf %10, %12 : vector<64x256xf32>
    %c0_10 = arith.constant 0 : index
    %c0_11 = arith.constant 0 : index
    %14 = vector.load %arg16[%c0_10, %c0_11] : memref<64x256xf32, #tpu.memory_space<vmem>>, vector<64x256xf32>
    tpu.vector_store %arg16[%c0_10, %c0_11], %13 {strides = array<i32>} : memref<64x256xf32, #tpu.memory_space<vmem>>, vector<64x256xf32>,
    %c0_12 = arith.constant 0 : index
    %c0_13 = arith.constant 0 : index
    %15 = vector.load %arg4[%c0_12, %c0_13] : memref<64x256xf32, #tpu.memory_space<vmem>>, vector<64x256xf32>
    %cst_14 = arith.constant 0.000000e+00 : f32
    %16 = vector.broadcast %cst_14 : f32 to vector<8x32xf32>
    %cst_15 = arith.constant 0.000000e+00 : f32
    %17 = vector.broadcast %cst_15 : f32 to vector<8x32xf32>
    %cst_16 = arith.constant 0.000000e+00 : f32
    %18 = vector.broadcast %cst_16 : f32 to vector<8x32xf32>
    %cst_17 = arith.constant 0.000000e+00 : f32
    %19 = vector.broadcast %cst_17 : f32 to vector<8x32xf32>
    %20 = tpu.concatenate %16, %18 in 1 : vector<8x32xf32>, vector<8x32xf32> -> vector<8x64xf32>
    %cst_18 = arith.constant dense<0.000000e+00> : vector<8x256xf32>
    %21 = tpu.matmul %20, %15, %cst_18 {dimension_numbers = #tpu.dot_dimension_numbers<[1], [0], [0], [1], [0, 0, 1, 1], [], []>} : vector<8x64xf32>, vector<64x256xf32>, vector<8x256xf32> -> vector<8x256xf32>
    %c0_19 = arith.constant 0 : index
    %c0_20 = arith.constant 0 : index
    %22 = vector.load %arg16[%c0_19, %c0_20] : memref<64x256xf32, #tpu.memory_space<vmem>>, vector<8x128xf32>
    %23 = vector.extract_strided_slice %21 {offsets = [0, 0], sizes = [8, 128], strides = [1, 1]} : vector<8x256xf32> to vector<8x128xf32>
    %24 = arith.addf %22, %23 : vector<8x128xf32>
    %c56 = arith.constant 56 : index
    %c128 = arith.constant 128 : index
    %25 = vector.load %arg16[%c56, %c128] : memref<64x256xf32, #tpu.memory_space<vmem>>, vector<8x128xf32>
    %26 = vector.extract_strided_slice %21 {offsets = [0, 128], sizes = [8, 128], strides = [1, 1]} : vector<8x256xf32> to vector<8x128xf32>
    %27 = arith.addf %25, %26 : vector<8x128xf32>
    %28 = vector.extract_strided_slice %24 {offsets = [0, 0], sizes = [8, 32], strides = [1, 1]} : vector<8x128xf32> to vector<8x32xf32>
    %29 = arith.negf %28 : vector<8x32xf32>
    %30 = math.exp %29 : vector<8x32xf32>
    %cst_21 = arith.constant 1.000000e+00 : f32
    %31 = vector.broadcast %cst_21 : f32 to vector<8x32xf32>
    %32 = arith.addf %31, %30 : vector<8x32xf32>
    %33 = arith.divf %31, %32 : vector<8x32xf32>
    %34 = vector.extract_strided_slice %24 {offsets = [0, 32], sizes = [8, 32], strides = [1, 1]} : vector<8x128xf32> to vector<8x32xf32>
    %35 = arith.negf %34 : vector<8x32xf32>
    %36 = math.exp %35 : vector<8x32xf32>
    %cst_22 = arith.constant 1.000000e+00 : f32
    %37 = vector.broadcast %cst_22 : f32 to vector<8x32xf32>
    %38 = arith.addf %37, %36 : vector<8x32xf32>
    %39 = arith.divf %37, %38 : vector<8x32xf32>
    %40 = vector.extract_strided_slice %24 {offsets = [0, 64], sizes = [8, 32], strides = [1, 1]} : vector<8x128xf32> to vector<8x32xf32>
    %41 = math.tanh %40 : vector<8x32xf32>
    %42 = vector.extract_strided_slice %24 {offsets = [0, 96], sizes = [8, 32], strides = [1, 1]} : vector<8x128xf32> to vector<8x32xf32>
    %43 = arith.negf %42 : vector<8x32xf32>
    %44 = math.exp %43 : vector<8x32xf32>
    %cst_23 = arith.constant 1.000000e+00 : f32
    %45 = vector.broadcast %cst_23 : f32 to vector<8x32xf32>
    %46 = arith.addf %45, %44 : vector<8x32xf32>
    %47 = arith.divf %45, %46 : vector<8x32xf32>
    %48 = arith.mulf %39, %17 : vector<8x32xf32>
    %49 = arith.mulf %33, %41 : vector<8x32xf32>
    %50 = arith.addf %48, %49 : vector<8x32xf32>
    %51 = math.tanh %50 : vector<8x32xf32>
    %52 = arith.mulf %47, %51 : vector<8x32xf32>
    %53 = vector.extract_strided_slice %27 {offsets = [0, 0], sizes = [8, 32], strides = [1, 1]} : vector<8x128xf32> to vector<8x32xf32>
    %54 = arith.negf %53 : vector<8x32xf32>
    %55 = math.exp %54 : vector<8x32xf32>
    %cst_24 = arith.constant 1.000000e+00 : f32
    %56 = vector.broadcast %cst_24 : f32 to vector<8x32xf32>
    %57 = arith.addf %56, %55 : vector<8x32xf32>
    %58 = arith.divf %56, %57 : vector<8x32xf32>
    %59 = vector.extract_strided_slice %27 {offsets = [0, 32], sizes = [8, 32], strides = [1, 1]} : vector<8x128xf32> to vector<8x32xf32>
    %60 = arith.negf %59 : vector<8x32xf32>
    %61 = math.exp %60 : vector<8x32xf32>
    %cst_25 = arith.constant 1.000000e+00 : f32
    %62 = vector.broadcast %cst_25 : f32 to vector<8x32xf32>
    %63 = arith.addf %62, %61 : vector<8x32xf32>
    %64 = arith.divf %62, %63 : vector<8x32xf32>
    %65 = vector.extract_strided_slice %27 {offsets = [0, 64], sizes = [8, 32], strides = [1, 1]} : vector<8x128xf32> to vector<8x32xf32>
    %66 = math.tanh %65 : vector<8x32xf32>
    %67 = vector.extract_strided_slice %27 {offsets = [0, 96], sizes = [8, 32], strides = [1, 1]} : vector<8x128xf32> to vector<8x32xf32>
    %68 = arith.negf %67 : vector<8x32xf32>
    %69 = math.exp %68 : vector<8x32xf32>
    %cst_26 = arith.constant 1.000000e+00 : f32
    %70 = vector.broadcast %cst_26 : f32 to vector<8x32xf32>
    %71 = arith.addf %70, %69 : vector<8x32xf32>
    %72 = arith.divf %70, %71 : vector<8x32xf32>
    %73 = arith.mulf %64, %19 : vector<8x32xf32>
    %74 = arith.mulf %58, %66 : vector<8x32xf32>
    %75 = arith.addf %73, %74 : vector<8x32xf32>
    %76 = math.tanh %75 : vector<8x32xf32>
    %77 = arith.mulf %72, %76 : vector<8x32xf32>
    %c0_27 = arith.constant 0 : index
    %c0_28 = arith.constant 0 : index
    %78 = vector.load %arg17[%c0_27, %c0_28] : memref<64x64xf32, #tpu.memory_space<vmem>>, vector<8x32xf32>
    tpu.vector_store %arg17[%c0_27, %c0_28], %52 {strides = array<i32>} : memref<64x64xf32, #tpu.memory_space<vmem>>, vector<8x32xf32>,
    %c56_29 = arith.constant 56 : index
    %c32 = arith.constant 32 : index
    %79 = vector.load %arg17[%c56_29, %c32] : memref<64x64xf32, #tpu.memory_space<vmem>>, vector<8x32xf32>
    tpu.vector_store %arg17[%c56_29, %c32], %77 {strides = array<i32>} : memref<64x64xf32, #tpu.memory_space<vmem>>, vector<8x32xf32>,
    %80 = tpu.concatenate %52, %77 in 1 : vector<8x32xf32>, vector<8x32xf32> -> vector<8x64xf32>
    %cst_30 = arith.constant dense<0.000000e+00> : vector<8x256xf32>
    %81 = tpu.matmul %80, %15, %cst_30 {dimension_numbers = #tpu.dot_dimension_numbers<[1], [0], [0], [1], [0, 0, 1, 1], [], []>} : vector<8x64xf32>, vector<64x256xf32>, vector<8x256xf32> -> vector<8x256xf32>
    %c8 = arith.constant 8 : index
    %c0_31 = arith.constant 0 : index
    %82 = vector.load %arg16[%c8, %c0_31] : memref<64x256xf32, #tpu.memory_space<vmem>>, vector<8x128xf32>
    %83 = vector.extract_strided_slice %81 {offsets = [0, 0], sizes = [8, 128], strides = [1, 1]} : vector<8x256xf32> to vector<8x128xf32>
    %84 = arith.addf %82, %83 : vector<8x128xf32>
    %c48 = arith.constant 48 : index
    %c128_32 = arith.constant 128 : index
    %85 = vector.load %arg16[%c48, %c128_32] : memref<64x256xf32, #tpu.memory_space<vmem>>, vector<8x128xf32>
    %86 = vector.extract_strided_slice %81 {offsets = [0, 128], sizes = [8, 128], strides = [1, 1]} : vector<8x256xf32> to vector<8x128xf32>
    %87 = arith.addf %85, %86 : vector<8x128xf32>
    %88 = vector.extract_strided_slice %84 {offsets = [0, 0], sizes = [8, 32], strides = [1, 1]} : vector<8x128xf32> to vector<8x32xf32>
    %89 = arith.negf %88 : vector<8x32xf32>
    %90 = math.exp %89 : vector<8x32xf32>
    %cst_33 = arith.constant 1.000000e+00 : f32
    %91 = vector.broadcast %cst_33 : f32 to vector<8x32xf32>
    %92 = arith.addf %91, %90 : vector<8x32xf32>
    %93 = arith.divf %91, %92 : vector<8x32xf32>
    %94 = vector.extract_strided_slice %84 {offsets = [0, 32], sizes = [8, 32], strides = [1, 1]} : vector<8x128xf32> to vector<8x32xf32>
    %95 = arith.negf %94 : vector<8x32xf32>
    %96 = math.exp %95 : vector<8x32xf32>
    %cst_34 = arith.constant 1.000000e+00 : f32
    %97 = vector.broadcast %cst_34 : f32 to vector<8x32xf32>
    %98 = arith.addf %97, %96 : vector<8x32xf32>
    %99 = arith.divf %97, %98 : vector<8x32xf32>
    %100 = vector.extract_strided_slice %84 {offsets = [0, 64], sizes = [8, 32], strides = [1, 1]} : vector<8x128xf32> to vector<8x32xf32>
    %101 = math.tanh %100 : vector<8x32xf32>
    %102 = vector.extract_strided_slice %84 {offsets = [0, 96], sizes = [8, 32], strides = [1, 1]} : vector<8x128xf32> to vector<8x32xf32>
    %103 = arith.negf %102 : vector<8x32xf32>
    %104 = math.exp %103 : vector<8x32xf32>
    %cst_35 = arith.constant 1.000000e+00 : f32
    %105 = vector.broadcast %cst_35 : f32 to vector<8x32xf32>
    %106 = arith.addf %105, %104 : vector<8x32xf32>
    %107 = arith.divf %105, %106 : vector<8x32xf32>
    %108 = arith.mulf %99, %50 : vector<8x32xf32>
    %109 = arith.mulf %93, %101 : vector<8x32xf32>
    %110 = arith.addf %108, %109 : vector<8x32xf32>
    %111 = math.tanh %110 : vector<8x32xf32>
    %112 = arith.mulf %107, %111 : vector<8x32xf32>
    %113 = vector.extract_strided_slice %87 {offsets = [0, 0], sizes = [8, 32], strides = [1, 1]} : vector<8x128xf32> to vector<8x32xf32>
    %114 = arith.negf %113 : vector<8x32xf32>
    %115 = math.exp %114 : vector<8x32xf32>
    %cst_36 = arith.constant 1.000000e+00 : f32
    %116 = vector.broadcast %cst_36 : f32 to vector<8x32xf32>
    %117 = arith.addf %116, %115 : vector<8x32xf32>
    %118 = arith.divf %116, %117 : vector<8x32xf32>
    %119 = vector.extract_strided_slice %87 {offsets = [0, 32], sizes = [8, 32], strides = [1, 1]} : vector<8x128xf32> to vector<8x32xf32>
    %120 = arith.negf %119 : vector<8x32xf32>
    %121 = math.exp %120 : vector<8x32xf32>
    %cst_37 = arith.constant 1.000000e+00 : f32
    %122 = vector.broadcast %cst_37 : f32 to vector<8x32xf32>
    %123 = arith.addf %122, %121 : vector<8x32xf32>
    %124 = arith.divf %122, %123 : vector<8x32xf32>
    %125 = vector.extract_strided_slice %87 {offsets = [0, 64], sizes = [8, 32], strides = [1, 1]} : vector<8x128xf32> to vector<8x32xf32>
    %126 = math.tanh %125 : vector<8x32xf32>
    %127 = vector.extract_strided_slice %87 {offsets = [0, 96], sizes = [8, 32], strides = [1, 1]} : vector<8x128xf32> to vector<8x32xf32>
    %128 = arith.negf %127 : vector<8x32xf32>
    %129 = math.exp %128 : vector<8x32xf32>
    %cst_38 = arith.constant 1.000000e+00 : f32
    %130 = vector.broadcast %cst_38 : f32 to vector<8x32xf32>
    %131 = arith.addf %130, %129 : vector<8x32xf32>
    %132 = arith.divf %130, %131 : vector<8x32xf32>
    %133 = arith.mulf %124, %75 : vector<8x32xf32>
    %134 = arith.mulf %118, %126 : vector<8x32xf32>
    %135 = arith.addf %133, %134 : vector<8x32xf32>
    %136 = math.tanh %135 : vector<8x32xf32>
    %137 = arith.mulf %132, %136 : vector<8x32xf32>
    %c8_39 = arith.constant 8 : index
    %c0_40 = arith.constant 0 : index
    %138 = vector.load %arg17[%c8_39, %c0_40] : memref<64x64xf32, #tpu.memory_space<vmem>>, vector<8x32xf32>
    tpu.vector_store %arg17[%c8_39, %c0_40], %112 {strides = array<i32>} : memref<64x64xf32, #tpu.memory_space<vmem>>, vector<8x32xf32>,
    %c48_41 = arith.constant 48 : index
    %c32_42 = arith.constant 32 : index
    %139 = vector.load %arg17[%c48_41, %c32_42] : memref<64x64xf32, #tpu.memory_space<vmem>>, vector<8x32xf32>
    tpu.vector_store %arg17[%c48_41, %c32_42], %137 {strides = array<i32>} : memref<64x64xf32, #tpu.memory_space<vmem>>, vector<8x32xf32>,
    %140 = tpu.concatenate %112, %137 in 1 : vector<8x32xf32>, vector<8x32xf32> -> vector<8x64xf32>
    %cst_43 = arith.constant dense<0.000000e+00> : vector<8x256xf32>
    %141 = tpu.matmul %140, %15, %cst_43 {dimension_numbers = #tpu.dot_dimension_numbers<[1], [0], [0], [1], [0, 0, 1, 1], [], []>} : vector<8x64xf32>, vector<64x256xf32>, vector<8x256xf32> -> vector<8x256xf32>
    %c16 = arith.constant 16 : index
    %c0_44 = arith.constant 0 : index
    %142 = vector.load %arg16[%c16, %c0_44] : memref<64x256xf32, #tpu.memory_space<vmem>>, vector<8x128xf32>
    %143 = vector.extract_strided_slice %141 {offsets = [0, 0], sizes = [8, 128], strides = [1, 1]} : vector<8x256xf32> to vector<8x128xf32>
    %144 = arith.addf %142, %143 : vector<8x128xf32>
    %c40 = arith.constant 40 : index
    %c128_45 = arith.constant 128 : index
    %145 = vector.load %arg16[%c40, %c128_45] : memref<64x256xf32, #tpu.memory_space<vmem>>, vector<8x128xf32>
    %146 = vector.extract_strided_slice %141 {offsets = [0, 128], sizes = [8, 128], strides = [1, 1]} : vector<8x256xf32> to vector<8x128xf32>
    %147 = arith.addf %145, %146 : vector<8x128xf32>
    %148 = vector.extract_strided_slice %144 {offsets = [0, 0], sizes = [8, 32], strides = [1, 1]} : vector<8x128xf32> to vector<8x32xf32>
    %149 = arith.negf %148 : vector<8x32xf32>
    %150 = math.exp %149 : vector<8x32xf32>
    %cst_46 = arith.constant 1.000000e+00 : f32
    %151 = vector.broadcast %cst_46 : f32 to vector<8x32xf32>
    %152 = arith.addf %151, %150 : vector<8x32xf32>
    %153 = arith.divf %151, %152 : vector<8x32xf32>
    %154 = vector.extract_strided_slice %144 {offsets = [0, 32], sizes = [8, 32], strides = [1, 1]} : vector<8x128xf32> to vector<8x32xf32>
    %155 = arith.negf %154 : vector<8x32xf32>
    %156 = math.exp %155 : vector<8x32xf32>
    %cst_47 = arith.constant 1.000000e+00 : f32
    %157 = vector.broadcast %cst_47 : f32 to vector<8x32xf32>
    %158 = arith.addf %157, %156 : vector<8x32xf32>
    %159 = arith.divf %157, %158 : vector<8x32xf32>
    %160 = vector.extract_strided_slice %144 {offsets = [0, 64], sizes = [8, 32], strides = [1, 1]} : vector<8x128xf32> to vector<8x32xf32>
    %161 = math.tanh %160 : vector<8x32xf32>
    %162 = vector.extract_strided_slice %144 {offsets = [0, 96], sizes = [8, 32], strides = [1, 1]} : vector<8x128xf32> to vector<8x32xf32>
    %163 = arith.negf %162 : vector<8x32xf32>
    %164 = math.exp %163 : vector<8x32xf32>
    %cst_48 = arith.constant 1.000000e+00 : f32
    %165 = vector.broadcast %cst_48 : f32 to vector<8x32xf32>
    %166 = arith.addf %165, %164 : vector<8x32xf32>
    %167 = arith.divf %165, %166 : vector<8x32xf32>
    %168 = arith.mulf %159, %110 : vector<8x32xf32>
    %169 = arith.mulf %153, %161 : vector<8x32xf32>
    %170 = arith.addf %168, %169 : vector<8x32xf32>
    %171 = math.tanh %170 : vector<8x32xf32>
    %172 = arith.mulf %167, %171 : vector<8x32xf32>
    %173 = vector.extract_strided_slice %147 {offsets = [0, 0], sizes = [8, 32], strides = [1, 1]} : vector<8x128xf32> to vector<8x32xf32>
    %174 = arith.negf %173 : vector<8x32xf32>
    %175 = math.exp %174 : vector<8x32xf32>
    %cst_49 = arith.constant 1.000000e+00 : f32
    %176 = vector.broadcast %cst_49 : f32 to vector<8x32xf32>
    %177 = arith.addf %176, %175 : vector<8x32xf32>
    %178 = arith.divf %176, %177 : vector<8x32xf32>
    %179 = vector.extract_strided_slice %147 {offsets = [0, 32], sizes = [8, 32], strides = [1, 1]} : vector<8x128xf32> to vector<8x32xf32>
    %180 = arith.negf %179 : vector<8x32xf32>
    %181 = math.exp %180 : vector<8x32xf32>
    %cst_50 = arith.constant 1.000000e+00 : f32
    %182 = vector.broadcast %cst_50 : f32 to vector<8x32xf32>
    %183 = arith.addf %182, %181 : vector<8x32xf32>
    %184 = arith.divf %182, %183 : vector<8x32xf32>
    %185 = vector.extract_strided_slice %147 {offsets = [0, 64], sizes = [8, 32], strides = [1, 1]} : vector<8x128xf32> to vector<8x32xf32>
    %186 = math.tanh %185 : vector<8x32xf32>
    %187 = vector.extract_strided_slice %147 {offsets = [0, 96], sizes = [8, 32], strides = [1, 1]} : vector<8x128xf32> to vector<8x32xf32>
    %188 = arith.negf %187 : vector<8x32xf32>
    %189 = math.exp %188 : vector<8x32xf32>
    %cst_51 = arith.constant 1.000000e+00 : f32
    %190 = vector.broadcast %cst_51 : f32 to vector<8x32xf32>
    %191 = arith.addf %190, %189 : vector<8x32xf32>
    %192 = arith.divf %190, %191 : vector<8x32xf32>
    %193 = arith.mulf %184, %135 : vector<8x32xf32>
    %194 = arith.mulf %178, %186 : vector<8x32xf32>
    %195 = arith.addf %193, %194 : vector<8x32xf32>
    %196 = math.tanh %195 : vector<8x32xf32>
    %197 = arith.mulf %192, %196 : vector<8x32xf32>
    %c16_52 = arith.constant 16 : index
    %c0_53 = arith.constant 0 : index
    %198 = vector.load %arg17[%c16_52, %c0_53] : memref<64x64xf32, #tpu.memory_space<vmem>>, vector<8x32xf32>
    tpu.vector_store %arg17[%c16_52, %c0_53], %172 {strides = array<i32>} : memref<64x64xf32, #tpu.memory_space<vmem>>, vector<8x32xf32>,
    %c40_54 = arith.constant 40 : index
    %c32_55 = arith.constant 32 : index
    %199 = vector.load %arg17[%c40_54, %c32_55] : memref<64x64xf32, #tpu.memory_space<vmem>>, vector<8x32xf32>
    tpu.vector_store %arg17[%c40_54, %c32_55], %197 {strides = array<i32>} : memref<64x64xf32, #tpu.memory_space<vmem>>, vector<8x32xf32>,
    %200 = tpu.concatenate %172, %197 in 1 : vector<8x32xf32>, vector<8x32xf32> -> vector<8x64xf32>
    %cst_56 = arith.constant dense<0.000000e+00> : vector<8x256xf32>
    %201 = tpu.matmul %200, %15, %cst_56 {dimension_numbers = #tpu.dot_dimension_numbers<[1], [0], [0], [1], [0, 0, 1, 1], [], []>} : vector<8x64xf32>, vector<64x256xf32>, vector<8x256xf32> -> vector<8x256xf32>
    %c24 = arith.constant 24 : index
    %c0_57 = arith.constant 0 : index
    %202 = vector.load %arg16[%c24, %c0_57] : memref<64x256xf32, #tpu.memory_space<vmem>>, vector<8x128xf32>
    %203 = vector.extract_strided_slice %201 {offsets = [0, 0], sizes = [8, 128], strides = [1, 1]} : vector<8x256xf32> to vector<8x128xf32>
    %204 = arith.addf %202, %203 : vector<8x128xf32>
    %c32_58 = arith.constant 32 : index
    %c128_59 = arith.constant 128 : index
    %205 = vector.load %arg16[%c32_58, %c128_59] : memref<64x256xf32, #tpu.memory_space<vmem>>, vector<8x128xf32>
    %206 = vector.extract_strided_slice %201 {offsets = [0, 128], sizes = [8, 128], strides = [1, 1]} : vector<8x256xf32> to vector<8x128xf32>
    %207 = arith.addf %205, %206 : vector<8x128xf32>
    %208 = vector.extract_strided_slice %204 {offsets = [0, 0], sizes = [8, 32], strides = [1, 1]} : vector<8x128xf32> to vector<8x32xf32>
    %209 = arith.negf %208 : vector<8x32xf32>
    %210 = math.exp %209 : vector<8x32xf32>
    %cst_60 = arith.constant 1.000000e+00 : f32
    %211 = vector.broadcast %cst_60 : f32 to vector<8x32xf32>
    %212 = arith.addf %211, %210 : vector<8x32xf32>
    %213 = arith.divf %211, %212 : vector<8x32xf32>
    %214 = vector.extract_strided_slice %204 {offsets = [0, 32], sizes = [8, 32], strides = [1, 1]} : vector<8x128xf32> to vector<8x32xf32>
    %215 = arith.negf %214 : vector<8x32xf32>
    %216 = math.exp %215 : vector<8x32xf32>
    %cst_61 = arith.constant 1.000000e+00 : f32
    %217 = vector.broadcast %cst_61 : f32 to vector<8x32xf32>
    %218 = arith.addf %217, %216 : vector<8x32xf32>
    %219 = arith.divf %217, %218 : vector<8x32xf32>
    %220 = vector.extract_strided_slice %204 {offsets = [0, 64], sizes = [8, 32], strides = [1, 1]} : vector<8x128xf32> to vector<8x32xf32>
    %221 = math.tanh %220 : vector<8x32xf32>
    %222 = vector.extract_strided_slice %204 {offsets = [0, 96], sizes = [8, 32], strides = [1, 1]} : vector<8x128xf32> to vector<8x32xf32>
    %223 = arith.negf %222 : vector<8x32xf32>
    %224 = math.exp %223 : vector<8x32xf32>
    %cst_62 = arith.constant 1.000000e+00 : f32
    %225 = vector.broadcast %cst_62 : f32 to vector<8x32xf32>
    %226 = arith.addf %225, %224 : vector<8x32xf32>
    %227 = arith.divf %225, %226 : vector<8x32xf32>
    %228 = arith.mulf %219, %170 : vector<8x32xf32>
    %229 = arith.mulf %213, %221 : vector<8x32xf32>
    %230 = arith.addf %228, %229 : vector<8x32xf32>
    %231 = math.tanh %230 : vector<8x32xf32>
    %232 = arith.mulf %227, %231 : vector<8x32xf32>
    %233 = vector.extract_strided_slice %207 {offsets = [0, 0], sizes = [8, 32], strides = [1, 1]} : vector<8x128xf32> to vector<8x32xf32>
    %234 = arith.negf %233 : vector<8x32xf32>
    %235 = math.exp %234 : vector<8x32xf32>
    %cst_63 = arith.constant 1.000000e+00 : f32
    %236 = vector.broadcast %cst_63 : f32 to vector<8x32xf32>
    %237 = arith.addf %236, %235 : vector<8x32xf32>
    %238 = arith.divf %236, %237 : vector<8x32xf32>
    %239 = vector.extract_strided_slice %207 {offsets = [0, 32], sizes = [8, 32], strides = [1, 1]} : vector<8x128xf32> to vector<8x32xf32>
    %240 = arith.negf %239 : vector<8x32xf32>
    %241 = math.exp %240 : vector<8x32xf32>
    %cst_64 = arith.constant 1.000000e+00 : f32
    %242 = vector.broadcast %cst_64 : f32 to vector<8x32xf32>
    %243 = arith.addf %242, %241 : vector<8x32xf32>
    %244 = arith.divf %242, %243 : vector<8x32xf32>
    %245 = vector.extract_strided_slice %207 {offsets = [0, 64], sizes = [8, 32], strides = [1, 1]} : vector<8x128xf32> to vector<8x32xf32>
    %246 = math.tanh %245 : vector<8x32xf32>
    %247 = vector.extract_strided_slice %207 {offsets = [0, 96], sizes = [8, 32], strides = [1, 1]} : vector<8x128xf32> to vector<8x32xf32>
    %248 = arith.negf %247 : vector<8x32xf32>
    %249 = math.exp %248 : vector<8x32xf32>
    %cst_65 = arith.constant 1.000000e+00 : f32
    %250 = vector.broadcast %cst_65 : f32 to vector<8x32xf32>
    %251 = arith.addf %250, %249 : vector<8x32xf32>
    %252 = arith.divf %250, %251 : vector<8x32xf32>
    %253 = arith.mulf %244, %195 : vector<8x32xf32>
    %254 = arith.mulf %238, %246 : vector<8x32xf32>
    %255 = arith.addf %253, %254 : vector<8x32xf32>
    %256 = math.tanh %255 : vector<8x32xf32>
    %257 = arith.mulf %252, %256 : vector<8x32xf32>
    %c24_66 = arith.constant 24 : index
    %c0_67 = arith.constant 0 : index
    %258 = vector.load %arg17[%c24_66, %c0_67] : memref<64x64xf32, #tpu.memory_space<vmem>>, vector<8x32xf32>
    tpu.vector_store %arg17[%c24_66, %c0_67], %232 {strides = array<i32>} : memref<64x64xf32, #tpu.memory_space<vmem>>, vector<8x32xf32>,
    %c32_68 = arith.constant 32 : index
    %c32_69 = arith.constant 32 : index
    %259 = vector.load %arg17[%c32_68, %c32_69] : memref<64x64xf32, #tpu.memory_space<vmem>>, vector<8x32xf32>
    tpu.vector_store %arg17[%c32_68, %c32_69], %257 {strides = array<i32>} : memref<64x64xf32, #tpu.memory_space<vmem>>, vector<8x32xf32>,
    %260 = tpu.concatenate %232, %257 in 1 : vector<8x32xf32>, vector<8x32xf32> -> vector<8x64xf32>
    %cst_70 = arith.constant dense<0.000000e+00> : vector<8x256xf32>
    %261 = tpu.matmul %260, %15, %cst_70 {dimension_numbers = #tpu.dot_dimension_numbers<[1], [0], [0], [1], [0, 0, 1, 1], [], []>} : vector<8x64xf32>, vector<64x256xf32>, vector<8x256xf32> -> vector<8x256xf32>
    %c32_71 = arith.constant 32 : index
    %c0_72 = arith.constant 0 : index
    %262 = vector.load %arg16[%c32_71, %c0_72] : memref<64x256xf32, #tpu.memory_space<vmem>>, vector<8x128xf32>
    %263 = vector.extract_strided_slice %261 {offsets = [0, 0], sizes = [8, 128], strides = [1, 1]} : vector<8x256xf32> to vector<8x128xf32>
    %264 = arith.addf %262, %263 : vector<8x128xf32>
    %c24_73 = arith.constant 24 : index
    %c128_74 = arith.constant 128 : index
    %265 = vector.load %arg16[%c24_73, %c128_74] : memref<64x256xf32, #tpu.memory_space<vmem>>, vector<8x128xf32>
    %266 = vector.extract_strided_slice %261 {offsets = [0, 128], sizes = [8, 128], strides = [1, 1]} : vector<8x256xf32> to vector<8x128xf32>
    %267 = arith.addf %265, %266 : vector<8x128xf32>
    %268 = vector.extract_strided_slice %264 {offsets = [0, 0], sizes = [8, 32], strides = [1, 1]} : vector<8x128xf32> to vector<8x32xf32>
    %269 = arith.negf %268 : vector<8x32xf32>
    %270 = math.exp %269 : vector<8x32xf32>
    %cst_75 = arith.constant 1.000000e+00 : f32
    %271 = vector.broadcast %cst_75 : f32 to vector<8x32xf32>
    %272 = arith.addf %271, %270 : vector<8x32xf32>
    %273 = arith.divf %271, %272 : vector<8x32xf32>
    %274 = vector.extract_strided_slice %264 {offsets = [0, 32], sizes = [8, 32], strides = [1, 1]} : vector<8x128xf32> to vector<8x32xf32>
    %275 = arith.negf %274 : vector<8x32xf32>
    %276 = math.exp %275 : vector<8x32xf32>
    %cst_76 = arith.constant 1.000000e+00 : f32
    %277 = vector.broadcast %cst_76 : f32 to vector<8x32xf32>
    %278 = arith.addf %277, %276 : vector<8x32xf32>
    %279 = arith.divf %277, %278 : vector<8x32xf32>
    %280 = vector.extract_strided_slice %264 {offsets = [0, 64], sizes = [8, 32], strides = [1, 1]} : vector<8x128xf32> to vector<8x32xf32>
    %281 = math.tanh %280 : vector<8x32xf32>
    %282 = vector.extract_strided_slice %264 {offsets = [0, 96], sizes = [8, 32], strides = [1, 1]} : vector<8x128xf32> to vector<8x32xf32>
    %283 = arith.negf %282 : vector<8x32xf32>
    %284 = math.exp %283 : vector<8x32xf32>
    %cst_77 = arith.constant 1.000000e+00 : f32
    %285 = vector.broadcast %cst_77 : f32 to vector<8x32xf32>
    %286 = arith.addf %285, %284 : vector<8x32xf32>
    %287 = arith.divf %285, %286 : vector<8x32xf32>
    %288 = arith.mulf %279, %230 : vector<8x32xf32>
    %289 = arith.mulf %273, %281 : vector<8x32xf32>
    %290 = arith.addf %288, %289 : vector<8x32xf32>
    %291 = math.tanh %290 : vector<8x32xf32>
    %292 = arith.mulf %287, %291 : vector<8x32xf32>
    %293 = vector.extract_strided_slice %267 {offsets = [0, 0], sizes = [8, 32], strides = [1, 1]} : vector<8x128xf32> to vector<8x32xf32>
    %294 = arith.negf %293 : vector<8x32xf32>
    %295 = math.exp %294 : vector<8x32xf32>
    %cst_78 = arith.constant 1.000000e+00 : f32
    %296 = vector.broadcast %cst_78 : f32 to vector<8x32xf32>
    %297 = arith.addf %296, %295 : vector<8x32xf32>
    %298 = arith.divf %296, %297 : vector<8x32xf32>
    %299 = vector.extract_strided_slice %267 {offsets = [0, 32], sizes = [8, 32], strides = [1, 1]} : vector<8x128xf32> to vector<8x32xf32>
    %300 = arith.negf %299 : vector<8x32xf32>
    %301 = math.exp %300 : vector<8x32xf32>
    %cst_79 = arith.constant 1.000000e+00 : f32
    %302 = vector.broadcast %cst_79 : f32 to vector<8x32xf32>
    %303 = arith.addf %302, %301 : vector<8x32xf32>
    %304 = arith.divf %302, %303 : vector<8x32xf32>
    %305 = vector.extract_strided_slice %267 {offsets = [0, 64], sizes = [8, 32], strides = [1, 1]} : vector<8x128xf32> to vector<8x32xf32>
    %306 = math.tanh %305 : vector<8x32xf32>
    %307 = vector.extract_strided_slice %267 {offsets = [0, 96], sizes = [8, 32], strides = [1, 1]} : vector<8x128xf32> to vector<8x32xf32>
    %308 = arith.negf %307 : vector<8x32xf32>
    %309 = math.exp %308 : vector<8x32xf32>
    %cst_80 = arith.constant 1.000000e+00 : f32
    %310 = vector.broadcast %cst_80 : f32 to vector<8x32xf32>
    %311 = arith.addf %310, %309 : vector<8x32xf32>
    %312 = arith.divf %310, %311 : vector<8x32xf32>
    %313 = arith.mulf %304, %255 : vector<8x32xf32>
    %314 = arith.mulf %298, %306 : vector<8x32xf32>
    %315 = arith.addf %313, %314 : vector<8x32xf32>
    %316 = math.tanh %315 : vector<8x32xf32>
    %317 = arith.mulf %312, %316 : vector<8x32xf32>
    %c32_81 = arith.constant 32 : index
    %c0_82 = arith.constant 0 : index
    %318 = vector.load %arg17[%c32_81, %c0_82] : memref<64x64xf32, #tpu.memory_space<vmem>>, vector<8x32xf32>
    tpu.vector_store %arg17[%c32_81, %c0_82], %292 {strides = array<i32>} : memref<64x64xf32, #tpu.memory_space<vmem>>, vector<8x32xf32>,
    %c24_83 = arith.constant 24 : index
    %c32_84 = arith.constant 32 : index
    %319 = vector.load %arg17[%c24_83, %c32_84] : memref<64x64xf32, #tpu.memory_space<vmem>>, vector<8x32xf32>
    tpu.vector_store %arg17[%c24_83, %c32_84], %317 {strides = array<i32>} : memref<64x64xf32, #tpu.memory_space<vmem>>, vector<8x32xf32>,
    %320 = tpu.concatenate %292, %317 in 1 : vector<8x32xf32>, vector<8x32xf32> -> vector<8x64xf32>
    %cst_85 = arith.constant dense<0.000000e+00> : vector<8x256xf32>
    %321 = tpu.matmul %320, %15, %cst_85 {dimension_numbers = #tpu.dot_dimension_numbers<[1], [0], [0], [1], [0, 0, 1, 1], [], []>} : vector<8x64xf32>, vector<64x256xf32>, vector<8x256xf32> -> vector<8x256xf32>
    %c40_86 = arith.constant 40 : index
    %c0_87 = arith.constant 0 : index
    %322 = vector.load %arg16[%c40_86, %c0_87] : memref<64x256xf32, #tpu.memory_space<vmem>>, vector<8x128xf32>
    %323 = vector.extract_strided_slice %321 {offsets = [0, 0], sizes = [8, 128], strides = [1, 1]} : vector<8x256xf32> to vector<8x128xf32>
    %324 = arith.addf %322, %323 : vector<8x128xf32>
    %c16_88 = arith.constant 16 : index
    %c128_89 = arith.constant 128 : index
    %325 = vector.load %arg16[%c16_88, %c128_89] : memref<64x256xf32, #tpu.memory_space<vmem>>, vector<8x128xf32>
    %326 = vector.extract_strided_slice %321 {offsets = [0, 128], sizes = [8, 128], strides = [1, 1]} : vector<8x256xf32> to vector<8x128xf32>
    %327 = arith.addf %325, %326 : vector<8x128xf32>
    %328 = vector.extract_strided_slice %324 {offsets = [0, 0], sizes = [8, 32], strides = [1, 1]} : vector<8x128xf32> to vector<8x32xf32>
    %329 = arith.negf %328 : vector<8x32xf32>
    %330 = math.exp %329 : vector<8x32xf32>
    %cst_90 = arith.constant 1.000000e+00 : f32
    %331 = vector.broadcast %cst_90 : f32 to vector<8x32xf32>
    %332 = arith.addf %331, %330 : vector<8x32xf32>
    %333 = arith.divf %331, %332 : vector<8x32xf32>
    %334 = vector.extract_strided_slice %324 {offsets = [0, 32], sizes = [8, 32], strides = [1, 1]} : vector<8x128xf32> to vector<8x32xf32>
    %335 = arith.negf %334 : vector<8x32xf32>
    %336 = math.exp %335 : vector<8x32xf32>
    %cst_91 = arith.constant 1.000000e+00 : f32
    %337 = vector.broadcast %cst_91 : f32 to vector<8x32xf32>
    %338 = arith.addf %337, %336 : vector<8x32xf32>
    %339 = arith.divf %337, %338 : vector<8x32xf32>
    %340 = vector.extract_strided_slice %324 {offsets = [0, 64], sizes = [8, 32], strides = [1, 1]} : vector<8x128xf32> to vector<8x32xf32>
    %341 = math.tanh %340 : vector<8x32xf32>
    %342 = vector.extract_strided_slice %324 {offsets = [0, 96], sizes = [8, 32], strides = [1, 1]} : vector<8x128xf32> to vector<8x32xf32>
    %343 = arith.negf %342 : vector<8x32xf32>
    %344 = math.exp %343 : vector<8x32xf32>
    %cst_92 = arith.constant 1.000000e+00 : f32
    %345 = vector.broadcast %cst_92 : f32 to vector<8x32xf32>
    %346 = arith.addf %345, %344 : vector<8x32xf32>
    %347 = arith.divf %345, %346 : vector<8x32xf32>
    %348 = arith.mulf %339, %290 : vector<8x32xf32>
    %349 = arith.mulf %333, %341 : vector<8x32xf32>
    %350 = arith.addf %348, %349 : vector<8x32xf32>
    %351 = math.tanh %350 : vector<8x32xf32>
    %352 = arith.mulf %347, %351 : vector<8x32xf32>
    %353 = vector.extract_strided_slice %327 {offsets = [0, 0], sizes = [8, 32], strides = [1, 1]} : vector<8x128xf32> to vector<8x32xf32>
    %354 = arith.negf %353 : vector<8x32xf32>
    %355 = math.exp %354 : vector<8x32xf32>
    %cst_93 = arith.constant 1.000000e+00 : f32
    %356 = vector.broadcast %cst_93 : f32 to vector<8x32xf32>
    %357 = arith.addf %356, %355 : vector<8x32xf32>
    %358 = arith.divf %356, %357 : vector<8x32xf32>
    %359 = vector.extract_strided_slice %327 {offsets = [0, 32], sizes = [8, 32], strides = [1, 1]} : vector<8x128xf32> to vector<8x32xf32>
    %360 = arith.negf %359 : vector<8x32xf32>
    %361 = math.exp %360 : vector<8x32xf32>
    %cst_94 = arith.constant 1.000000e+00 : f32
    %362 = vector.broadcast %cst_94 : f32 to vector<8x32xf32>
    %363 = arith.addf %362, %361 : vector<8x32xf32>
    %364 = arith.divf %362, %363 : vector<8x32xf32>
    %365 = vector.extract_strided_slice %327 {offsets = [0, 64], sizes = [8, 32], strides = [1, 1]} : vector<8x128xf32> to vector<8x32xf32>
    %366 = math.tanh %365 : vector<8x32xf32>
    %367 = vector.extract_strided_slice %327 {offsets = [0, 96], sizes = [8, 32], strides = [1, 1]} : vector<8x128xf32> to vector<8x32xf32>
    %368 = arith.negf %367 : vector<8x32xf32>
    %369 = math.exp %368 : vector<8x32xf32>
    %cst_95 = arith.constant 1.000000e+00 : f32
    %370 = vector.broadcast %cst_95 : f32 to vector<8x32xf32>
    %371 = arith.addf %370, %369 : vector<8x32xf32>
    %372 = arith.divf %370, %371 : vector<8x32xf32>
    %373 = arith.mulf %364, %315 : vector<8x32xf32>
    %374 = arith.mulf %358, %366 : vector<8x32xf32>
    %375 = arith.addf %373, %374 : vector<8x32xf32>
    %376 = math.tanh %375 : vector<8x32xf32>
    %377 = arith.mulf %372, %376 : vector<8x32xf32>
    %c40_96 = arith.constant 40 : index
    %c0_97 = arith.constant 0 : index
    %378 = vector.load %arg17[%c40_96, %c0_97] : memref<64x64xf32, #tpu.memory_space<vmem>>, vector<8x32xf32>
    tpu.vector_store %arg17[%c40_96, %c0_97], %352 {strides = array<i32>} : memref<64x64xf32, #tpu.memory_space<vmem>>, vector<8x32xf32>,
    %c16_98 = arith.constant 16 : index
    %c32_99 = arith.constant 32 : index
    %379 = vector.load %arg17[%c16_98, %c32_99] : memref<64x64xf32, #tpu.memory_space<vmem>>, vector<8x32xf32>
    tpu.vector_store %arg17[%c16_98, %c32_99], %377 {strides = array<i32>} : memref<64x64xf32, #tpu.memory_space<vmem>>, vector<8x32xf32>,
    %380 = tpu.concatenate %352, %377 in 1 : vector<8x32xf32>, vector<8x32xf32> -> vector<8x64xf32>
    %cst_100 = arith.constant dense<0.000000e+00> : vector<8x256xf32>
    %381 = tpu.matmul %380, %15, %cst_100 {dimension_numbers = #tpu.dot_dimension_numbers<[1], [0], [0], [1], [0, 0, 1, 1], [], []>} : vector<8x64xf32>, vector<64x256xf32>, vector<8x256xf32> -> vector<8x256xf32>
    %c48_101 = arith.constant 48 : index
    %c0_102 = arith.constant 0 : index
    %382 = vector.load %arg16[%c48_101, %c0_102] : memref<64x256xf32, #tpu.memory_space<vmem>>, vector<8x128xf32>
    %383 = vector.extract_strided_slice %381 {offsets = [0, 0], sizes = [8, 128], strides = [1, 1]} : vector<8x256xf32> to vector<8x128xf32>
    %384 = arith.addf %382, %383 : vector<8x128xf32>
    %c8_103 = arith.constant 8 : index
    %c128_104 = arith.constant 128 : index
    %385 = vector.load %arg16[%c8_103, %c128_104] : memref<64x256xf32, #tpu.memory_space<vmem>>, vector<8x128xf32>
    %386 = vector.extract_strided_slice %381 {offsets = [0, 128], sizes = [8, 128], strides = [1, 1]} : vector<8x256xf32> to vector<8x128xf32>
    %387 = arith.addf %385, %386 : vector<8x128xf32>
    %388 = vector.extract_strided_slice %384 {offsets = [0, 0], sizes = [8, 32], strides = [1, 1]} : vector<8x128xf32> to vector<8x32xf32>
    %389 = arith.negf %388 : vector<8x32xf32>
    %390 = math.exp %389 : vector<8x32xf32>
    %cst_105 = arith.constant 1.000000e+00 : f32
    %391 = vector.broadcast %cst_105 : f32 to vector<8x32xf32>
    %392 = arith.addf %391, %390 : vector<8x32xf32>
    %393 = arith.divf %391, %392 : vector<8x32xf32>
    %394 = vector.extract_strided_slice %384 {offsets = [0, 32], sizes = [8, 32], strides = [1, 1]} : vector<8x128xf32> to vector<8x32xf32>
    %395 = arith.negf %394 : vector<8x32xf32>
    %396 = math.exp %395 : vector<8x32xf32>
    %cst_106 = arith.constant 1.000000e+00 : f32
    %397 = vector.broadcast %cst_106 : f32 to vector<8x32xf32>
    %398 = arith.addf %397, %396 : vector<8x32xf32>
    %399 = arith.divf %397, %398 : vector<8x32xf32>
    %400 = vector.extract_strided_slice %384 {offsets = [0, 64], sizes = [8, 32], strides = [1, 1]} : vector<8x128xf32> to vector<8x32xf32>
    %401 = math.tanh %400 : vector<8x32xf32>
    %402 = vector.extract_strided_slice %384 {offsets = [0, 96], sizes = [8, 32], strides = [1, 1]} : vector<8x128xf32> to vector<8x32xf32>
    %403 = arith.negf %402 : vector<8x32xf32>
    %404 = math.exp %403 : vector<8x32xf32>
    %cst_107 = arith.constant 1.000000e+00 : f32
    %405 = vector.broadcast %cst_107 : f32 to vector<8x32xf32>
    %406 = arith.addf %405, %404 : vector<8x32xf32>
    %407 = arith.divf %405, %406 : vector<8x32xf32>
    %408 = arith.mulf %399, %350 : vector<8x32xf32>
    %409 = arith.mulf %393, %401 : vector<8x32xf32>
    %410 = arith.addf %408, %409 : vector<8x32xf32>
    %411 = math.tanh %410 : vector<8x32xf32>
    %412 = arith.mulf %407, %411 : vector<8x32xf32>
    %413 = vector.extract_strided_slice %387 {offsets = [0, 0], sizes = [8, 32], strides = [1, 1]} : vector<8x128xf32> to vector<8x32xf32>
    %414 = arith.negf %413 : vector<8x32xf32>
    %415 = math.exp %414 : vector<8x32xf32>
    %cst_108 = arith.constant 1.000000e+00 : f32
    %416 = vector.broadcast %cst_108 : f32 to vector<8x32xf32>
    %417 = arith.addf %416, %415 : vector<8x32xf32>
    %418 = arith.divf %416, %417 : vector<8x32xf32>
    %419 = vector.extract_strided_slice %387 {offsets = [0, 32], sizes = [8, 32], strides = [1, 1]} : vector<8x128xf32> to vector<8x32xf32>
    %420 = arith.negf %419 : vector<8x32xf32>
    %421 = math.exp %420 : vector<8x32xf32>
    %cst_109 = arith.constant 1.000000e+00 : f32
    %422 = vector.broadcast %cst_109 : f32 to vector<8x32xf32>
    %423 = arith.addf %422, %421 : vector<8x32xf32>
    %424 = arith.divf %422, %423 : vector<8x32xf32>
    %425 = vector.extract_strided_slice %387 {offsets = [0, 64], sizes = [8, 32], strides = [1, 1]} : vector<8x128xf32> to vector<8x32xf32>
    %426 = math.tanh %425 : vector<8x32xf32>
    %427 = vector.extract_strided_slice %387 {offsets = [0, 96], sizes = [8, 32], strides = [1, 1]} : vector<8x128xf32> to vector<8x32xf32>
    %428 = arith.negf %427 : vector<8x32xf32>
    %429 = math.exp %428 : vector<8x32xf32>
    %cst_110 = arith.constant 1.000000e+00 : f32
    %430 = vector.broadcast %cst_110 : f32 to vector<8x32xf32>
    %431 = arith.addf %430, %429 : vector<8x32xf32>
    %432 = arith.divf %430, %431 : vector<8x32xf32>
    %433 = arith.mulf %424, %375 : vector<8x32xf32>
    %434 = arith.mulf %418, %426 : vector<8x32xf32>
    %435 = arith.addf %433, %434 : vector<8x32xf32>
    %436 = math.tanh %435 : vector<8x32xf32>
    %437 = arith.mulf %432, %436 : vector<8x32xf32>
    %c48_111 = arith.constant 48 : index
    %c0_112 = arith.constant 0 : index
    %438 = vector.load %arg17[%c48_111, %c0_112] : memref<64x64xf32, #tpu.memory_space<vmem>>, vector<8x32xf32>
    tpu.vector_store %arg17[%c48_111, %c0_112], %412 {strides = array<i32>} : memref<64x64xf32, #tpu.memory_space<vmem>>, vector<8x32xf32>,
    %c8_113 = arith.constant 8 : index
    %c32_114 = arith.constant 32 : index
    %439 = vector.load %arg17[%c8_113, %c32_114] : memref<64x64xf32, #tpu.memory_space<vmem>>, vector<8x32xf32>
    tpu.vector_store %arg17[%c8_113, %c32_114], %437 {strides = array<i32>} : memref<64x64xf32, #tpu.memory_space<vmem>>, vector<8x32xf32>,
    %440 = tpu.concatenate %412, %437 in 1 : vector<8x32xf32>, vector<8x32xf32> -> vector<8x64xf32>
    %cst_115 = arith.constant dense<0.000000e+00> : vector<8x256xf32>
    %441 = tpu.matmul %440, %15, %cst_115 {dimension_numbers = #tpu.dot_dimension_numbers<[1], [0], [0], [1], [0, 0, 1, 1], [], []>} : vector<8x64xf32>, vector<64x256xf32>, vector<8x256xf32> -> vector<8x256xf32>
    %c56_116 = arith.constant 56 : index
    %c0_117 = arith.constant 0 : index
    %442 = vector.load %arg16[%c56_116, %c0_117] : memref<64x256xf32, #tpu.memory_space<vmem>>, vector<8x128xf32>
    %443 = vector.extract_strided_slice %441 {offsets = [0, 0], sizes = [8, 128], strides = [1, 1]} : vector<8x256xf32> to vector<8x128xf32>
    %444 = arith.addf %442, %443 : vector<8x128xf32>
    %c0_118 = arith.constant 0 : index
    %c128_119 = arith.constant 128 : index
    %445 = vector.load %arg16[%c0_118, %c128_119] : memref<64x256xf32, #tpu.memory_space<vmem>>, vector<8x128xf32>
    %446 = vector.extract_strided_slice %441 {offsets = [0, 128], sizes = [8, 128], strides = [1, 1]} : vector<8x256xf32> to vector<8x128xf32>
    %447 = arith.addf %445, %446 : vector<8x128xf32>
    %448 = vector.extract_strided_slice %444 {offsets = [0, 0], sizes = [8, 32], strides = [1, 1]} : vector<8x128xf32> to vector<8x32xf32>
    %449 = arith.negf %448 : vector<8x32xf32>
    %450 = math.exp %449 : vector<8x32xf32>
    %cst_120 = arith.constant 1.000000e+00 : f32
    %451 = vector.broadcast %cst_120 : f32 to vector<8x32xf32>
    %452 = arith.addf %451, %450 : vector<8x32xf32>
    %453 = arith.divf %451, %452 : vector<8x32xf32>
    %454 = vector.extract_strided_slice %444 {offsets = [0, 32], sizes = [8, 32], strides = [1, 1]} : vector<8x128xf32> to vector<8x32xf32>
    %455 = arith.negf %454 : vector<8x32xf32>
    %456 = math.exp %455 : vector<8x32xf32>
    %cst_121 = arith.constant 1.000000e+00 : f32
    %457 = vector.broadcast %cst_121 : f32 to vector<8x32xf32>
    %458 = arith.addf %457, %456 : vector<8x32xf32>
    %459 = arith.divf %457, %458 : vector<8x32xf32>
    %460 = vector.extract_strided_slice %444 {offsets = [0, 64], sizes = [8, 32], strides = [1, 1]} : vector<8x128xf32> to vector<8x32xf32>
    %461 = math.tanh %460 : vector<8x32xf32>
    %462 = vector.extract_strided_slice %444 {offsets = [0, 96], sizes = [8, 32], strides = [1, 1]} : vector<8x128xf32> to vector<8x32xf32>
    %463 = arith.negf %462 : vector<8x32xf32>
    %464 = math.exp %463 : vector<8x32xf32>
    %cst_122 = arith.constant 1.000000e+00 : f32
    %465 = vector.broadcast %cst_122 : f32 to vector<8x32xf32>
    %466 = arith.addf %465, %464 : vector<8x32xf32>
    %467 = arith.divf %465, %466 : vector<8x32xf32>
    %468 = arith.mulf %459, %410 : vector<8x32xf32>
    %469 = arith.mulf %453, %461 : vector<8x32xf32>
    %470 = arith.addf %468, %469 : vector<8x32xf32>
    %471 = math.tanh %470 : vector<8x32xf32>
    %472 = arith.mulf %467, %471 : vector<8x32xf32>
    %473 = vector.extract_strided_slice %447 {offsets = [0, 0], sizes = [8, 32], strides = [1, 1]} : vector<8x128xf32> to vector<8x32xf32>
    %474 = arith.negf %473 : vector<8x32xf32>
    %475 = math.exp %474 : vector<8x32xf32>
    %cst_123 = arith.constant 1.000000e+00 : f32
    %476 = vector.broadcast %cst_123 : f32 to vector<8x32xf32>
    %477 = arith.addf %476, %475 : vector<8x32xf32>
    %478 = arith.divf %476, %477 : vector<8x32xf32>
    %479 = vector.extract_strided_slice %447 {offsets = [0, 32], sizes = [8, 32], strides = [1, 1]} : vector<8x128xf32> to vector<8x32xf32>
    %480 = arith.negf %479 : vector<8x32xf32>
    %481 = math.exp %480 : vector<8x32xf32>
    %cst_124 = arith.constant 1.000000e+00 : f32
    %482 = vector.broadcast %cst_124 : f32 to vector<8x32xf32>
    %483 = arith.addf %482, %481 : vector<8x32xf32>
    %484 = arith.divf %482, %483 : vector<8x32xf32>
    %485 = vector.extract_strided_slice %447 {offsets = [0, 64], sizes = [8, 32], strides = [1, 1]} : vector<8x128xf32> to vector<8x32xf32>
    %486 = math.tanh %485 : vector<8x32xf32>
    %487 = vector.extract_strided_slice %447 {offsets = [0, 96], sizes = [8, 32], strides = [1, 1]} : vector<8x128xf32> to vector<8x32xf32>
    %488 = arith.negf %487 : vector<8x32xf32>
    %489 = math.exp %488 : vector<8x32xf32>
    %cst_125 = arith.constant 1.000000e+00 : f32
    %490 = vector.broadcast %cst_125 : f32 to vector<8x32xf32>
    %491 = arith.addf %490, %489 : vector<8x32xf32>
    %492 = arith.divf %490, %491 : vector<8x32xf32>
    %493 = arith.mulf %484, %435 : vector<8x32xf32>
    %494 = arith.mulf %478, %486 : vector<8x32xf32>
    %495 = arith.addf %493, %494 : vector<8x32xf32>
    %496 = math.tanh %495 : vector<8x32xf32>
    %497 = arith.mulf %492, %496 : vector<8x32xf32>
    %c56_126 = arith.constant 56 : index
    %c0_127 = arith.constant 0 : index
    %498 = vector.load %arg17[%c56_126, %c0_127] : memref<64x64xf32, #tpu.memory_space<vmem>>, vector<8x32xf32>
    tpu.vector_store %arg17[%c56_126, %c0_127], %472 {strides = array<i32>} : memref<64x64xf32, #tpu.memory_space<vmem>>, vector<8x32xf32>,
    %c0_128 = arith.constant 0 : index
    %c32_129 = arith.constant 32 : index
    %499 = vector.load %arg17[%c0_128, %c32_129] : memref<64x64xf32, #tpu.memory_space<vmem>>, vector<8x32xf32>
    tpu.vector_store %arg17[%c0_128, %c32_129], %497 {strides = array<i32>} : memref<64x64xf32, #tpu.memory_space<vmem>>, vector<8x32xf32>,
    %c0_130 = arith.constant 0 : index
    %c0_131 = arith.constant 0 : index
    %500 = vector.load %arg17[%c0_130, %c0_131] : memref<64x64xf32, #tpu.memory_space<vmem>>, vector<64x64xf32>
    %c0_132 = arith.constant 0 : index
    %c0_133 = arith.constant 0 : index
    %501 = vector.load %arg6[%c0_132, %c0_133] : memref<64x256xf32, #tpu.memory_space<vmem>>, vector<64x256xf32>
    %cst_134 = arith.constant dense<0.000000e+00> : vector<64x256xf32>
    %502 = tpu.matmul %500, %501, %cst_134 {dimension_numbers = #tpu.dot_dimension_numbers<[1], [0], [0], [1], [0, 0, 1, 1], [], []>} : vector<64x64xf32>, vector<64x256xf32>, vector<64x256xf32> -> vector<64x256xf32>
    %c0_135 = arith.constant 0 : index
    %c0_136 = arith.constant 0 : index
    %503 = vector.load %arg8[%c0_135, %c0_136] : memref<1x256xf32, #tpu.memory_space<vmem>>, vector<1x256xf32>
    %504 = vector.broadcast %503 : vector<1x256xf32> to vector<64x256xf32>
    %505 = arith.addf %502, %504 : vector<64x256xf32>
    %c0_137 = arith.constant 0 : index
    %c0_138 = arith.constant 0 : index
    %506 = vector.load %arg16[%c0_137, %c0_138] : memref<64x256xf32, #tpu.memory_space<vmem>>, vector<64x256xf32>
    tpu.vector_store %arg16[%c0_137, %c0_138], %505 {strides = array<i32>} : memref<64x256xf32, #tpu.memory_space<vmem>>, vector<64x256xf32>,
    %c0_139 = arith.constant 0 : index
    %c0_140 = arith.constant 0 : index
    %507 = vector.load %arg7[%c0_139, %c0_140] : memref<64x256xf32, #tpu.memory_space<vmem>>, vector<64x256xf32>
    %cst_141 = arith.constant 0.000000e+00 : f32
    %508 = vector.broadcast %cst_141 : f32 to vector<8x32xf32>
    %cst_142 = arith.constant 0.000000e+00 : f32
    %509 = vector.broadcast %cst_142 : f32 to vector<8x32xf32>
    %cst_143 = arith.constant 0.000000e+00 : f32
    %510 = vector.broadcast %cst_143 : f32 to vector<8x32xf32>
    %cst_144 = arith.constant 0.000000e+00 : f32
    %511 = vector.broadcast %cst_144 : f32 to vector<8x32xf32>
    %512 = tpu.concatenate %508, %510 in 1 : vector<8x32xf32>, vector<8x32xf32> -> vector<8x64xf32>
    %cst_145 = arith.constant dense<0.000000e+00> : vector<8x256xf32>
    %513 = tpu.matmul %512, %507, %cst_145 {dimension_numbers = #tpu.dot_dimension_numbers<[1], [0], [0], [1], [0, 0, 1, 1], [], []>} : vector<8x64xf32>, vector<64x256xf32>, vector<8x256xf32> -> vector<8x256xf32>
    %c0_146 = arith.constant 0 : index
    %c0_147 = arith.constant 0 : index
    %514 = vector.load %arg16[%c0_146, %c0_147] : memref<64x256xf32, #tpu.memory_space<vmem>>, vector<8x128xf32>
    %515 = vector.extract_strided_slice %513 {offsets = [0, 0], sizes = [8, 128], strides = [1, 1]} : vector<8x256xf32> to vector<8x128xf32>
    %516 = arith.addf %514, %515 : vector<8x128xf32>
    %c56_148 = arith.constant 56 : index
    %c128_149 = arith.constant 128 : index
    %517 = vector.load %arg16[%c56_148, %c128_149] : memref<64x256xf32, #tpu.memory_space<vmem>>, vector<8x128xf32>
    %518 = vector.extract_strided_slice %513 {offsets = [0, 128], sizes = [8, 128], strides = [1, 1]} : vector<8x256xf32> to vector<8x128xf32>
    %519 = arith.addf %517, %518 : vector<8x128xf32>
    %520 = vector.extract_strided_slice %516 {offsets = [0, 0], sizes = [8, 32], strides = [1, 1]} : vector<8x128xf32> to vector<8x32xf32>
    %521 = arith.negf %520 : vector<8x32xf32>
    %522 = math.exp %521 : vector<8x32xf32>
    %cst_150 = arith.constant 1.000000e+00 : f32
    %523 = vector.broadcast %cst_150 : f32 to vector<8x32xf32>
    %524 = arith.addf %523, %522 : vector<8x32xf32>
    %525 = arith.divf %523, %524 : vector<8x32xf32>
    %526 = vector.extract_strided_slice %516 {offsets = [0, 32], sizes = [8, 32], strides = [1, 1]} : vector<8x128xf32> to vector<8x32xf32>
    %527 = arith.negf %526 : vector<8x32xf32>
    %528 = math.exp %527 : vector<8x32xf32>
    %cst_151 = arith.constant 1.000000e+00 : f32
    %529 = vector.broadcast %cst_151 : f32 to vector<8x32xf32>
    %530 = arith.addf %529, %528 : vector<8x32xf32>
    %531 = arith.divf %529, %530 : vector<8x32xf32>
    %532 = vector.extract_strided_slice %516 {offsets = [0, 64], sizes = [8, 32], strides = [1, 1]} : vector<8x128xf32> to vector<8x32xf32>
    %533 = math.tanh %532 : vector<8x32xf32>
    %534 = vector.extract_strided_slice %516 {offsets = [0, 96], sizes = [8, 32], strides = [1, 1]} : vector<8x128xf32> to vector<8x32xf32>
    %535 = arith.negf %534 : vector<8x32xf32>
    %536 = math.exp %535 : vector<8x32xf32>
    %cst_152 = arith.constant 1.000000e+00 : f32
    %537 = vector.broadcast %cst_152 : f32 to vector<8x32xf32>
    %538 = arith.addf %537, %536 : vector<8x32xf32>
    %539 = arith.divf %537, %538 : vector<8x32xf32>
    %540 = arith.mulf %531, %509 : vector<8x32xf32>
    %541 = arith.mulf %525, %533 : vector<8x32xf32>
    %542 = arith.addf %540, %541 : vector<8x32xf32>
    %543 = math.tanh %542 : vector<8x32xf32>
    %544 = arith.mulf %539, %543 : vector<8x32xf32>
    %545 = vector.extract_strided_slice %519 {offsets = [0, 0], sizes = [8, 32], strides = [1, 1]} : vector<8x128xf32> to vector<8x32xf32>
    %546 = arith.negf %545 : vector<8x32xf32>
    %547 = math.exp %546 : vector<8x32xf32>
    %cst_153 = arith.constant 1.000000e+00 : f32
    %548 = vector.broadcast %cst_153 : f32 to vector<8x32xf32>
    %549 = arith.addf %548, %547 : vector<8x32xf32>
    %550 = arith.divf %548, %549 : vector<8x32xf32>
    %551 = vector.extract_strided_slice %519 {offsets = [0, 32], sizes = [8, 32], strides = [1, 1]} : vector<8x128xf32> to vector<8x32xf32>
    %552 = arith.negf %551 : vector<8x32xf32>
    %553 = math.exp %552 : vector<8x32xf32>
    %cst_154 = arith.constant 1.000000e+00 : f32
    %554 = vector.broadcast %cst_154 : f32 to vector<8x32xf32>
    %555 = arith.addf %554, %553 : vector<8x32xf32>
    %556 = arith.divf %554, %555 : vector<8x32xf32>
    %557 = vector.extract_strided_slice %519 {offsets = [0, 64], sizes = [8, 32], strides = [1, 1]} : vector<8x128xf32> to vector<8x32xf32>
    %558 = math.tanh %557 : vector<8x32xf32>
    %559 = vector.extract_strided_slice %519 {offsets = [0, 96], sizes = [8, 32], strides = [1, 1]} : vector<8x128xf32> to vector<8x32xf32>
    %560 = arith.negf %559 : vector<8x32xf32>
    %561 = math.exp %560 : vector<8x32xf32>
    %cst_155 = arith.constant 1.000000e+00 : f32
    %562 = vector.broadcast %cst_155 : f32 to vector<8x32xf32>
    %563 = arith.addf %562, %561 : vector<8x32xf32>
    %564 = arith.divf %562, %563 : vector<8x32xf32>
    %565 = arith.mulf %556, %511 : vector<8x32xf32>
    %566 = arith.mulf %550, %558 : vector<8x32xf32>
    %567 = arith.addf %565, %566 : vector<8x32xf32>
    %568 = math.tanh %567 : vector<8x32xf32>
    %569 = arith.mulf %564, %568 : vector<8x32xf32>
    %c0_156 = arith.constant 0 : index
    %c0_157 = arith.constant 0 : index
    %570 = vector.load %arg18[%c0_156, %c0_157] : memref<64x64xf32, #tpu.memory_space<vmem>>, vector<8x32xf32>
    tpu.vector_store %arg18[%c0_156, %c0_157], %544 {strides = array<i32>} : memref<64x64xf32, #tpu.memory_space<vmem>>, vector<8x32xf32>,
    %c56_158 = arith.constant 56 : index
    %c32_159 = arith.constant 32 : index
    %571 = vector.load %arg18[%c56_158, %c32_159] : memref<64x64xf32, #tpu.memory_space<vmem>>, vector<8x32xf32>
    tpu.vector_store %arg18[%c56_158, %c32_159], %569 {strides = array<i32>} : memref<64x64xf32, #tpu.memory_space<vmem>>, vector<8x32xf32>,
    %572 = tpu.concatenate %544, %569 in 1 : vector<8x32xf32>, vector<8x32xf32> -> vector<8x64xf32>
    %cst_160 = arith.constant dense<0.000000e+00> : vector<8x256xf32>
    %573 = tpu.matmul %572, %507, %cst_160 {dimension_numbers = #tpu.dot_dimension_numbers<[1], [0], [0], [1], [0, 0, 1, 1], [], []>} : vector<8x64xf32>, vector<64x256xf32>, vector<8x256xf32> -> vector<8x256xf32>
    %c8_161 = arith.constant 8 : index
    %c0_162 = arith.constant 0 : index
    %574 = vector.load %arg16[%c8_161, %c0_162] : memref<64x256xf32, #tpu.memory_space<vmem>>, vector<8x128xf32>
    %575 = vector.extract_strided_slice %573 {offsets = [0, 0], sizes = [8, 128], strides = [1, 1]} : vector<8x256xf32> to vector<8x128xf32>
    %576 = arith.addf %574, %575 : vector<8x128xf32>
    %c48_163 = arith.constant 48 : index
    %c128_164 = arith.constant 128 : index
    %577 = vector.load %arg16[%c48_163, %c128_164] : memref<64x256xf32, #tpu.memory_space<vmem>>, vector<8x128xf32>
    %578 = vector.extract_strided_slice %573 {offsets = [0, 128], sizes = [8, 128], strides = [1, 1]} : vector<8x256xf32> to vector<8x128xf32>
    %579 = arith.addf %577, %578 : vector<8x128xf32>
    %580 = vector.extract_strided_slice %576 {offsets = [0, 0], sizes = [8, 32], strides = [1, 1]} : vector<8x128xf32> to vector<8x32xf32>
    %581 = arith.negf %580 : vector<8x32xf32>
    %582 = math.exp %581 : vector<8x32xf32>
    %cst_165 = arith.constant 1.000000e+00 : f32
    %583 = vector.broadcast %cst_165 : f32 to vector<8x32xf32>
    %584 = arith.addf %583, %582 : vector<8x32xf32>
    %585 = arith.divf %583, %584 : vector<8x32xf32>
    %586 = vector.extract_strided_slice %576 {offsets = [0, 32], sizes = [8, 32], strides = [1, 1]} : vector<8x128xf32> to vector<8x32xf32>
    %587 = arith.negf %586 : vector<8x32xf32>
    %588 = math.exp %587 : vector<8x32xf32>
    %cst_166 = arith.constant 1.000000e+00 : f32
    %589 = vector.broadcast %cst_166 : f32 to vector<8x32xf32>
    %590 = arith.addf %589, %588 : vector<8x32xf32>
    %591 = arith.divf %589, %590 : vector<8x32xf32>
    %592 = vector.extract_strided_slice %576 {offsets = [0, 64], sizes = [8, 32], strides = [1, 1]} : vector<8x128xf32> to vector<8x32xf32>
    %593 = math.tanh %592 : vector<8x32xf32>
    %594 = vector.extract_strided_slice %576 {offsets = [0, 96], sizes = [8, 32], strides = [1, 1]} : vector<8x128xf32> to vector<8x32xf32>
    %595 = arith.negf %594 : vector<8x32xf32>
    %596 = math.exp %595 : vector<8x32xf32>
    %cst_167 = arith.constant 1.000000e+00 : f32
    %597 = vector.broadcast %cst_167 : f32 to vector<8x32xf32>
    %598 = arith.addf %597, %596 : vector<8x32xf32>
    %599 = arith.divf %597, %598 : vector<8x32xf32>
    %600 = arith.mulf %591, %542 : vector<8x32xf32>
    %601 = arith.mulf %585, %593 : vector<8x32xf32>
    %602 = arith.addf %600, %601 : vector<8x32xf32>
    %603 = math.tanh %602 : vector<8x32xf32>
    %604 = arith.mulf %599, %603 : vector<8x32xf32>
    %605 = vector.extract_strided_slice %579 {offsets = [0, 0], sizes = [8, 32], strides = [1, 1]} : vector<8x128xf32> to vector<8x32xf32>
    %606 = arith.negf %605 : vector<8x32xf32>
    %607 = math.exp %606 : vector<8x32xf32>
    %cst_168 = arith.constant 1.000000e+00 : f32
    %608 = vector.broadcast %cst_168 : f32 to vector<8x32xf32>
    %609 = arith.addf %608, %607 : vector<8x32xf32>
    %610 = arith.divf %608, %609 : vector<8x32xf32>
    %611 = vector.extract_strided_slice %579 {offsets = [0, 32], sizes = [8, 32], strides = [1, 1]} : vector<8x128xf32> to vector<8x32xf32>
    %612 = arith.negf %611 : vector<8x32xf32>
    %613 = math.exp %612 : vector<8x32xf32>
    %cst_169 = arith.constant 1.000000e+00 : f32
    %614 = vector.broadcast %cst_169 : f32 to vector<8x32xf32>
    %615 = arith.addf %614, %613 : vector<8x32xf32>
    %616 = arith.divf %614, %615 : vector<8x32xf32>
    %617 = vector.extract_strided_slice %579 {offsets = [0, 64], sizes = [8, 32], strides = [1, 1]} : vector<8x128xf32> to vector<8x32xf32>
    %618 = math.tanh %617 : vector<8x32xf32>
    %619 = vector.extract_strided_slice %579 {offsets = [0, 96], sizes = [8, 32], strides = [1, 1]} : vector<8x128xf32> to vector<8x32xf32>
    %620 = arith.negf %619 : vector<8x32xf32>
    %621 = math.exp %620 : vector<8x32xf32>
    %cst_170 = arith.constant 1.000000e+00 : f32
    %622 = vector.broadcast %cst_170 : f32 to vector<8x32xf32>
    %623 = arith.addf %622, %621 : vector<8x32xf32>
    %624 = arith.divf %622, %623 : vector<8x32xf32>
    %625 = arith.mulf %616, %567 : vector<8x32xf32>
    %626 = arith.mulf %610, %618 : vector<8x32xf32>
    %627 = arith.addf %625, %626 : vector<8x32xf32>
    %628 = math.tanh %627 : vector<8x32xf32>
    %629 = arith.mulf %624, %628 : vector<8x32xf32>
    %c8_171 = arith.constant 8 : index
    %c0_172 = arith.constant 0 : index
    %630 = vector.load %arg18[%c8_171, %c0_172] : memref<64x64xf32, #tpu.memory_space<vmem>>, vector<8x32xf32>
    tpu.vector_store %arg18[%c8_171, %c0_172], %604 {strides = array<i32>} : memref<64x64xf32, #tpu.memory_space<vmem>>, vector<8x32xf32>,
    %c48_173 = arith.constant 48 : index
    %c32_174 = arith.constant 32 : index
    %631 = vector.load %arg18[%c48_173, %c32_174] : memref<64x64xf32, #tpu.memory_space<vmem>>, vector<8x32xf32>
    tpu.vector_store %arg18[%c48_173, %c32_174], %629 {strides = array<i32>} : memref<64x64xf32, #tpu.memory_space<vmem>>, vector<8x32xf32>,
    %632 = tpu.concatenate %604, %629 in 1 : vector<8x32xf32>, vector<8x32xf32> -> vector<8x64xf32>
    %cst_175 = arith.constant dense<0.000000e+00> : vector<8x256xf32>
    %633 = tpu.matmul %632, %507, %cst_175 {dimension_numbers = #tpu.dot_dimension_numbers<[1], [0], [0], [1], [0, 0, 1, 1], [], []>} : vector<8x64xf32>, vector<64x256xf32>, vector<8x256xf32> -> vector<8x256xf32>
    %c16_176 = arith.constant 16 : index
    %c0_177 = arith.constant 0 : index
    %634 = vector.load %arg16[%c16_176, %c0_177] : memref<64x256xf32, #tpu.memory_space<vmem>>, vector<8x128xf32>
    %635 = vector.extract_strided_slice %633 {offsets = [0, 0], sizes = [8, 128], strides = [1, 1]} : vector<8x256xf32> to vector<8x128xf32>
    %636 = arith.addf %634, %635 : vector<8x128xf32>
    %c40_178 = arith.constant 40 : index
    %c128_179 = arith.constant 128 : index
    %637 = vector.load %arg16[%c40_178, %c128_179] : memref<64x256xf32, #tpu.memory_space<vmem>>, vector<8x128xf32>
    %638 = vector.extract_strided_slice %633 {offsets = [0, 128], sizes = [8, 128], strides = [1, 1]} : vector<8x256xf32> to vector<8x128xf32>
    %639 = arith.addf %637, %638 : vector<8x128xf32>
    %640 = vector.extract_strided_slice %636 {offsets = [0, 0], sizes = [8, 32], strides = [1, 1]} : vector<8x128xf32> to vector<8x32xf32>
    %641 = arith.negf %640 : vector<8x32xf32>
    %642 = math.exp %641 : vector<8x32xf32>
    %cst_180 = arith.constant 1.000000e+00 : f32
    %643 = vector.broadcast %cst_180 : f32 to vector<8x32xf32>
    %644 = arith.addf %643, %642 : vector<8x32xf32>
    %645 = arith.divf %643, %644 : vector<8x32xf32>
    %646 = vector.extract_strided_slice %636 {offsets = [0, 32], sizes = [8, 32], strides = [1, 1]} : vector<8x128xf32> to vector<8x32xf32>
    %647 = arith.negf %646 : vector<8x32xf32>
    %648 = math.exp %647 : vector<8x32xf32>
    %cst_181 = arith.constant 1.000000e+00 : f32
    %649 = vector.broadcast %cst_181 : f32 to vector<8x32xf32>
    %650 = arith.addf %649, %648 : vector<8x32xf32>
    %651 = arith.divf %649, %650 : vector<8x32xf32>
    %652 = vector.extract_strided_slice %636 {offsets = [0, 64], sizes = [8, 32], strides = [1, 1]} : vector<8x128xf32> to vector<8x32xf32>
    %653 = math.tanh %652 : vector<8x32xf32>
    %654 = vector.extract_strided_slice %636 {offsets = [0, 96], sizes = [8, 32], strides = [1, 1]} : vector<8x128xf32> to vector<8x32xf32>
    %655 = arith.negf %654 : vector<8x32xf32>
    %656 = math.exp %655 : vector<8x32xf32>
    %cst_182 = arith.constant 1.000000e+00 : f32
    %657 = vector.broadcast %cst_182 : f32 to vector<8x32xf32>
    %658 = arith.addf %657, %656 : vector<8x32xf32>
    %659 = arith.divf %657, %658 : vector<8x32xf32>
    %660 = arith.mulf %651, %602 : vector<8x32xf32>
    %661 = arith.mulf %645, %653 : vector<8x32xf32>
    %662 = arith.addf %660, %661 : vector<8x32xf32>
    %663 = math.tanh %662 : vector<8x32xf32>
    %664 = arith.mulf %659, %663 : vector<8x32xf32>
    %665 = vector.extract_strided_slice %639 {offsets = [0, 0], sizes = [8, 32], strides = [1, 1]} : vector<8x128xf32> to vector<8x32xf32>
    %666 = arith.negf %665 : vector<8x32xf32>
    %667 = math.exp %666 : vector<8x32xf32>
    %cst_183 = arith.constant 1.000000e+00 : f32
    %668 = vector.broadcast %cst_183 : f32 to vector<8x32xf32>
    %669 = arith.addf %668, %667 : vector<8x32xf32>
    %670 = arith.divf %668, %669 : vector<8x32xf32>
    %671 = vector.extract_strided_slice %639 {offsets = [0, 32], sizes = [8, 32], strides = [1, 1]} : vector<8x128xf32> to vector<8x32xf32>
    %672 = arith.negf %671 : vector<8x32xf32>
    %673 = math.exp %672 : vector<8x32xf32>
    %cst_184 = arith.constant 1.000000e+00 : f32
    %674 = vector.broadcast %cst_184 : f32 to vector<8x32xf32>
    %675 = arith.addf %674, %673 : vector<8x32xf32>
    %676 = arith.divf %674, %675 : vector<8x32xf32>
    %677 = vector.extract_strided_slice %639 {offsets = [0, 64], sizes = [8, 32], strides = [1, 1]} : vector<8x128xf32> to vector<8x32xf32>
    %678 = math.tanh %677 : vector<8x32xf32>
    %679 = vector.extract_strided_slice %639 {offsets = [0, 96], sizes = [8, 32], strides = [1, 1]} : vector<8x128xf32> to vector<8x32xf32>
    %680 = arith.negf %679 : vector<8x32xf32>
    %681 = math.exp %680 : vector<8x32xf32>
    %cst_185 = arith.constant 1.000000e+00 : f32
    %682 = vector.broadcast %cst_185 : f32 to vector<8x32xf32>
    %683 = arith.addf %682, %681 : vector<8x32xf32>
    %684 = arith.divf %682, %683 : vector<8x32xf32>
    %685 = arith.mulf %676, %627 : vector<8x32xf32>
    %686 = arith.mulf %670, %678 : vector<8x32xf32>
    %687 = arith.addf %685, %686 : vector<8x32xf32>
    %688 = math.tanh %687 : vector<8x32xf32>
    %689 = arith.mulf %684, %688 : vector<8x32xf32>
    %c16_186 = arith.constant 16 : index
    %c0_187 = arith.constant 0 : index
    %690 = vector.load %arg18[%c16_186, %c0_187] : memref<64x64xf32, #tpu.memory_space<vmem>>, vector<8x32xf32>
    tpu.vector_store %arg18[%c16_186, %c0_187], %664 {strides = array<i32>} : memref<64x64xf32, #tpu.memory_space<vmem>>, vector<8x32xf32>,
    %c40_188 = arith.constant 40 : index
    %c32_189 = arith.constant 32 : index
    %691 = vector.load %arg18[%c40_188, %c32_189] : memref<64x64xf32, #tpu.memory_space<vmem>>, vector<8x32xf32>
    tpu.vector_store %arg18[%c40_188, %c32_189], %689 {strides = array<i32>} : memref<64x64xf32, #tpu.memory_space<vmem>>, vector<8x32xf32>,
    %692 = tpu.concatenate %664, %689 in 1 : vector<8x32xf32>, vector<8x32xf32> -> vector<8x64xf32>
    %cst_190 = arith.constant dense<0.000000e+00> : vector<8x256xf32>
    %693 = tpu.matmul %692, %507, %cst_190 {dimension_numbers = #tpu.dot_dimension_numbers<[1], [0], [0], [1], [0, 0, 1, 1], [], []>} : vector<8x64xf32>, vector<64x256xf32>, vector<8x256xf32> -> vector<8x256xf32>
    %c24_191 = arith.constant 24 : index
    %c0_192 = arith.constant 0 : index
    %694 = vector.load %arg16[%c24_191, %c0_192] : memref<64x256xf32, #tpu.memory_space<vmem>>, vector<8x128xf32>
    %695 = vector.extract_strided_slice %693 {offsets = [0, 0], sizes = [8, 128], strides = [1, 1]} : vector<8x256xf32> to vector<8x128xf32>
    %696 = arith.addf %694, %695 : vector<8x128xf32>
    %c32_193 = arith.constant 32 : index
    %c128_194 = arith.constant 128 : index
    %697 = vector.load %arg16[%c32_193, %c128_194] : memref<64x256xf32, #tpu.memory_space<vmem>>, vector<8x128xf32>
    %698 = vector.extract_strided_slice %693 {offsets = [0, 128], sizes = [8, 128], strides = [1, 1]} : vector<8x256xf32> to vector<8x128xf32>
    %699 = arith.addf %697, %698 : vector<8x128xf32>
    %700 = vector.extract_strided_slice %696 {offsets = [0, 0], sizes = [8, 32], strides = [1, 1]} : vector<8x128xf32> to vector<8x32xf32>
    %701 = arith.negf %700 : vector<8x32xf32>
    %702 = math.exp %701 : vector<8x32xf32>
    %cst_195 = arith.constant 1.000000e+00 : f32
    %703 = vector.broadcast %cst_195 : f32 to vector<8x32xf32>
    %704 = arith.addf %703, %702 : vector<8x32xf32>
    %705 = arith.divf %703, %704 : vector<8x32xf32>
    %706 = vector.extract_strided_slice %696 {offsets = [0, 32], sizes = [8, 32], strides = [1, 1]} : vector<8x128xf32> to vector<8x32xf32>
    %707 = arith.negf %706 : vector<8x32xf32>
    %708 = math.exp %707 : vector<8x32xf32>
    %cst_196 = arith.constant 1.000000e+00 : f32
    %709 = vector.broadcast %cst_196 : f32 to vector<8x32xf32>
    %710 = arith.addf %709, %708 : vector<8x32xf32>
    %711 = arith.divf %709, %710 : vector<8x32xf32>
    %712 = vector.extract_strided_slice %696 {offsets = [0, 64], sizes = [8, 32], strides = [1, 1]} : vector<8x128xf32> to vector<8x32xf32>
    %713 = math.tanh %712 : vector<8x32xf32>
    %714 = vector.extract_strided_slice %696 {offsets = [0, 96], sizes = [8, 32], strides = [1, 1]} : vector<8x128xf32> to vector<8x32xf32>
    %715 = arith.negf %714 : vector<8x32xf32>
    %716 = math.exp %715 : vector<8x32xf32>
    %cst_197 = arith.constant 1.000000e+00 : f32
    %717 = vector.broadcast %cst_197 : f32 to vector<8x32xf32>
    %718 = arith.addf %717, %716 : vector<8x32xf32>
    %719 = arith.divf %717, %718 : vector<8x32xf32>
    %720 = arith.mulf %711, %662 : vector<8x32xf32>
    %721 = arith.mulf %705, %713 : vector<8x32xf32>
    %722 = arith.addf %720, %721 : vector<8x32xf32>
    %723 = math.tanh %722 : vector<8x32xf32>
    %724 = arith.mulf %719, %723 : vector<8x32xf32>
    %725 = vector.extract_strided_slice %699 {offsets = [0, 0], sizes = [8, 32], strides = [1, 1]} : vector<8x128xf32> to vector<8x32xf32>
    %726 = arith.negf %725 : vector<8x32xf32>
    %727 = math.exp %726 : vector<8x32xf32>
    %cst_198 = arith.constant 1.000000e+00 : f32
    %728 = vector.broadcast %cst_198 : f32 to vector<8x32xf32>
    %729 = arith.addf %728, %727 : vector<8x32xf32>
    %730 = arith.divf %728, %729 : vector<8x32xf32>
    %731 = vector.extract_strided_slice %699 {offsets = [0, 32], sizes = [8, 32], strides = [1, 1]} : vector<8x128xf32> to vector<8x32xf32>
    %732 = arith.negf %731 : vector<8x32xf32>
    %733 = math.exp %732 : vector<8x32xf32>
    %cst_199 = arith.constant 1.000000e+00 : f32
    %734 = vector.broadcast %cst_199 : f32 to vector<8x32xf32>
    %735 = arith.addf %734, %733 : vector<8x32xf32>
    %736 = arith.divf %734, %735 : vector<8x32xf32>
    %737 = vector.extract_strided_slice %699 {offsets = [0, 64], sizes = [8, 32], strides = [1, 1]} : vector<8x128xf32> to vector<8x32xf32>
    %738 = math.tanh %737 : vector<8x32xf32>
    %739 = vector.extract_strided_slice %699 {offsets = [0, 96], sizes = [8, 32], strides = [1, 1]} : vector<8x128xf32> to vector<8x32xf32>
    %740 = arith.negf %739 : vector<8x32xf32>
    %741 = math.exp %740 : vector<8x32xf32>
    %cst_200 = arith.constant 1.000000e+00 : f32
    %742 = vector.broadcast %cst_200 : f32 to vector<8x32xf32>
    %743 = arith.addf %742, %741 : vector<8x32xf32>
    %744 = arith.divf %742, %743 : vector<8x32xf32>
    %745 = arith.mulf %736, %687 : vector<8x32xf32>
    %746 = arith.mulf %730, %738 : vector<8x32xf32>
    %747 = arith.addf %745, %746 : vector<8x32xf32>
    %748 = math.tanh %747 : vector<8x32xf32>
    %749 = arith.mulf %744, %748 : vector<8x32xf32>
    %c24_201 = arith.constant 24 : index
    %c0_202 = arith.constant 0 : index
    %750 = vector.load %arg18[%c24_201, %c0_202] : memref<64x64xf32, #tpu.memory_space<vmem>>, vector<8x32xf32>
    tpu.vector_store %arg18[%c24_201, %c0_202], %724 {strides = array<i32>} : memref<64x64xf32, #tpu.memory_space<vmem>>, vector<8x32xf32>,
    %c32_203 = arith.constant 32 : index
    %c32_204 = arith.constant 32 : index
    %751 = vector.load %arg18[%c32_203, %c32_204] : memref<64x64xf32, #tpu.memory_space<vmem>>, vector<8x32xf32>
    tpu.vector_store %arg18[%c32_203, %c32_204], %749 {strides = array<i32>} : memref<64x64xf32, #tpu.memory_space<vmem>>, vector<8x32xf32>,
    %752 = tpu.concatenate %724, %749 in 1 : vector<8x32xf32>, vector<8x32xf32> -> vector<8x64xf32>
    %cst_205 = arith.constant dense<0.000000e+00> : vector<8x256xf32>
    %753 = tpu.matmul %752, %507, %cst_205 {dimension_numbers = #tpu.dot_dimension_numbers<[1], [0], [0], [1], [0, 0, 1, 1], [], []>} : vector<8x64xf32>, vector<64x256xf32>, vector<8x256xf32> -> vector<8x256xf32>
    %c32_206 = arith.constant 32 : index
    %c0_207 = arith.constant 0 : index
    %754 = vector.load %arg16[%c32_206, %c0_207] : memref<64x256xf32, #tpu.memory_space<vmem>>, vector<8x128xf32>
    %755 = vector.extract_strided_slice %753 {offsets = [0, 0], sizes = [8, 128], strides = [1, 1]} : vector<8x256xf32> to vector<8x128xf32>
    %756 = arith.addf %754, %755 : vector<8x128xf32>
    %c24_208 = arith.constant 24 : index
    %c128_209 = arith.constant 128 : index
    %757 = vector.load %arg16[%c24_208, %c128_209] : memref<64x256xf32, #tpu.memory_space<vmem>>, vector<8x128xf32>
    %758 = vector.extract_strided_slice %753 {offsets = [0, 128], sizes = [8, 128], strides = [1, 1]} : vector<8x256xf32> to vector<8x128xf32>
    %759 = arith.addf %757, %758 : vector<8x128xf32>
    %760 = vector.extract_strided_slice %756 {offsets = [0, 0], sizes = [8, 32], strides = [1, 1]} : vector<8x128xf32> to vector<8x32xf32>
    %761 = arith.negf %760 : vector<8x32xf32>
    %762 = math.exp %761 : vector<8x32xf32>
    %cst_210 = arith.constant 1.000000e+00 : f32
    %763 = vector.broadcast %cst_210 : f32 to vector<8x32xf32>
    %764 = arith.addf %763, %762 : vector<8x32xf32>
    %765 = arith.divf %763, %764 : vector<8x32xf32>
    %766 = vector.extract_strided_slice %756 {offsets = [0, 32], sizes = [8, 32], strides = [1, 1]} : vector<8x128xf32> to vector<8x32xf32>
    %767 = arith.negf %766 : vector<8x32xf32>
    %768 = math.exp %767 : vector<8x32xf32>
    %cst_211 = arith.constant 1.000000e+00 : f32
    %769 = vector.broadcast %cst_211 : f32 to vector<8x32xf32>
    %770 = arith.addf %769, %768 : vector<8x32xf32>
    %771 = arith.divf %769, %770 : vector<8x32xf32>
    %772 = vector.extract_strided_slice %756 {offsets = [0, 64], sizes = [8, 32], strides = [1, 1]} : vector<8x128xf32> to vector<8x32xf32>
    %773 = math.tanh %772 : vector<8x32xf32>
    %774 = vector.extract_strided_slice %756 {offsets = [0, 96], sizes = [8, 32], strides = [1, 1]} : vector<8x128xf32> to vector<8x32xf32>
    %775 = arith.negf %774 : vector<8x32xf32>
    %776 = math.exp %775 : vector<8x32xf32>
    %cst_212 = arith.constant 1.000000e+00 : f32
    %777 = vector.broadcast %cst_212 : f32 to vector<8x32xf32>
    %778 = arith.addf %777, %776 : vector<8x32xf32>
    %779 = arith.divf %777, %778 : vector<8x32xf32>
    %780 = arith.mulf %771, %722 : vector<8x32xf32>
    %781 = arith.mulf %765, %773 : vector<8x32xf32>
    %782 = arith.addf %780, %781 : vector<8x32xf32>
    %783 = math.tanh %782 : vector<8x32xf32>
    %784 = arith.mulf %779, %783 : vector<8x32xf32>
    %785 = vector.extract_strided_slice %759 {offsets = [0, 0], sizes = [8, 32], strides = [1, 1]} : vector<8x128xf32> to vector<8x32xf32>
    %786 = arith.negf %785 : vector<8x32xf32>
    %787 = math.exp %786 : vector<8x32xf32>
    %cst_213 = arith.constant 1.000000e+00 : f32
    %788 = vector.broadcast %cst_213 : f32 to vector<8x32xf32>
    %789 = arith.addf %788, %787 : vector<8x32xf32>
    %790 = arith.divf %788, %789 : vector<8x32xf32>
    %791 = vector.extract_strided_slice %759 {offsets = [0, 32], sizes = [8, 32], strides = [1, 1]} : vector<8x128xf32> to vector<8x32xf32>
    %792 = arith.negf %791 : vector<8x32xf32>
    %793 = math.exp %792 : vector<8x32xf32>
    %cst_214 = arith.constant 1.000000e+00 : f32
    %794 = vector.broadcast %cst_214 : f32 to vector<8x32xf32>
    %795 = arith.addf %794, %793 : vector<8x32xf32>
    %796 = arith.divf %794, %795 : vector<8x32xf32>
    %797 = vector.extract_strided_slice %759 {offsets = [0, 64], sizes = [8, 32], strides = [1, 1]} : vector<8x128xf32> to vector<8x32xf32>
    %798 = math.tanh %797 : vector<8x32xf32>
    %799 = vector.extract_strided_slice %759 {offsets = [0, 96], sizes = [8, 32], strides = [1, 1]} : vector<8x128xf32> to vector<8x32xf32>
    %800 = arith.negf %799 : vector<8x32xf32>
    %801 = math.exp %800 : vector<8x32xf32>
    %cst_215 = arith.constant 1.000000e+00 : f32
    %802 = vector.broadcast %cst_215 : f32 to vector<8x32xf32>
    %803 = arith.addf %802, %801 : vector<8x32xf32>
    %804 = arith.divf %802, %803 : vector<8x32xf32>
    %805 = arith.mulf %796, %747 : vector<8x32xf32>
    %806 = arith.mulf %790, %798 : vector<8x32xf32>
    %807 = arith.addf %805, %806 : vector<8x32xf32>
    %808 = math.tanh %807 : vector<8x32xf32>
    %809 = arith.mulf %804, %808 : vector<8x32xf32>
    %c32_216 = arith.constant 32 : index
    %c0_217 = arith.constant 0 : index
    %810 = vector.load %arg18[%c32_216, %c0_217] : memref<64x64xf32, #tpu.memory_space<vmem>>, vector<8x32xf32>
    tpu.vector_store %arg18[%c32_216, %c0_217], %784 {strides = array<i32>} : memref<64x64xf32, #tpu.memory_space<vmem>>, vector<8x32xf32>,
    %c24_218 = arith.constant 24 : index
    %c32_219 = arith.constant 32 : index
    %811 = vector.load %arg18[%c24_218, %c32_219] : memref<64x64xf32, #tpu.memory_space<vmem>>, vector<8x32xf32>
    tpu.vector_store %arg18[%c24_218, %c32_219], %809 {strides = array<i32>} : memref<64x64xf32, #tpu.memory_space<vmem>>, vector<8x32xf32>,
    %812 = tpu.concatenate %784, %809 in 1 : vector<8x32xf32>, vector<8x32xf32> -> vector<8x64xf32>
    %cst_220 = arith.constant dense<0.000000e+00> : vector<8x256xf32>
    %813 = tpu.matmul %812, %507, %cst_220 {dimension_numbers = #tpu.dot_dimension_numbers<[1], [0], [0], [1], [0, 0, 1, 1], [], []>} : vector<8x64xf32>, vector<64x256xf32>, vector<8x256xf32> -> vector<8x256xf32>
    %c40_221 = arith.constant 40 : index
    %c0_222 = arith.constant 0 : index
    %814 = vector.load %arg16[%c40_221, %c0_222] : memref<64x256xf32, #tpu.memory_space<vmem>>, vector<8x128xf32>
    %815 = vector.extract_strided_slice %813 {offsets = [0, 0], sizes = [8, 128], strides = [1, 1]} : vector<8x256xf32> to vector<8x128xf32>
    %816 = arith.addf %814, %815 : vector<8x128xf32>
    %c16_223 = arith.constant 16 : index
    %c128_224 = arith.constant 128 : index
    %817 = vector.load %arg16[%c16_223, %c128_224] : memref<64x256xf32, #tpu.memory_space<vmem>>, vector<8x128xf32>
    %818 = vector.extract_strided_slice %813 {offsets = [0, 128], sizes = [8, 128], strides = [1, 1]} : vector<8x256xf32> to vector<8x128xf32>
    %819 = arith.addf %817, %818 : vector<8x128xf32>
    %820 = vector.extract_strided_slice %816 {offsets = [0, 0], sizes = [8, 32], strides = [1, 1]} : vector<8x128xf32> to vector<8x32xf32>
    %821 = arith.negf %820 : vector<8x32xf32>
    %822 = math.exp %821 : vector<8x32xf32>
    %cst_225 = arith.constant 1.000000e+00 : f32
    %823 = vector.broadcast %cst_225 : f32 to vector<8x32xf32>
    %824 = arith.addf %823, %822 : vector<8x32xf32>
    %825 = arith.divf %823, %824 : vector<8x32xf32>
    %826 = vector.extract_strided_slice %816 {offsets = [0, 32], sizes = [8, 32], strides = [1, 1]} : vector<8x128xf32> to vector<8x32xf32>
    %827 = arith.negf %826 : vector<8x32xf32>
    %828 = math.exp %827 : vector<8x32xf32>
    %cst_226 = arith.constant 1.000000e+00 : f32
    %829 = vector.broadcast %cst_226 : f32 to vector<8x32xf32>
    %830 = arith.addf %829, %828 : vector<8x32xf32>
    %831 = arith.divf %829, %830 : vector<8x32xf32>
    %832 = vector.extract_strided_slice %816 {offsets = [0, 64], sizes = [8, 32], strides = [1, 1]} : vector<8x128xf32> to vector<8x32xf32>
    %833 = math.tanh %832 : vector<8x32xf32>
    %834 = vector.extract_strided_slice %816 {offsets = [0, 96], sizes = [8, 32], strides = [1, 1]} : vector<8x128xf32> to vector<8x32xf32>
    %835 = arith.negf %834 : vector<8x32xf32>
    %836 = math.exp %835 : vector<8x32xf32>
    %cst_227 = arith.constant 1.000000e+00 : f32
    %837 = vector.broadcast %cst_227 : f32 to vector<8x32xf32>
    %838 = arith.addf %837, %836 : vector<8x32xf32>
    %839 = arith.divf %837, %838 : vector<8x32xf32>
    %840 = arith.mulf %831, %782 : vector<8x32xf32>
    %841 = arith.mulf %825, %833 : vector<8x32xf32>
    %842 = arith.addf %840, %841 : vector<8x32xf32>
    %843 = math.tanh %842 : vector<8x32xf32>
    %844 = arith.mulf %839, %843 : vector<8x32xf32>
    %845 = vector.extract_strided_slice %819 {offsets = [0, 0], sizes = [8, 32], strides = [1, 1]} : vector<8x128xf32> to vector<8x32xf32>
    %846 = arith.negf %845 : vector<8x32xf32>
    %847 = math.exp %846 : vector<8x32xf32>
    %cst_228 = arith.constant 1.000000e+00 : f32
    %848 = vector.broadcast %cst_228 : f32 to vector<8x32xf32>
    %849 = arith.addf %848, %847 : vector<8x32xf32>
    %850 = arith.divf %848, %849 : vector<8x32xf32>
    %851 = vector.extract_strided_slice %819 {offsets = [0, 32], sizes = [8, 32], strides = [1, 1]} : vector<8x128xf32> to vector<8x32xf32>
    %852 = arith.negf %851 : vector<8x32xf32>
    %853 = math.exp %852 : vector<8x32xf32>
    %cst_229 = arith.constant 1.000000e+00 : f32
    %854 = vector.broadcast %cst_229 : f32 to vector<8x32xf32>
    %855 = arith.addf %854, %853 : vector<8x32xf32>
    %856 = arith.divf %854, %855 : vector<8x32xf32>
    %857 = vector.extract_strided_slice %819 {offsets = [0, 64], sizes = [8, 32], strides = [1, 1]} : vector<8x128xf32> to vector<8x32xf32>
    %858 = math.tanh %857 : vector<8x32xf32>
    %859 = vector.extract_strided_slice %819 {offsets = [0, 96], sizes = [8, 32], strides = [1, 1]} : vector<8x128xf32> to vector<8x32xf32>
    %860 = arith.negf %859 : vector<8x32xf32>
    %861 = math.exp %860 : vector<8x32xf32>
    %cst_230 = arith.constant 1.000000e+00 : f32
    %862 = vector.broadcast %cst_230 : f32 to vector<8x32xf32>
    %863 = arith.addf %862, %861 : vector<8x32xf32>
    %864 = arith.divf %862, %863 : vector<8x32xf32>
    %865 = arith.mulf %856, %807 : vector<8x32xf32>
    %866 = arith.mulf %850, %858 : vector<8x32xf32>
    %867 = arith.addf %865, %866 : vector<8x32xf32>
    %868 = math.tanh %867 : vector<8x32xf32>
    %869 = arith.mulf %864, %868 : vector<8x32xf32>
    %c40_231 = arith.constant 40 : index
    %c0_232 = arith.constant 0 : index
    %870 = vector.load %arg18[%c40_231, %c0_232] : memref<64x64xf32, #tpu.memory_space<vmem>>, vector<8x32xf32>
    tpu.vector_store %arg18[%c40_231, %c0_232], %844 {strides = array<i32>} : memref<64x64xf32, #tpu.memory_space<vmem>>, vector<8x32xf32>,
    %c16_233 = arith.constant 16 : index
    %c32_234 = arith.constant 32 : index
    %871 = vector.load %arg18[%c16_233, %c32_234] : memref<64x64xf32, #tpu.memory_space<vmem>>, vector<8x32xf32>
    tpu.vector_store %arg18[%c16_233, %c32_234], %869 {strides = array<i32>} : memref<64x64xf32, #tpu.memory_space<vmem>>, vector<8x32xf32>,
    %872 = tpu.concatenate %844, %869 in 1 : vector<8x32xf32>, vector<8x32xf32> -> vector<8x64xf32>
    %cst_235 = arith.constant dense<0.000000e+00> : vector<8x256xf32>
    %873 = tpu.matmul %872, %507, %cst_235 {dimension_numbers = #tpu.dot_dimension_numbers<[1], [0], [0], [1], [0, 0, 1, 1], [], []>} : vector<8x64xf32>, vector<64x256xf32>, vector<8x256xf32> -> vector<8x256xf32>
    %c48_236 = arith.constant 48 : index
    %c0_237 = arith.constant 0 : index
    %874 = vector.load %arg16[%c48_236, %c0_237] : memref<64x256xf32, #tpu.memory_space<vmem>>, vector<8x128xf32>
    %875 = vector.extract_strided_slice %873 {offsets = [0, 0], sizes = [8, 128], strides = [1, 1]} : vector<8x256xf32> to vector<8x128xf32>
    %876 = arith.addf %874, %875 : vector<8x128xf32>
    %c8_238 = arith.constant 8 : index
    %c128_239 = arith.constant 128 : index
    %877 = vector.load %arg16[%c8_238, %c128_239] : memref<64x256xf32, #tpu.memory_space<vmem>>, vector<8x128xf32>
    %878 = vector.extract_strided_slice %873 {offsets = [0, 128], sizes = [8, 128], strides = [1, 1]} : vector<8x256xf32> to vector<8x128xf32>
    %879 = arith.addf %877, %878 : vector<8x128xf32>
    %880 = vector.extract_strided_slice %876 {offsets = [0, 0], sizes = [8, 32], strides = [1, 1]} : vector<8x128xf32> to vector<8x32xf32>
    %881 = arith.negf %880 : vector<8x32xf32>
    %882 = math.exp %881 : vector<8x32xf32>
    %cst_240 = arith.constant 1.000000e+00 : f32
    %883 = vector.broadcast %cst_240 : f32 to vector<8x32xf32>
    %884 = arith.addf %883, %882 : vector<8x32xf32>
    %885 = arith.divf %883, %884 : vector<8x32xf32>
    %886 = vector.extract_strided_slice %876 {offsets = [0, 32], sizes = [8, 32], strides = [1, 1]} : vector<8x128xf32> to vector<8x32xf32>
    %887 = arith.negf %886 : vector<8x32xf32>
    %888 = math.exp %887 : vector<8x32xf32>
    %cst_241 = arith.constant 1.000000e+00 : f32
    %889 = vector.broadcast %cst_241 : f32 to vector<8x32xf32>
    %890 = arith.addf %889, %888 : vector<8x32xf32>
    %891 = arith.divf %889, %890 : vector<8x32xf32>
    %892 = vector.extract_strided_slice %876 {offsets = [0, 64], sizes = [8, 32], strides = [1, 1]} : vector<8x128xf32> to vector<8x32xf32>
    %893 = math.tanh %892 : vector<8x32xf32>
    %894 = vector.extract_strided_slice %876 {offsets = [0, 96], sizes = [8, 32], strides = [1, 1]} : vector<8x128xf32> to vector<8x32xf32>
    %895 = arith.negf %894 : vector<8x32xf32>
    %896 = math.exp %895 : vector<8x32xf32>
    %cst_242 = arith.constant 1.000000e+00 : f32
    %897 = vector.broadcast %cst_242 : f32 to vector<8x32xf32>
    %898 = arith.addf %897, %896 : vector<8x32xf32>
    %899 = arith.divf %897, %898 : vector<8x32xf32>
    %900 = arith.mulf %891, %842 : vector<8x32xf32>
    %901 = arith.mulf %885, %893 : vector<8x32xf32>
    %902 = arith.addf %900, %901 : vector<8x32xf32>
    %903 = math.tanh %902 : vector<8x32xf32>
    %904 = arith.mulf %899, %903 : vector<8x32xf32>
    %905 = vector.extract_strided_slice %879 {offsets = [0, 0], sizes = [8, 32], strides = [1, 1]} : vector<8x128xf32> to vector<8x32xf32>
    %906 = arith.negf %905 : vector<8x32xf32>
    %907 = math.exp %906 : vector<8x32xf32>
    %cst_243 = arith.constant 1.000000e+00 : f32
    %908 = vector.broadcast %cst_243 : f32 to vector<8x32xf32>
    %909 = arith.addf %908, %907 : vector<8x32xf32>
    %910 = arith.divf %908, %909 : vector<8x32xf32>
    %911 = vector.extract_strided_slice %879 {offsets = [0, 32], sizes = [8, 32], strides = [1, 1]} : vector<8x128xf32> to vector<8x32xf32>
    %912 = arith.negf %911 : vector<8x32xf32>
    %913 = math.exp %912 : vector<8x32xf32>
    %cst_244 = arith.constant 1.000000e+00 : f32
    %914 = vector.broadcast %cst_244 : f32 to vector<8x32xf32>
    %915 = arith.addf %914, %913 : vector<8x32xf32>
    %916 = arith.divf %914, %915 : vector<8x32xf32>
    %917 = vector.extract_strided_slice %879 {offsets = [0, 64], sizes = [8, 32], strides = [1, 1]} : vector<8x128xf32> to vector<8x32xf32>
    %918 = math.tanh %917 : vector<8x32xf32>
    %919 = vector.extract_strided_slice %879 {offsets = [0, 96], sizes = [8, 32], strides = [1, 1]} : vector<8x128xf32> to vector<8x32xf32>
    %920 = arith.negf %919 : vector<8x32xf32>
    %921 = math.exp %920 : vector<8x32xf32>
    %cst_245 = arith.constant 1.000000e+00 : f32
    %922 = vector.broadcast %cst_245 : f32 to vector<8x32xf32>
    %923 = arith.addf %922, %921 : vector<8x32xf32>
    %924 = arith.divf %922, %923 : vector<8x32xf32>
    %925 = arith.mulf %916, %867 : vector<8x32xf32>
    %926 = arith.mulf %910, %918 : vector<8x32xf32>
    %927 = arith.addf %925, %926 : vector<8x32xf32>
    %928 = math.tanh %927 : vector<8x32xf32>
    %929 = arith.mulf %924, %928 : vector<8x32xf32>
    %c48_246 = arith.constant 48 : index
    %c0_247 = arith.constant 0 : index
    %930 = vector.load %arg18[%c48_246, %c0_247] : memref<64x64xf32, #tpu.memory_space<vmem>>, vector<8x32xf32>
    tpu.vector_store %arg18[%c48_246, %c0_247], %904 {strides = array<i32>} : memref<64x64xf32, #tpu.memory_space<vmem>>, vector<8x32xf32>,
    %c8_248 = arith.constant 8 : index
    %c32_249 = arith.constant 32 : index
    %931 = vector.load %arg18[%c8_248, %c32_249] : memref<64x64xf32, #tpu.memory_space<vmem>>, vector<8x32xf32>
    tpu.vector_store %arg18[%c8_248, %c32_249], %929 {strides = array<i32>} : memref<64x64xf32, #tpu.memory_space<vmem>>, vector<8x32xf32>,
    %932 = tpu.concatenate %904, %929 in 1 : vector<8x32xf32>, vector<8x32xf32> -> vector<8x64xf32>
    %cst_250 = arith.constant dense<0.000000e+00> : vector<8x256xf32>
    %933 = tpu.matmul %932, %507, %cst_250 {dimension_numbers = #tpu.dot_dimension_numbers<[1], [0], [0], [1], [0, 0, 1, 1], [], []>} : vector<8x64xf32>, vector<64x256xf32>, vector<8x256xf32> -> vector<8x256xf32>
    %c56_251 = arith.constant 56 : index
    %c0_252 = arith.constant 0 : index
    %934 = vector.load %arg16[%c56_251, %c0_252] : memref<64x256xf32, #tpu.memory_space<vmem>>, vector<8x128xf32>
    %935 = vector.extract_strided_slice %933 {offsets = [0, 0], sizes = [8, 128], strides = [1, 1]} : vector<8x256xf32> to vector<8x128xf32>
    %936 = arith.addf %934, %935 : vector<8x128xf32>
    %c0_253 = arith.constant 0 : index
    %c128_254 = arith.constant 128 : index
    %937 = vector.load %arg16[%c0_253, %c128_254] : memref<64x256xf32, #tpu.memory_space<vmem>>, vector<8x128xf32>
    %938 = vector.extract_strided_slice %933 {offsets = [0, 128], sizes = [8, 128], strides = [1, 1]} : vector<8x256xf32> to vector<8x128xf32>
    %939 = arith.addf %937, %938 : vector<8x128xf32>
    %940 = vector.extract_strided_slice %936 {offsets = [0, 0], sizes = [8, 32], strides = [1, 1]} : vector<8x128xf32> to vector<8x32xf32>
    %941 = arith.negf %940 : vector<8x32xf32>
    %942 = math.exp %941 : vector<8x32xf32>
    %cst_255 = arith.constant 1.000000e+00 : f32
    %943 = vector.broadcast %cst_255 : f32 to vector<8x32xf32>
    %944 = arith.addf %943, %942 : vector<8x32xf32>
    %945 = arith.divf %943, %944 : vector<8x32xf32>
    %946 = vector.extract_strided_slice %936 {offsets = [0, 32], sizes = [8, 32], strides = [1, 1]} : vector<8x128xf32> to vector<8x32xf32>
    %947 = arith.negf %946 : vector<8x32xf32>
    %948 = math.exp %947 : vector<8x32xf32>
    %cst_256 = arith.constant 1.000000e+00 : f32
    %949 = vector.broadcast %cst_256 : f32 to vector<8x32xf32>
    %950 = arith.addf %949, %948 : vector<8x32xf32>
    %951 = arith.divf %949, %950 : vector<8x32xf32>
    %952 = vector.extract_strided_slice %936 {offsets = [0, 64], sizes = [8, 32], strides = [1, 1]} : vector<8x128xf32> to vector<8x32xf32>
    %953 = math.tanh %952 : vector<8x32xf32>
    %954 = vector.extract_strided_slice %936 {offsets = [0, 96], sizes = [8, 32], strides = [1, 1]} : vector<8x128xf32> to vector<8x32xf32>
    %955 = arith.negf %954 : vector<8x32xf32>
    %956 = math.exp %955 : vector<8x32xf32>
    %cst_257 = arith.constant 1.000000e+00 : f32
    %957 = vector.broadcast %cst_257 : f32 to vector<8x32xf32>
    %958 = arith.addf %957, %956 : vector<8x32xf32>
    %959 = arith.divf %957, %958 : vector<8x32xf32>
    %960 = arith.mulf %951, %902 : vector<8x32xf32>
    %961 = arith.mulf %945, %953 : vector<8x32xf32>
    %962 = arith.addf %960, %961 : vector<8x32xf32>
    %963 = math.tanh %962 : vector<8x32xf32>
    %964 = arith.mulf %959, %963 : vector<8x32xf32>
    %965 = vector.extract_strided_slice %939 {offsets = [0, 0], sizes = [8, 32], strides = [1, 1]} : vector<8x128xf32> to vector<8x32xf32>
    %966 = arith.negf %965 : vector<8x32xf32>
    %967 = math.exp %966 : vector<8x32xf32>
    %cst_258 = arith.constant 1.000000e+00 : f32
    %968 = vector.broadcast %cst_258 : f32 to vector<8x32xf32>
    %969 = arith.addf %968, %967 : vector<8x32xf32>
    %970 = arith.divf %968, %969 : vector<8x32xf32>
    %971 = vector.extract_strided_slice %939 {offsets = [0, 32], sizes = [8, 32], strides = [1, 1]} : vector<8x128xf32> to vector<8x32xf32>
    %972 = arith.negf %971 : vector<8x32xf32>
    %973 = math.exp %972 : vector<8x32xf32>
    %cst_259 = arith.constant 1.000000e+00 : f32
    %974 = vector.broadcast %cst_259 : f32 to vector<8x32xf32>
    %975 = arith.addf %974, %973 : vector<8x32xf32>
    %976 = arith.divf %974, %975 : vector<8x32xf32>
    %977 = vector.extract_strided_slice %939 {offsets = [0, 64], sizes = [8, 32], strides = [1, 1]} : vector<8x128xf32> to vector<8x32xf32>
    %978 = math.tanh %977 : vector<8x32xf32>
    %979 = vector.extract_strided_slice %939 {offsets = [0, 96], sizes = [8, 32], strides = [1, 1]} : vector<8x128xf32> to vector<8x32xf32>
    %980 = arith.negf %979 : vector<8x32xf32>
    %981 = math.exp %980 : vector<8x32xf32>
    %cst_260 = arith.constant 1.000000e+00 : f32
    %982 = vector.broadcast %cst_260 : f32 to vector<8x32xf32>
    %983 = arith.addf %982, %981 : vector<8x32xf32>
    %984 = arith.divf %982, %983 : vector<8x32xf32>
    %985 = arith.mulf %976, %927 : vector<8x32xf32>
    %986 = arith.mulf %970, %978 : vector<8x32xf32>
    %987 = arith.addf %985, %986 : vector<8x32xf32>
    %988 = math.tanh %987 : vector<8x32xf32>
    %989 = arith.mulf %984, %988 : vector<8x32xf32>
    %c56_261 = arith.constant 56 : index
    %c0_262 = arith.constant 0 : index
    %990 = vector.load %arg18[%c56_261, %c0_262] : memref<64x64xf32, #tpu.memory_space<vmem>>, vector<8x32xf32>
    tpu.vector_store %arg18[%c56_261, %c0_262], %964 {strides = array<i32>} : memref<64x64xf32, #tpu.memory_space<vmem>>, vector<8x32xf32>,
    %c0_263 = arith.constant 0 : index
    %c32_264 = arith.constant 32 : index
    %991 = vector.load %arg18[%c0_263, %c32_264] : memref<64x64xf32, #tpu.memory_space<vmem>>, vector<8x32xf32>
    tpu.vector_store %arg18[%c0_263, %c32_264], %989 {strides = array<i32>} : memref<64x64xf32, #tpu.memory_space<vmem>>, vector<8x32xf32>,
    %c0_265 = arith.constant 0 : index
    %c0_266 = arith.constant 0 : index
    %992 = vector.load %arg18[%c0_265, %c0_266] : memref<64x64xf32, #tpu.memory_space<vmem>>, vector<64x64xf32>
    %993 = vector.extract_strided_slice %992 {offsets = [56, 0], sizes = [8, 64], strides = [1, 1]} : vector<64x64xf32> to vector<8x64xf32>
    %994 = vector.extract_strided_slice %992 {offsets = [0, 0], sizes = [8, 64], strides = [1, 1]} : vector<64x64xf32> to vector<8x64xf32>
    %995 = vector.extract_strided_slice %992 {offsets = [8, 0], sizes = [8, 64], strides = [1, 1]} : vector<64x64xf32> to vector<8x64xf32>
    %996 = arith.maximumf %994, %995 : vector<8x64xf32>
    %997 = vector.extract_strided_slice %992 {offsets = [16, 0], sizes = [8, 64], strides = [1, 1]} : vector<64x64xf32> to vector<8x64xf32>
    %998 = arith.maximumf %996, %997 : vector<8x64xf32>
    %999 = vector.extract_strided_slice %992 {offsets = [24, 0], sizes = [8, 64], strides = [1, 1]} : vector<64x64xf32> to vector<8x64xf32>
    %1000 = arith.maximumf %998, %999 : vector<8x64xf32>
    %1001 = vector.extract_strided_slice %992 {offsets = [32, 0], sizes = [8, 64], strides = [1, 1]} : vector<64x64xf32> to vector<8x64xf32>
    %1002 = arith.maximumf %1000, %1001 : vector<8x64xf32>
    %1003 = vector.extract_strided_slice %992 {offsets = [40, 0], sizes = [8, 64], strides = [1, 1]} : vector<64x64xf32> to vector<8x64xf32>
    %1004 = arith.maximumf %1002, %1003 : vector<8x64xf32>
    %1005 = vector.extract_strided_slice %992 {offsets = [48, 0], sizes = [8, 64], strides = [1, 1]} : vector<64x64xf32> to vector<8x64xf32>
    %1006 = arith.maximumf %1004, %1005 : vector<8x64xf32>
    %1007 = vector.extract_strided_slice %992 {offsets = [56, 0], sizes = [8, 64], strides = [1, 1]} : vector<64x64xf32> to vector<8x64xf32>
    %1008 = arith.maximumf %1006, %1007 : vector<8x64xf32>
    %1009 = math.tanh %993 : vector<8x64xf32>
    %1010 = math.tanh %1008 : vector<8x64xf32>
    %1011 = tpu.concatenate %1009, %1010 in 1 : vector<8x64xf32>, vector<8x64xf32> -> vector<8x128xf32>
    %c0_267 = arith.constant 0 : index
    %c0_268 = arith.constant 0 : index
    %1012 = vector.load %arg9[%c0_267, %c0_268] : memref<128x32xf32, #tpu.memory_space<vmem>>, vector<128x32xf32>
    %cst_269 = arith.constant dense<0.000000e+00> : vector<8x32xf32>
    %1013 = tpu.matmul %1011, %1012, %cst_269 {dimension_numbers = #tpu.dot_dimension_numbers<[1], [0], [0], [1], [0, 0, 1, 1], [], []>} : vector<8x128xf32>, vector<128x32xf32>, vector<8x32xf32> -> vector<8x32xf32>
    %c0_270 = arith.constant 0 : index
    %c0_271 = arith.constant 0 : index
    %1014 = vector.load %arg10[%c0_270, %c0_271] : memref<1x32xf32, #tpu.memory_space<vmem>>, vector<1x32xf32>
    %1015 = vector.broadcast %1014 : vector<1x32xf32> to vector<8x32xf32>
    %1016 = arith.addf %1013, %1015 : vector<8x32xf32>
    %c0_272 = arith.constant 0 : index
    %c0_273 = arith.constant 0 : index
    %1017 = vector.load %arg11[%c0_272, %c0_273] : memref<1x32xf32, #tpu.memory_space<vmem>>, vector<1x32xf32>
    %1018 = vector.broadcast %1017 : vector<1x32xf32> to vector<8x32xf32>
    %1019 = arith.mulf %1016, %1018 : vector<8x32xf32>
    %c0_274 = arith.constant 0 : index
    %c0_275 = arith.constant 0 : index
    %1020 = vector.load %arg12[%c0_274, %c0_275] : memref<1x32xf32, #tpu.memory_space<vmem>>, vector<1x32xf32>
    %1021 = vector.broadcast %1020 : vector<1x32xf32> to vector<8x32xf32>
    %1022 = arith.addf %1019, %1021 : vector<8x32xf32>
    %1023 = math.tanh %1022 : vector<8x32xf32>
    %c0_276 = arith.constant 0 : index
    %c0_277 = arith.constant 0 : index
    %1024 = vector.load %arg13[%c0_276, %c0_277] : memref<32x128xf32, #tpu.memory_space<vmem>>, vector<32x128xf32>
    %cst_278 = arith.constant dense<0.000000e+00> : vector<8x128xf32>
    %1025 = tpu.matmul %1023, %1024, %cst_278 {dimension_numbers = #tpu.dot_dimension_numbers<[1], [0], [0], [1], [0, 0, 1, 1], [], []>} : vector<8x32xf32>, vector<32x128xf32>, vector<8x128xf32> -> vector<8x128xf32>
    %c0_279 = arith.constant 0 : index
    %c0_280 = arith.constant 0 : index
    %1026 = vector.load %arg14[%c0_279, %c0_280] : memref<1x128xf32, #tpu.memory_space<vmem>>, vector<1x128xf32>
    %1027 = vector.broadcast %1026 : vector<1x128xf32> to vector<8x128xf32>
    %1028 = arith.addf %1025, %1027 : vector<8x128xf32>
    %c0_281 = arith.constant 0 : index
    %c0_282 = arith.constant 0 : index
    %1029 = vector.load %arg15[%c0_281, %c0_282] : memref<8x128xf32, #tpu.memory_space<vmem>>, vector<8x128xf32>
    tpu.vector_store %arg15[%c0_281, %c0_282], %1028 {strides = array<i32>} : memref<8x128xf32, #tpu.memory_space<vmem>>, vector<8x128xf32>,
    return
  }
  func.func @transform_0(%arg0: i32) -> (i32, i32) {
    %c0_i32 = arith.constant 0 : i32
    %c0_i32_0 = arith.constant 0 : i32
    %c0_i32_1 = arith.constant 0 : i32
    return %c0_i32, %c0_i32_0 : i32, i32
  }
  func.func @transform_1(%arg0: i32) -> (i32, i32) {
    %c0_i32 = arith.constant 0 : i32
    %c0_i32_0 = arith.constant 0 : i32
    %c0_i32_1 = arith.constant 0 : i32
    return %c0_i32, %c0_i32_0 : i32, i32
  }
  func.func @transform_2(%arg0: i32) -> (i32, i32) {
    %c0_i32 = arith.constant 0 : i32
    %c0_i32_0 = arith.constant 0 : i32
    %c0_i32_1 = arith.constant 0 : i32
    return %c0_i32, %c0_i32_0 : i32, i32
  }
  func.func @transform_3(%arg0: i32) -> (i32, i32) {
    %c0_i32 = arith.constant 0 : i32
    %c0_i32_0 = arith.constant 0 : i32
    %c0_i32_1 = arith.constant 0 : i32
    return %c0_i32, %c0_i32_0 : i32, i32
  }
  func.func @transform_4(%arg0: i32) -> (i32, i32) {
    %c0_i32 = arith.constant 0 : i32
    %c0_i32_0 = arith.constant 0 : i32
    %c0_i32_1 = arith.constant 0 : i32
    return %c0_i32, %c0_i32_0 : i32, i32
  }
  func.func @transform_5(%arg0: i32) -> (i32, i32) {
    %c0_i32 = arith.constant 0 : i32
    %c0_i32_0 = arith.constant 0 : i32
    %c0_i32_1 = arith.constant 0 : i32
    return %c0_i32, %c0_i32_0 : i32, i32
  }
  func.func @transform_6(%arg0: i32) -> (i32, i32) {
    %c0_i32 = arith.constant 0 : i32
    %c0_i32_0 = arith.constant 0 : i32
    %c0_i32_1 = arith.constant 0 : i32
    return %c0_i32, %c0_i32_0 : i32, i32
  }
  func.func @transform_7(%arg0: i32) -> (i32, i32) {
    %c0_i32 = arith.constant 0 : i32
    %c0_i32_0 = arith.constant 0 : i32
    %c0_i32_1 = arith.constant 0 : i32
    return %c0_i32, %c0_i32_0 : i32, i32
  }
  func.func @transform_8(%arg0: i32) -> (i32, i32) {
    %c0_i32 = arith.constant 0 : i32
    %c0_i32_0 = arith.constant 0 : i32
    %c0_i32_1 = arith.constant 0 : i32
    return %c0_i32, %c0_i32_0 : i32, i32
  }
  func.func @transform_9(%arg0: i32) -> (i32, i32) {
    %c0_i32 = arith.constant 0 : i32
    %c0_i32_0 = arith.constant 0 : i32
    %c0_i32_1 = arith.constant 0 : i32
    return %c0_i32, %c0_i32_0 : i32, i32
  }
  func.func @transform_10(%arg0: i32) -> (i32, i32) {
    %c0_i32 = arith.constant 0 : i32
    %c0_i32_0 = arith.constant 0 : i32
    %c0_i32_1 = arith.constant 0 : i32
    return %c0_i32, %c0_i32_0 : i32, i32
  }
  func.func @transform_11(%arg0: i32) -> (i32, i32) {
    %c0_i32 = arith.constant 0 : i32
    %c0_i32_0 = arith.constant 0 : i32
    %c0_i32_1 = arith.constant 0 : i32
    return %c0_i32, %c0_i32_0 : i32, i32
  }
  func.func @transform_12(%arg0: i32) -> (i32, i32) {
    %c0_i32 = arith.constant 0 : i32
    %c0_i32_0 = arith.constant 0 : i32
    %c0_i32_1 = arith.constant 0 : i32
    return %c0_i32, %c0_i32_0 : i32, i32
  }
  func.func @transform_13(%arg0: i32) -> (i32, i32) {
    %c0_i32 = arith.constant 0 : i32
    %c0_i32_0 = arith.constant 0 : i32
    %c0_i32_1 = arith.constant 0 : i32
    return %c0_i32, %c0_i32_0 : i32, i32
  }
  func.func @transform_14(%arg0: i32) -> (i32, i32) {
    %c0_i32 = arith.constant 0 : i32
    %c0_i32_0 = arith.constant 0 : i32
    %c0_i32_1 = arith.constant 0 : i32
    return %c0_i32, %c0_i32_0 : i32, i32
  }
}

</mosaic_0001>

<llo_original>
// kernel: rnn_classiff_max_forward.1
$region0: #{rnn_classiff_max_forward.1}
  #allocation0 [shape = 'u32[]', space=smem, size = 0x4, offset = 0x4, fixed_abs, tag = 'smem constant byte address 0x4 - core index']
  #allocation1 [shape = 'u32[144,128]{1,0:T(1,128)}', space=vmem, size = 0x12000, scoped, tag = 'internal scratch']
  #allocation2 [shape = 'f32[64,256]{1,0:T(8,128)}', space=vmem, size = 0x10000, scoped, tag = 'scratch operand']
  #allocation3 [shape = 'f32[64,64]{1,0:T(8,128)}', space=vmem, size = 0x8000, scoped, tag = 'scratch operand']
  #allocation4 [shape = 'f32[64,64]{1,0:T(8,128)}', space=vmem, size = 0x8000, scoped, tag = 'scratch operand']
  %s0 = inlined_call_operand.vmem [shape: s32[64,1], index: 0, kind: input, shape index: {}]
  %s1 = inlined_call_operand.vmem [shape: f32[50,32], index: 1, kind: input, shape index: {}]
  %s2 = inlined_call_operand.vmem [shape: f32[32,256], index: 2, kind: input, shape index: {}]
  %s3 = inlined_call_operand.vmem [shape: f32[64,256], index: 3, kind: input, shape index: {}]
  %s4 = inlined_call_operand.vmem [shape: f32[1,256], index: 4, kind: input, shape index: {}]
  %s5 = inlined_call_operand.vmem [shape: f32[64,256], index: 5, kind: input, shape index: {}]
  %s6 = inlined_call_operand.vmem [shape: f32[64,256], index: 6, kind: input, shape index: {}]
  %s7 = inlined_call_operand.vmem [shape: f32[1,256], index: 7, kind: input, shape index: {}]
  %s8 = inlined_call_operand.vmem [shape: f32[128,32], index: 8, kind: input, shape index: {}]
  %s9 = inlined_call_operand.vmem [shape: f32[1,32], index: 9, kind: input, shape index: {}]
  %s10 = inlined_call_operand.vmem [shape: f32[1,32], index: 10, kind: input, shape index: {}]
  %s11 = inlined_call_operand.vmem [shape: f32[1,32], index: 11, kind: input, shape index: {}]
  %s12 = inlined_call_operand.vmem [shape: f32[32,128], index: 12, kind: input, shape index: {}]
  %s13 = inlined_call_operand.vmem [shape: f32[1,128], index: 13, kind: input, shape index: {}]
  %s14 = inlined_call_operand.vmem [shape: f32[8,128], index: 14, kind: output, shape index: {}]
  %s15 = sld [smem:[#allocation0]]
  $region66: #{rnn_classiff_max_forward.1} parent=0
    _
  %s17 = ssub.s32 1, %s15
  %s18 = scalar_select 0, %s17, %s15
  // Predicated region
  $region2: #{rnn_classiff_max_forward.1} parent=0 // pred_check
    _
  $region3: #{rnn_classiff_max_forward.1} parent=0 // pred_check_branch
    %20 = sbr.rel (0) target = $region5
  $region4: #{rnn_classiff_max_forward.1} parent=0 // pred_region
    _
  $region5: #{rnn_classiff_max_forward.1} parent=0 // pred_fallthru
    _
  // Predicated region
  $region6: #{rnn_classiff_max_forward.1} parent=0 // pred_check
    _
  $region7: #{rnn_classiff_max_forward.1} parent=0 // pred_check_branch
    %22 = sbr.rel (0) target = $region9
  $region8: #{rnn_classiff_max_forward.1} parent=0 // pred_region
    _
  $region9: #{rnn_classiff_max_forward.1} parent=0 // pred_fallthru
    _
  // Predicated region
  $region10: #{rnn_classiff_max_forward.1} parent=0 // pred_check
    _
  $region11: #{rnn_classiff_max_forward.1} parent=0 // pred_check_branch
    %24 = sbr.rel (0) target = $region13
  $region12: #{rnn_classiff_max_forward.1} parent=0 // pred_region
    _
  $region13: #{rnn_classiff_max_forward.1} parent=0 // pred_fallthru
    _
  // Predicated region
  $region14: #{rnn_classiff_max_forward.1} parent=0 // pred_check
    _
  $region15: #{rnn_classiff_max_forward.1} parent=0 // pred_check_branch
    %26 = sbr.rel (0) target = $region17
  $region16: #{rnn_classiff_max_forward.1} parent=0 // pred_region
    _
  $region17: #{rnn_classiff_max_forward.1} parent=0 // pred_fallthru
    _
  // Predicated region
  $region18: #{rnn_classiff_max_forward.1} parent=0 // pred_check
    _
  $region19: #{rnn_classiff_max_forward.1} parent=0 // pred_check_branch
    %28 = sbr.rel (0) target = $region21
  $region20: #{rnn_classiff_max_forward.1} parent=0 // pred_region
    _
  $region21: #{rnn_classiff_max_forward.1} parent=0 // pred_fallthru
    _
  // Predicated region
  $region22: #{rnn_classiff_max_forward.1} parent=0 // pred_check
    _
  $region23: #{rnn_classiff_max_forward.1} parent=0 // pred_check_branch
    %30 = sbr.rel (0) target = $region25
  $region24: #{rnn_classiff_max_forward.1} parent=0 // pred_region
    _
  $region25: #{rnn_classiff_max_forward.1} parent=0 // pred_fallthru
    _
  // Predicated region
  $region26: #{rnn_classiff_max_forward.1} parent=0 // pred_check
    _
  $region27: #{rnn_classiff_max_forward.1} parent=0 // pred_check_branch
    %32 = sbr.rel (0) target = $region29
  $region28: #{rnn_classiff_max_forward.1} parent=0 // pred_region
    _
  $region29: #{rnn_classiff_max_forward.1} parent=0 // pred_fallthru
    _
  // Predicated region
  $region30: #{rnn_classiff_max_forward.1} parent=0 // pred_check
    _
  $region31: #{rnn_classiff_max_forward.1} parent=0 // pred_check_branch
    %34 = sbr.rel (0) target = $region33
  $region32: #{rnn_classiff_max_forward.1} parent=0 // pred_region
    _
  $region33: #{rnn_classiff_max_forward.1} parent=0 // pred_fallthru
    _
  // Predicated region
  $region34: #{rnn_classiff_max_forward.1} parent=0 // pred_check
    _
  $region35: #{rnn_classiff_max_forward.1} parent=0 // pred_check_branch
    %36 = sbr.rel (0) target = $region37
  $region36: #{rnn_classiff_max_forward.1} parent=0 // pred_region
    _
  $region37: #{rnn_classiff_max_forward.1} parent=0 // pred_fallthru
    _
  // Predicated region
  $region38: #{rnn_classiff_max_forward.1} parent=0 // pred_check
    _
  $region39: #{rnn_classiff_max_forward.1} parent=0 // pred_check_branch
    %38 = sbr.rel (0) target = $region41
  $region40: #{rnn_classiff_max_forward.1} parent=0 // pred_region
    _
  $region41: #{rnn_classiff_max_forward.1} parent=0 // pred_fallthru
    _
  // Predicated region
  $region42: #{rnn_classiff_max_forward.1} parent=0 // pred_check
    _
  $region43: #{rnn_classiff_max_forward.1} parent=0 // pred_check_branch
    %40 = sbr.rel (0) target = $region45
  $region44: #{rnn_classiff_max_forward.1} parent=0 // pred_region
    _
  $region45: #{rnn_classiff_max_forward.1} parent=0 // pred_fallthru
    _
  // Predicated region
  $region46: #{rnn_classiff_max_forward.1} parent=0 // pred_check
    _
  $region47: #{rnn_classiff_max_forward.1} parent=0 // pred_check_branch
    %42 = sbr.rel (0) target = $region49
  $region48: #{rnn_classiff_max_forward.1} parent=0 // pred_region
    _
  $region49: #{rnn_classiff_max_forward.1} parent=0 // pred_fallthru
    _
  // Predicated region
  $region50: #{rnn_classiff_max_forward.1} parent=0 // pred_check
    _
  $region51: #{rnn_classiff_max_forward.1} parent=0 // pred_check_branch
    %44 = sbr.rel (0) target = $region53
  $region52: #{rnn_classiff_max_forward.1} parent=0 // pred_region
    _
  $region53: #{rnn_classiff_max_forward.1} parent=0 // pred_fallthru
    _
  // Predicated region
  $region54: #{rnn_classiff_max_forward.1} parent=0 // pred_check
    _
  $region55: #{rnn_classiff_max_forward.1} parent=0 // pred_check_branch
    %46 = sbr.rel (0) target = $region57
  $region56: #{rnn_classiff_max_forward.1} parent=0 // pred_region
    _
  $region57: #{rnn_classiff_max_forward.1} parent=0 // pred_fallthru
    _
  %v47 = vld [vmem:[%s0] sm:$0xff]
  %v48 = vld [vmem:[%s0 + $0x8] sm:$0xff]
  %v49 = vld [vmem:[%s0 + $0x10] sm:$0xff]
  %v50 = vld [vmem:[%s0 + $0x18] sm:$0xff]
  %v51 = vld [vmem:[%s0 + $0x20] sm:$0xff]
  %v52 = vld [vmem:[%s0 + $0x28] sm:$0xff]
  %v53 = vld [vmem:[%s0 + $0x30] sm:$0xff]
  %v54 = vld [vmem:[%s0 + $0x38] sm:$0xff]
  %v55 = vlaneseq
  %v56 = vand.u32 %v55, 127
  %57 = vset.pattern.permute.xlu0 0
  %58 = vperm.xlu0 %57, %v47
  %v59 = vpop.permute.xlu0 %58
  %60 = vset.pattern.permute.xlu0 0
  %61 = vperm.xlu0 %60, %v48
  %v62 = vpop.permute.xlu0 %61
  %63 = vset.pattern.permute.xlu0 0
  %64 = vperm.xlu0 %63, %v49
  %v65 = vpop.permute.xlu0 %64
  %66 = vset.pattern.permute.xlu0 0
  %67 = vperm.xlu0 %66, %v50
  %v68 = vpop.permute.xlu0 %67
  %69 = vset.pattern.permute.xlu0 0
  %70 = vperm.xlu0 %69, %v51
  %v71 = vpop.permute.xlu0 %70
  %72 = vset.pattern.permute.xlu0 0
  %73 = vperm.xlu0 %72, %v52
  %v74 = vpop.permute.xlu0 %73
  %75 = vset.pattern.permute.xlu0 0
  %76 = vperm.xlu0 %75, %v53
  %v77 = vpop.permute.xlu0 %76
  %78 = vset.pattern.permute.xlu0 0
  %79 = vperm.xlu0 %78, %v54
  %v80 = vpop.permute.xlu0 %79
  %vm81 = vcmp.eq.s32.totalorder %v59, %v56
  %vm82 = vcmp.eq.s32.totalorder %v62, %v56
  %vm83 = vcmp.eq.s32.totalorder %v65, %v56
  %vm84 = vcmp.eq.s32.totalorder %v68, %v56
  %vm85 = vcmp.eq.s32.totalorder %v71, %v56
  %vm86 = vcmp.eq.s32.totalorder %v74, %v56
  %vm87 = vcmp.eq.s32.totalorder %v77, %v56
  %vm88 = vcmp.eq.s32.totalorder %v80, %v56
  %v89 = vsel %vm81, 1.0, 0.0
  %v90 = vsel %vm82, 1.0, 0.0
  %v91 = vsel %vm83, 1.0, 0.0
  %v92 = vsel %vm84, 1.0, 0.0
  %v93 = vsel %vm85, 1.0, 0.0
  %v94 = vsel %vm86, 1.0, 0.0
  %v95 = vsel %vm87, 1.0, 0.0
  %v96 = vsel %vm88, 1.0, 0.0
  %v97 = vld [vmem:[%s1] sm:$0xff]
  %v98 = vld [vmem:[%s1 + $0x8] sm:$0xff]
  %v99 = vld [vmem:[%s1 + $0x10] sm:$0xff]
  %v100 = vld [vmem:[%s1 + $0x18] sm:$0xff]
  %v101 = vld [vmem:[%s1 + $0x20] sm:$0xff]
  %v102 = vld [vmem:[%s1 + $0x28] sm:$0xff]
  %v103 = vld [vmem:[%s1 + $0x30] sm:$0x3]
  %vm104 = vcmask 408576
  %v106 = vsel %vm104, %v89, 0
  %v109 = vsel %vm104, %v90, 0
  %v112 = vsel %vm104, %v91, 0
  %v115 = vsel %vm104, %v92, 0
  %v118 = vsel %vm104, %v93, 0
  %v121 = vsel %vm104, %v94, 0
  %v124 = vsel %vm104, %v95, 0
  %v127 = vsel %vm104, %v96, 0
  %vm129 = vcmask 1041408
  %v131 = vsel %vm129, %v103, 0
  %133 = vmatprep.subr.mxu0 0.0
  %134 = vmatpush1.msra.mxu0 %v97
  %135 = vmatprep.subr.mxu0 0.0
  %136 = vmatpush1.msra.mxu0 %v98
  %137 = vmatprep.subr.mxu0 0.0
  %138 = vmatpush1.msra.mxu0 %v99
  %139 = vmatprep.subr.mxu0 0.0
  %140 = vmatpush1.msra.mxu0 %v100
  %141 = vmatprep.subr.mxu0 0.0
  %142 = vmatpush1.msra.mxu0 %v101
  %143 = vmatprep.subr.mxu0 0.0
  %144 = vmatpush1.msra.mxu0 %v102
  %145 = vmatprep.subr.mxu0 0.0
  %146 = vmatpush1.msra.mxu0 %v131
  %147 = vmatprep.subr.mxu0 0.0
  %148 = vmatpush1.msra.mxu0 0.0
  %149 = vmatprep.subr.mxu0 0.0
  %150 = vmatpush1.msra.mxu0 0.0
  %151 = vmatprep.subr.mxu0 0.0
  %152 = vmatpush1.msra.mxu0 0.0
  %153 = vmatprep.subr.mxu0 0.0
  %154 = vmatpush1.msra.mxu0 0.0
  %155 = vmatprep.subr.mxu0 0.0
  %156 = vmatpush1.msra.mxu0 0.0
  %157 = vmatprep.subr.mxu0 0.0
  %158 = vmatpush1.msra.mxu0 0.0
  %159 = vmatprep.subr.mxu0 0.0
  %160 = vmatpush1.msra.mxu0 0.0
  %161 = vmatprep.subr.mxu0 0.0
  %162 = vmatpush1.msra.mxu0 0.0
  %163 = vmatprep.subr.mxu0 0.0
  %164 = vmatpush1.msra.mxu0 0.0
  %165 = vmatprep.subr.mxu0 0.0
  %166 = vmatpush1.msra.mxu0 0.0
  %167 = vmatprep.subr.mxu0 0.0
  %168 = vmatpush1.msra.mxu0 0.0
  %169 = vmatprep.subr.mxu0 0.0
  %170 = vmatpush1.msra.mxu0 0.0
  %171 = vmatprep.subr.mxu0 0.0
  %172 = vmatpush1.msra.mxu0 0.0
  %173 = vmatprep.subr.mxu0 0.0
  %174 = vmatpush1.msra.mxu0 0.0
  %175 = vmatprep.subr.mxu0 0.0
  %176 = vmatpush1.msra.mxu0 0.0
  %177 = vmatprep.subr.mxu0 0.0
  %178 = vmatpush1.msra.mxu0 0.0
  %179 = vmatprep.subr.mxu0 0.0
  %180 = vmatpush1.msra.mxu0 0.0
  %181 = vmatprep.subr.mxu0 0.0
  %182 = vmatpush1.msra.mxu0 0.0
  %183 = vmatprep.subr.mxu0 0.0
  %184 = vmatpush1.msra.mxu0 0.0
  %185 = vmatprep.subr.mxu0 0.0
  %186 = vmatpush1.msra.mxu0 0.0
  %187 = vmatprep.subr.mxu0 0.0
  %188 = vmatpush1.msra.mxu0 0.0
  %189 = vmatprep.subr.mxu0 0.0
  %190 = vmatpush1.msra.mxu0 0.0
  %191 = vmatprep.subr.mxu0 0.0
  %192 = vmatpush1.msra.mxu0 0.0
  %193 = vmatprep.subr.mxu0 0.0
  %194 = vmatpush1.msra.mxu0 0.0
  %195 = vmatprep.subr.mxu0 0.0
  %196 = vmatpush1.msra.mxu0 0.0
  %197 = vmatprep.mubr.f32.mxu0 0.0
  %198 = vmatmul.mubr.f32.gmra.mrb[0].mxu0 %v106
  %v199 = vpop.f32.mrb[0].mxu0
  %v200 = vadd.f32 0.0, %v199
  %v201 = vpop.f32.mrb[0].mxu0
  %202 = vmatprep.mubr.f32.mxu0 0.0
  %203 = vmatmul.mubr.f32.gmra.mrb[0].mxu0 %v109
  %v204 = vpop.f32.mrb[0].mxu0
  %v205 = vadd.f32 0.0, %v204
  %v206 = vpop.f32.mrb[0].mxu0
  %207 = vmatprep.mubr.f32.mxu0 0.0
  %208 = vmatmul.mubr.f32.gmra.mrb[0].mxu0 %v112
  %v209 = vpop.f32.mrb[0].mxu0
  %v210 = vadd.f32 0.0, %v209
  %v211 = vpop.f32.mrb[0].mxu0
  %212 = vmatprep.mubr.f32.mxu0 0.0
  %213 = vmatmul.mubr.f32.gmra.mrb[0].mxu0 %v115
  %v214 = vpop.f32.mrb[0].mxu0
  %v215 = vadd.f32 0.0, %v214
  %v216 = vpop.f32.mrb[0].mxu0
  %217 = vmatprep.mubr.f32.mxu0 0.0
  %218 = vmatmul.mubr.f32.gmra.mrb[0].mxu0 %v118
  %v219 = vpop.f32.mrb[0].mxu0
  %v220 = vadd.f32 0.0, %v219
  %v221 = vpop.f32.mrb[0].mxu0
  %222 = vmatprep.mubr.f32.mxu0 0.0
  %223 = vmatmul.mubr.f32.gmra.mrb[0].mxu0 %v121
  %v224 = vpop.f32.mrb[0].mxu0
  %v225 = vadd.f32 0.0, %v224
  %v226 = vpop.f32.mrb[0].mxu0
  %227 = vmatprep.mubr.f32.mxu0 0.0
  %228 = vmatmul.mubr.f32.gmra.mrb[0].mxu0 %v124
  %v229 = vpop.f32.mrb[0].mxu0
  %v230 = vadd.f32 0.0, %v229
  %v231 = vpop.f32.mrb[0].mxu0
  %232 = vmatprep.mubr.f32.mxu0 0.0
  %233 = vmatmul.mubr.f32.gmra.mrb[0].mxu0 %v127
  %v234 = vpop.f32.mrb[0].mxu0
  %v235 = vadd.f32 0.0, %v234
  %v236 = vpop.f32.mrb[0].mxu0
  %237 = vdwg.mxu0
  %v238 = vld [vmem:[%s2] sm:$0xff]
  %v239 = vld [vmem:[%s2 + $0x8] sm:$0xff]
  %v240 = vld [vmem:[%s2 + $0x10] sm:$0xff]
  %v241 = vld [vmem:[%s2 + $0x18] sm:$0xff]
  %v242 = vld [vmem:[%s2 + $0x20] sm:$0xff]
  %v243 = vld [vmem:[%s2 + $0x28] sm:$0xff]
  %v244 = vld [vmem:[%s2 + $0x30] sm:$0xff]
  %v245 = vld [vmem:[%s2 + $0x38] sm:$0xff]
  %v246 = vld [vmem:[%s4] sm:$0x3]
  %v248 = vlaneseq
  %v249 = vshrl.u32 %v248, 7
  %v250 = vsub.s32 0, %v249
  %v251 = vrot.slane %v246, %v250
  %v252 = vlaneseq
  %v253 = vshrl.u32 %v252, 7
  %v254 = vsub.s32 1, %v253
  %v255 = vrot.slane %v246, %v254
  %vm258 = vcmask 261120
  %v260 = vsel %vm258, %v200, 0
  %v263 = vsel %vm258, %v205, 0
  %v266 = vsel %vm258, %v210, 0
  %v269 = vsel %vm258, %v215, 0
  %v272 = vsel %vm258, %v220, 0
  %v275 = vsel %vm258, %v225, 0
  %v278 = vsel %vm258, %v230, 0
  %v281 = vsel %vm258, %v235, 0
  %283 = vmatprep.subr.mxu0 %v239
  %284 = vmatpush1.msra.mxu0 %v238
  %285 = vmatprep.subr.mxu0 %v241
  %286 = vmatpush1.msra.mxu0 %v240
  %287 = vmatprep.subr.mxu0 %v243
  %288 = vmatpush1.msra.mxu0 %v242
  %289 = vmatprep.subr.mxu0 %v245
  %290 = vmatpush1.msra.mxu0 %v244
  %291 = vmatprep.subr.mxu0 0.0
  %292 = vmatpush1.msra.mxu0 0.0
  %293 = vmatprep.subr.mxu0 0.0
  %294 = vmatpush1.msra.mxu0 0.0
  %295 = vmatprep.subr.mxu0 0.0
  %296 = vmatpush1.msra.mxu0 0.0
  %297 = vmatprep.subr.mxu0 0.0
  %298 = vmatpush1.msra.mxu0 0.0
  %299 = vmatprep.subr.mxu0 0.0
  %300 = vmatpush1.msra.mxu0 0.0
  %301 = vmatprep.subr.mxu0 0.0
  %302 = vmatpush1.msra.mxu0 0.0
  %303 = vmatprep.subr.mxu0 0.0
  %304 = vmatpush1.msra.mxu0 0.0
  %305 = vmatprep.subr.mxu0 0.0
  %306 = vmatpush1.msra.mxu0 0.0
  %307 = vmatprep.subr.mxu0 0.0
  %308 = vmatpush1.msra.mxu0 0.0
  %309 = vmatprep.subr.mxu0 0.0
  %310 = vmatpush1.msra.mxu0 0.0
  %311 = vmatprep.subr.mxu0 0.0
  %312 = vmatpush1.msra.mxu0 0.0
  %313 = vmatprep.subr.mxu0 0.0
  %314 = vmatpush1.msra.mxu0 0.0
  %315 = vmatprep.subr.mxu0 0.0
  %316 = vmatpush1.msra.mxu0 0.0
  %317 = vmatprep.subr.mxu0 0.0
  %318 = vmatpush1.msra.mxu0 0.0
  %319 = vmatprep.subr.mxu0 0.0
  %320 = vmatpush1.msra.mxu0 0.0
  %321 = vmatprep.subr.mxu0 0.0
  %322 = vmatpush1.msra.mxu0 0.0
  %323 = vmatprep.subr.mxu0 0.0
  %324 = vmatpush1.msra.mxu0 0.0
  %325 = vmatprep.subr.mxu0 0.0
  %326 = vmatpush1.msra.mxu0 0.0
  %327 = vmatprep.subr.mxu0 0.0
  %328 = vmatpush1.msra.mxu0 0.0
  %329 = vmatprep.subr.mxu0 0.0
  %330 = vmatpush1.msra.mxu0 0.0
  %331 = vmatprep.subr.mxu0 0.0
  %332 = vmatpush1.msra.mxu0 0.0
  %333 = vmatprep.subr.mxu0 0.0
  %334 = vmatpush1.msra.mxu0 0.0
  %335 = vmatprep.subr.mxu0 0.0
  %336 = vmatpush1.msra.mxu0 0.0
  %337 = vmatprep.subr.mxu0 0.0
  %338 = vmatpush1.msra.mxu0 0.0
  %339 = vmatprep.subr.mxu0 0.0
  %340 = vmatpush1.msra.mxu0 0.0
  %341 = vmatprep.subr.mxu0 0.0
  %342 = vmatpush1.msra.mxu0 0.0
  %343 = vmatprep.subr.mxu0 0.0
  %344 = vmatpush1.msra.mxu0 0.0
  %345 = vmatprep.subr.mxu0 0.0
  %346 = vmatpush1.msra.mxu0 0.0
  %347 = vmatprep.mubr.f32.mxu0 0.0
  %348 = vmatmul.mubr.f32.gmra.mrb[0].mxu0 %v260
  %v349 = vpop.f32.mrb[0].mxu0
  %v350 = vadd.f32 %v251, %v349
  %v351 = vpop.f32.mrb[0].mxu0
  %v352 = vadd.f32 %v255, %v351
  %353 = vmatprep.mubr.f32.mxu0 0.0
  %354 = vmatmul.mubr.f32.gmra.mrb[0].mxu0 %v263
  %v355 = vpop.f32.mrb[0].mxu0
  %v356 = vadd.f32 %v251, %v355
  %v357 = vpop.f32.mrb[0].mxu0
  %v358 = vadd.f32 %v255, %v357
  %359 = vmatprep.mubr.f32.mxu0 0.0
  %360 = vmatmul.mubr.f32.gmra.mrb[0].mxu0 %v266
  %v361 = vpop.f32.mrb[0].mxu0
  %v362 = vadd.f32 %v251, %v361
  %v363 = vpop.f32.mrb[0].mxu0
  %v364 = vadd.f32 %v255, %v363
  %365 = vmatprep.mubr.f32.mxu0 0.0
  %366 = vmatmul.mubr.f32.gmra.mrb[0].mxu0 %v269
  %v367 = vpop.f32.mrb[0].mxu0
  %v368 = vadd.f32 %v251, %v367
  %v369 = vpop.f32.mrb[0].mxu0
  %v370 = vadd.f32 %v255, %v369
  %371 = vmatprep.mubr.f32.mxu0 0.0
  %372 = vmatmul.mubr.f32.gmra.mrb[0].mxu0 %v272
  %v373 = vpop.f32.mrb[0].mxu0
  %v374 = vadd.f32 %v251, %v373
  %v375 = vpop.f32.mrb[0].mxu0
  %v376 = vadd.f32 %v255, %v375
  %377 = vmatprep.mubr.f32.mxu0 0.0
  %378 = vmatmul.mubr.f32.gmra.mrb[0].mxu0 %v275
  %v379 = vpop.f32.mrb[0].mxu0
  %v380 = vadd.f32 %v251, %v379
  %v381 = vpop.f32.mrb[0].mxu0
  %v382 = vadd.f32 %v255, %v381
  %383 = vmatprep.mubr.f32.mxu0 0.0
  %384 = vmatmul.mubr.f32.gmra.mrb[0].mxu0 %v278
  %v385 = vpop.f32.mrb[0].mxu0
  %v386 = vadd.f32 %v251, %v385
  %v387 = vpop.f32.mrb[0].mxu0
  %v388 = vadd.f32 %v255, %v387
  %389 = vmatprep.mubr.f32.mxu0 0.0
  %390 = vmatmul.mubr.f32.gmra.mrb[0].mxu0 %v281
  %v391 = vpop.f32.mrb[0].mxu0
  %v392 = vadd.f32 %v251, %v391
  %v393 = vpop.f32.mrb[0].mxu0
  %v394 = vadd.f32 %v255, %v393
  %395 = vdwg.mxu0
  %396 = vst [vmem:[#allocation2] sm:$0xff] %v350
  %397 = vst [vmem:[#allocation2 + $0x8] sm:$0xff] %v352
  %398 = vst [vmem:[#allocation2 + $0x10] sm:$0xff] %v356
  %399 = vst [vmem:[#allocation2 + $0x18] sm:$0xff] %v358
  %400 = vst [vmem:[#allocation2 + $0x20] sm:$0xff] %v362
  %401 = vst [vmem:[#allocation2 + $0x28] sm:$0xff] %v364
  %402 = vst [vmem:[#allocation2 + $0x30] sm:$0xff] %v368
  %403 = vst [vmem:[#allocation2 + $0x38] sm:$0xff] %v370
  %404 = vst [vmem:[#allocation2 + $0x40] sm:$0xff] %v374
  %405 = vst [vmem:[#allocation2 + $0x48] sm:$0xff] %v376
  %406 = vst [vmem:[#allocation2 + $0x50] sm:$0xff] %v380
  %407 = vst [vmem:[#allocation2 + $0x58] sm:$0xff] %v382
  %408 = vst [vmem:[#allocation2 + $0x60] sm:$0xff] %v386
  %409 = vst [vmem:[#allocation2 + $0x68] sm:$0xff] %v388
  %410 = vst [vmem:[#allocation2 + $0x70] sm:$0xff] %v392
  %411 = vst [vmem:[#allocation2 + $0x78] sm:$0xff] %v394
  %v412 = vld [vmem:[%s3] sm:$0xff]
  %v413 = vld [vmem:[%s3 + $0x8] sm:$0xff]
  %v414 = vld [vmem:[%s3 + $0x10] sm:$0xff]
  %v415 = vld [vmem:[%s3 + $0x18] sm:$0xff]
  %v416 = vld [vmem:[%s3 + $0x20] sm:$0xff]
  %v417 = vld [vmem:[%s3 + $0x28] sm:$0xff]
  %v418 = vld [vmem:[%s3 + $0x30] sm:$0xff]
  %v419 = vld [vmem:[%s3 + $0x38] sm:$0xff]
  %v420 = vld [vmem:[%s3 + $0x40] sm:$0xff]
  %v421 = vld [vmem:[%s3 + $0x48] sm:$0xff]
  %v422 = vld [vmem:[%s3 + $0x50] sm:$0xff]
  %v423 = vld [vmem:[%s3 + $0x58] sm:$0xff]
  %v424 = vld [vmem:[%s3 + $0x60] sm:$0xff]
  %v425 = vld [vmem:[%s3 + $0x68] sm:$0xff]
  %v426 = vld [vmem:[%s3 + $0x70] sm:$0xff]
  %v427 = vld [vmem:[%s3 + $0x78] sm:$0xff]
  %vm428 = vcmask 523264
  %v430 = vsel %vm428, 0.0, 0
  %432 = vmatprep.subr.mxu0 %v413
  %433 = vmatpush1.msra.mxu0 %v412
  %434 = vmatprep.subr.mxu0 %v415
  %435 = vmatpush1.msra.mxu0 %v414
  %436 = vmatprep.subr.mxu0 %v417
  %437 = vmatpush1.msra.mxu0 %v416
  %438 = vmatprep.subr.mxu0 %v419
  %439 = vmatpush1.msra.mxu0 %v418
  %440 = vmatprep.subr.mxu0 %v421
  %441 = vmatpush1.msra.mxu0 %v420
  %442 = vmatprep.subr.mxu0 %v423
  %443 = vmatpush1.msra.mxu0 %v422
  %444 = vmatprep.subr.mxu0 %v425
  %445 = vmatpush1.msra.mxu0 %v424
  %446 = vmatprep.subr.mxu0 %v427
  %447 = vmatpush1.msra.mxu0 %v426
  %448 = vmatprep.subr.mxu0 0.0
  %449 = vmatpush1.msra.mxu0 0.0
  %450 = vmatprep.subr.mxu0 0.0
  %451 = vmatpush1.msra.mxu0 0.0
  %452 = vmatprep.subr.mxu0 0.0
  %453 = vmatpush1.msra.mxu0 0.0
  %454 = vmatprep.subr.mxu0 0.0
  %455 = vmatpush1.msra.mxu0 0.0
  %456 = vmatprep.subr.mxu0 0.0
  %457 = vmatpush1.msra.mxu0 0.0
  %458 = vmatprep.subr.mxu0 0.0
  %459 = vmatpush1.msra.mxu0 0.0
  %460 = vmatprep.subr.mxu0 0.0
  %461 = vmatpush1.msra.mxu0 0.0
  %462 = vmatprep.subr.mxu0 0.0
  %463 = vmatpush1.msra.mxu0 0.0
  %464 = vmatprep.subr.mxu0 0.0
  %465 = vmatpush1.msra.mxu0 0.0
  %466 = vmatprep.subr.mxu0 0.0
  %467 = vmatpush1.msra.mxu0 0.0
  %468 = vmatprep.subr.mxu0 0.0
  %469 = vmatpush1.msra.mxu0 0.0
  %470 = vmatprep.subr.mxu0 0.0
  %471 = vmatpush1.msra.mxu0 0.0
  %472 = vmatprep.subr.mxu0 0.0
  %473 = vmatpush1.msra.mxu0 0.0
  %474 = vmatprep.subr.mxu0 0.0
  %475 = vmatpush1.msra.mxu0 0.0
  %476 = vmatprep.subr.mxu0 0.0
  %477 = vmatpush1.msra.mxu0 0.0
  %478 = vmatprep.subr.mxu0 0.0
  %479 = vmatpush1.msra.mxu0 0.0
  %480 = vmatprep.subr.mxu0 0.0
  %481 = vmatpush1.msra.mxu0 0.0
  %482 = vmatprep.subr.mxu0 0.0
  %483 = vmatpush1.msra.mxu0 0.0
  %484 = vmatprep.subr.mxu0 0.0
  %485 = vmatpush1.msra.mxu0 0.0
  %486 = vmatprep.subr.mxu0 0.0
  %487 = vmatpush1.msra.mxu0 0.0
  %488 = vmatprep.subr.mxu0 0.0
  %489 = vmatpush1.msra.mxu0 0.0
  %490 = vmatprep.subr.mxu0 0.0
  %491 = vmatpush1.msra.mxu0 0.0
  %492 = vmatprep.subr.mxu0 0.0
  %493 = vmatpush1.msra.mxu0 0.0
  %494 = vmatprep.subr.mxu0 0.0
  %495 = vmatpush1.msra.mxu0 0.0
  %496 = vmatprep.mubr.f32.mxu0 0.0
  %497 = vmatmul.mubr.f32.gmra.mrb[0].mxu0 %v430
  %v498 = vpop.f32.mrb[0].mxu0
  %v499 = vadd.f32 0.0, %v498
  %v500 = vpop.f32.mrb[0].mxu0
  %v501 = vadd.f32 0.0, %v500
  %502 = vdwg.mxu0
  %v503 = vld [vmem:[#allocation2] sm:$0xff]
  %v504 = vadd.f32 %v503, %v499
  %v505 = vld [vmem:[#allocation2 + $0x78] sm:$0xff]
  %v506 = vadd.f32 %v505, %v501
  %v507 = vxor.u32 %v504, 2147483648
  %v508 = vmul.f32 %v507, 1.442695
  %v509 = vpow.pop %v508
  %v510 = vadd.f32 %v509, 1.0
  %v511 = vrcp.pop %v510
  %v512 = vmul.f32 1.0, %v511
  %v513 = vtanh.pop %v504
  %v514 = vmul.f32 %v512, 0.0
  %516 = vrot.lane.b32.xlu0 %v513, 64
  %v517 = vpop.permute.xlu0 %516
  %v519 = vmul.f32 %v512, %v517
  %521 = vrot.lane.b32.xlu0 %v519, 32
  %v522 = vpop.permute.xlu0 %521
  %v524 = vadd.f32 %v514, %v522
  %v525 = vtanh.pop %v524
  %527 = vrot.lane.b32.xlu0 %v525, 64
  %v528 = vpop.permute.xlu0 %527
  %v530 = vmul.f32 %v512, %v528
  %v531 = vxor.u32 %v506, 2147483648
  %v532 = vmul.f32 %v531, 1.442695
  %v533 = vpow.pop %v532
  %v534 = vadd.f32 %v533, 1.0
  %v535 = vrcp.pop %v534
  %v536 = vmul.f32 1.0, %v535
  %v537 = vtanh.pop %v506
  %v538 = vmul.f32 %v536, 0.0
  %540 = vrot.lane.b32.xlu0 %v537, 64
  %v541 = vpop.permute.xlu0 %540
  %v543 = vmul.f32 %v536, %v541
  %545 = vrot.lane.b32.xlu0 %v543, 32
  %v546 = vpop.permute.xlu0 %545
  %v548 = vadd.f32 %v538, %v546
  %v549 = vtanh.pop %v548
  %551 = vrot.lane.b32.xlu0 %v549, 64
  %v552 = vpop.permute.xlu0 %551
  %v554 = vmul.f32 %v536, %v552
  %556 = vrot.lane.b32.xlu0 %v530, 32
  %v557 = vpop.permute.xlu0 %556
  %559 = vst.msk [vmem:[#allocation3] sm:$0xff] %vm258, %v557
  %561 = vrot.lane.b32.xlu0 %v554, 64
  %v562 = vpop.permute.xlu0 %561
  %vm564 = vcmask 523520
  %565 = vst.msk [vmem:[#allocation3 + $0x38] sm:$0xff] %vm564, %v562
  %v566 = vsel %vm258, %v557, %v562
  %v568 = vsel %vm428, %v566, 0
  %570 = vmatprep.subr.mxu0 %v413
  %571 = vmatpush1.msra.mxu0 %v412
  %572 = vmatprep.subr.mxu0 %v415
  %573 = vmatpush1.msra.mxu0 %v414
  %574 = vmatprep.subr.mxu0 %v417
  %575 = vmatpush1.msra.mxu0 %v416
  %576 = vmatprep.subr.mxu0 %v419
  %577 = vmatpush1.msra.mxu0 %v418
  %578 = vmatprep.subr.mxu0 %v421
  %579 = vmatpush1.msra.mxu0 %v420
  %580 = vmatprep.subr.mxu0 %v423
  %581 = vmatpush1.msra.mxu0 %v422
  %582 = vmatprep.subr.mxu0 %v425
  %583 = vmatpush1.msra.mxu0 %v424
  %584 = vmatprep.subr.mxu0 %v427
  %585 = vmatpush1.msra.mxu0 %v426
  %586 = vmatprep.subr.mxu0 0.0
  %587 = vmatpush1.msra.mxu0 0.0
  %588 = vmatprep.subr.mxu0 0.0
  %589 = vmatpush1.msra.mxu0 0.0
  %590 = vmatprep.subr.mxu0 0.0
  %591 = vmatpush1.msra.mxu0 0.0
  %592 = vmatprep.subr.mxu0 0.0
  %593 = vmatpush1.msra.mxu0 0.0
  %594 = vmatprep.subr.mxu0 0.0
  %595 = vmatpush1.msra.mxu0 0.0
  %596 = vmatprep.subr.mxu0 0.0
  %597 = vmatpush1.msra.mxu0 0.0
  %598 = vmatprep.subr.mxu0 0.0
  %599 = vmatpush1.msra.mxu0 0.0
  %600 = vmatprep.subr.mxu0 0.0
  %601 = vmatpush1.msra.mxu0 0.0
  %602 = vmatprep.subr.mxu0 0.0
  %603 = vmatpush1.msra.mxu0 0.0
  %604 = vmatprep.subr.mxu0 0.0
  %605 = vmatpush1.msra.mxu0 0.0
  %606 = vmatprep.subr.mxu0 0.0
  %607 = vmatpush1.msra.mxu0 0.0
  %608 = vmatprep.subr.mxu0 0.0
  %609 = vmatpush1.msra.mxu0 0.0
  %610 = vmatprep.subr.mxu0 0.0
  %611 = vmatpush1.msra.mxu0 0.0
  %612 = vmatprep.subr.mxu0 0.0
  %613 = vmatpush1.msra.mxu0 0.0
  %614 = vmatprep.subr.mxu0 0.0
  %615 = vmatpush1.msra.mxu0 0.0
  %616 = vmatprep.subr.mxu0 0.0
  %617 = vmatpush1.msra.mxu0 0.0
  %618 = vmatprep.subr.mxu0 0.0
  %619 = vmatpush1.msra.mxu0 0.0
  %620 = vmatprep.subr.mxu0 0.0
  %621 = vmatpush1.msra.mxu0 0.0
  %622 = vmatprep.subr.mxu0 0.0
  %623 = vmatpush1.msra.mxu0 0.0
  %624 = vmatprep.subr.mxu0 0.0
  %625 = vmatpush1.msra.mxu0 0.0
  %626 = vmatprep.subr.mxu0 0.0
  %627 = vmatpush1.msra.mxu0 0.0
  %628 = vmatprep.subr.mxu0 0.0
  %629 = vmatpush1.msra.mxu0 0.0
  %630 = vmatprep.subr.mxu0 0.0
  %631 = vmatpush1.msra.mxu0 0.0
  %632 = vmatprep.subr.mxu0 0.0
  %633 = vmatpush1.msra.mxu0 0.0
  %634 = vmatprep.mubr.f32.mxu0 0.0
  %635 = vmatmul.mubr.f32.gmra.mrb[0].mxu0 %v568
  %v636 = vpop.f32.mrb[0].mxu0
  %v637 = vadd.f32 0.0, %v636
  %v638 = vpop.f32.mrb[0].mxu0
  %v639 = vadd.f32 0.0, %v638
  %640 = vdwg.mxu0
  %v641 = vld [vmem:[#allocation2 + $0x10] sm:$0xff]
  %v642 = vadd.f32 %v641, %v637
  %v643 = vld [vmem:[#allocation2 + $0x68] sm:$0xff]
  %v644 = vadd.f32 %v643, %v639
  %v645 = vxor.u32 %v642, 2147483648
  %v646 = vmul.f32 %v645, 1.442695
  %v647 = vpow.pop %v646
  %v648 = vadd.f32 %v647, 1.0
  %v649 = vrcp.pop %v648
  %v650 = vmul.f32 1.0, %v649
  %v651 = vtanh.pop %v642
  %v652 = vmul.f32 %v650, %v524
  %654 = vrot.lane.b32.xlu0 %v651, 64
  %v655 = vpop.permute.xlu0 %654
  %v657 = vmul.f32 %v650, %v655
  %659 = vrot.lane.b32.xlu0 %v657, 32
  %v660 = vpop.permute.xlu0 %659
  %v662 = vadd.f32 %v652, %v660
  %v663 = vtanh.pop %v662
  %665 = vrot.lane.b32.xlu0 %v663, 64
  %v666 = vpop.permute.xlu0 %665
  %v668 = vmul.f32 %v650, %v666
  %v669 = vxor.u32 %v644, 2147483648
  %v670 = vmul.f32 %v669, 1.442695
  %v671 = vpow.pop %v670
  %v672 = vadd.f32 %v671, 1.0
  %v673 = vrcp.pop %v672
  %v674 = vmul.f32 1.0, %v673
  %v675 = vtanh.pop %v644
  %v676 = vmul.f32 %v674, %v548
  %678 = vrot.lane.b32.xlu0 %v675, 64
  %v679 = vpop.permute.xlu0 %678
  %v681 = vmul.f32 %v674, %v679
  %683 = vrot.lane.b32.xlu0 %v681, 32
  %v684 = vpop.permute.xlu0 %683
  %v686 = vadd.f32 %v676, %v684
  %v687 = vtanh.pop %v686
  %689 = vrot.lane.b32.xlu0 %v687, 64
  %v690 = vpop.permute.xlu0 %689
  %v692 = vmul.f32 %v674, %v690
  %694 = vrot.lane.b32.xlu0 %v668, 32
  %v695 = vpop.permute.xlu0 %694
  %697 = vst.msk [vmem:[#allocation3 + $0x8] sm:$0xff] %vm258, %v695
  %699 = vrot.lane.b32.xlu0 %v692, 64
  %v700 = vpop.permute.xlu0 %699
  %702 = vst.msk [vmem:[#allocation3 + $0x30] sm:$0xff] %vm564, %v700
  %v703 = vsel %vm258, %v695, %v700
  %v705 = vsel %vm428, %v703, 0
  %707 = vmatprep.subr.mxu0 %v413
  %708 = vmatpush1.msra.mxu0 %v412
  %709 = vmatprep.subr.mxu0 %v415
  %710 = vmatpush1.msra.mxu0 %v414
  %711 = vmatprep.subr.mxu0 %v417
  %712 = vmatpush1.msra.mxu0 %v416
  %713 = vmatprep.subr.mxu0 %v419
  %714 = vmatpush1.msra.mxu0 %v418
  %715 = vmatprep.subr.mxu0 %v421
  %716 = vmatpush1.msra.mxu0 %v420
  %717 = vmatprep.subr.mxu0 %v423
  %718 = vmatpush1.msra.mxu0 %v422
  %719 = vmatprep.subr.mxu0 %v425
  %720 = vmatpush1.msra.mxu0 %v424
  %721 = vmatprep.subr.mxu0 %v427
  %722 = vmatpush1.msra.mxu0 %v426
  %723 = vmatprep.subr.mxu0 0.0
  %724 = vmatpush1.msra.mxu0 0.0
  %725 = vmatprep.subr.mxu0 0.0
  %726 = vmatpush1.msra.mxu0 0.0
  %727 = vmatprep.subr.mxu0 0.0
  %728 = vmatpush1.msra.mxu0 0.0
  %729 = vmatprep.subr.mxu0 0.0
  %730 = vmatpush1.msra.mxu0 0.0
  %731 = vmatprep.subr.mxu0 0.0
  %732 = vmatpush1.msra.mxu0 0.0
  %733 = vmatprep.subr.mxu0 0.0
  %734 = vmatpush1.msra.mxu0 0.0
  %735 = vmatprep.subr.mxu0 0.0
  %736 = vmatpush1.msra.mxu0 0.0
  %737 = vmatprep.subr.mxu0 0.0
  %738 = vmatpush1.msra.mxu0 0.0
  %739 = vmatprep.subr.mxu0 0.0
  %740 = vmatpush1.msra.mxu0 0.0
  %741 = vmatprep.subr.mxu0 0.0
  %742 = vmatpush1.msra.mxu0 0.0
  %743 = vmatprep.subr.mxu0 0.0
  %744 = vmatpush1.msra.mxu0 0.0
  %745 = vmatprep.subr.mxu0 0.0
  %746 = vmatpush1.msra.mxu0 0.0
  %747 = vmatprep.subr.mxu0 0.0
  %748 = vmatpush1.msra.mxu0 0.0
  %749 = vmatprep.subr.mxu0 0.0
  %750 = vmatpush1.msra.mxu0 0.0
  %751 = vmatprep.subr.mxu0 0.0
  %752 = vmatpush1.msra.mxu0 0.0
  %753 = vmatprep.subr.mxu0 0.0
  %754 = vmatpush1.msra.mxu0 0.0
  %755 = vmatprep.subr.mxu0 0.0
  %756 = vmatpush1.msra.mxu0 0.0
  %757 = vmatprep.subr.mxu0 0.0
  %758 = vmatpush1.msra.mxu0 0.0
  %759 = vmatprep.subr.mxu0 0.0
  %760 = vmatpush1.msra.mxu0 0.0
  %761 = vmatprep.subr.mxu0 0.0
  %762 = vmatpush1.msra.mxu0 0.0
  %763 = vmatprep.subr.mxu0 0.0
  %764 = vmatpush1.msra.mxu0 0.0
  %765 = vmatprep.subr.mxu0 0.0
  %766 = vmatpush1.msra.mxu0 0.0
  %767 = vmatprep.subr.mxu0 0.0
  %768 = vmatpush1.msra.mxu0 0.0
  %769 = vmatprep.subr.mxu0 0.0
  %770 = vmatpush1.msra.mxu0 0.0
  %771 = vmatprep.mubr.f32.mxu0 0.0
  %772 = vmatmul.mubr.f32.gmra.mrb[0].mxu0 %v705
  %v773 = vpop.f32.mrb[0].mxu0
  %v774 = vadd.f32 0.0, %v773
  %v775 = vpop.f32.mrb[0].mxu0
  %v776 = vadd.f32 0.0, %v775
  %777 = vdwg.mxu0
  %v778 = vld [vmem:[#allocation2 + $0x20] sm:$0xff]
  %v779 = vadd.f32 %v778, %v774
  %v780 = vld [vmem:[#allocation2 + $0x58] sm:$0xff]
  %v781 = vadd.f32 %v780, %v776
  %v782 = vxor.u32 %v779, 2147483648
  %v783 = vmul.f32 %v782, 1.442695
  %v784 = vpow.pop %v783
  %v785 = vadd.f32 %v784, 1.0
  %v786 = vrcp.pop %v785
  %v787 = vmul.f32 1.0, %v786
  %v788 = vtanh.pop %v779
  %v789 = vmul.f32 %v787, %v662
  %791 = vrot.lane.b32.xlu0 %v788, 64
  %v792 = vpop.permute.xlu0 %791
  %v794 = vmul.f32 %v787, %v792
  %796 = vrot.lane.b32.xlu0 %v794, 32
  %v797 = vpop.permute.xlu0 %796
  %v799 = vadd.f32 %v789, %v797
  %v800 = vtanh.pop %v799
  %802 = vrot.lane.b32.xlu0 %v800, 64
  %v803 = vpop.permute.xlu0 %802
  %v805 = vmul.f32 %v787, %v803
  %v806 = vxor.u32 %v781, 2147483648
  %v807 = vmul.f32 %v806, 1.442695
  %v808 = vpow.pop %v807
  %v809 = vadd.f32 %v808, 1.0
  %v810 = vrcp.pop %v809
  %v811 = vmul.f32 1.0, %v810
  %v812 = vtanh.pop %v781
  %v813 = vmul.f32 %v811, %v686
  %815 = vrot.lane.b32.xlu0 %v812, 64
  %v816 = vpop.permute.xlu0 %815
  %v818 = vmul.f32 %v811, %v816
  %820 = vrot.lane.b32.xlu0 %v818, 32
  %v821 = vpop.permute.xlu0 %820
  %v823 = vadd.f32 %v813, %v821
  %v824 = vtanh.pop %v823
  %826 = vrot.lane.b32.xlu0 %v824, 64
  %v827 = vpop.permute.xlu0 %826
  %v829 = vmul.f32 %v811, %v827
  %831 = vrot.lane.b32.xlu0 %v805, 32
  %v832 = vpop.permute.xlu0 %831
  %834 = vst.msk [vmem:[#allocation3 + $0x10] sm:$0xff] %vm258, %v832
  %836 = vrot.lane.b32.xlu0 %v829, 64
  %v837 = vpop.permute.xlu0 %836
  %839 = vst.msk [vmem:[#allocation3 + $0x28] sm:$0xff] %vm564, %v837
  %v840 = vsel %vm258, %v832, %v837
  %v842 = vsel %vm428, %v840, 0
  %844 = vmatprep.subr.mxu0 %v413
  %845 = vmatpush1.msra.mxu0 %v412
  %846 = vmatprep.subr.mxu0 %v415
  %847 = vmatpush1.msra.mxu0 %v414
  %848 = vmatprep.subr.mxu0 %v417
  %849 = vmatpush1.msra.mxu0 %v416
  %850 = vmatprep.subr.mxu0 %v419
  %851 = vmatpush1.msra.mxu0 %v418
  %852 = vmatprep.subr.mxu0 %v421
  %853 = vmatpush1.msra.mxu0 %v420
  %854 = vmatprep.subr.mxu0 %v423
  %855 = vmatpush1.msra.mxu0 %v422
  %856 = vmatprep.subr.mxu0 %v425
  %857 = vmatpush1.msra.mxu0 %v424
  %858 = vmatprep.subr.mxu0 %v427
  %859 = vmatpush1.msra.mxu0 %v426
  %860 = vmatprep.subr.mxu0 0.0
  %861 = vmatpush1.msra.mxu0 0.0
  %862 = vmatprep.subr.mxu0 0.0
  %863 = vmatpush1.msra.mxu0 0.0
  %864 = vmatprep.subr.mxu0 0.0
  %865 = vmatpush1.msra.mxu0 0.0
  %866 = vmatprep.subr.mxu0 0.0
  %867 = vmatpush1.msra.mxu0 0.0
  %868 = vmatprep.subr.mxu0 0.0
  %869 = vmatpush1.msra.mxu0 0.0
  %870 = vmatprep.subr.mxu0 0.0
  %871 = vmatpush1.msra.mxu0 0.0
  %872 = vmatprep.subr.mxu0 0.0
  %873 = vmatpush1.msra.mxu0 0.0
  %874 = vmatprep.subr.mxu0 0.0
  %875 = vmatpush1.msra.mxu0 0.0
  %876 = vmatprep.subr.mxu0 0.0
  %877 = vmatpush1.msra.mxu0 0.0
  %878 = vmatprep.subr.mxu0 0.0
  %879 = vmatpush1.msra.mxu0 0.0
  %880 = vmatprep.subr.mxu0 0.0
  %881 = vmatpush1.msra.mxu0 0.0
  %882 = vmatprep.subr.mxu0 0.0
  %883 = vmatpush1.msra.mxu0 0.0
  %884 = vmatprep.subr.mxu0 0.0
  %885 = vmatpush1.msra.mxu0 0.0
  %886 = vmatprep.subr.mxu0 0.0
  %887 = vmatpush1.msra.mxu0 0.0
  %888 = vmatprep.subr.mxu0 0.0
  %889 = vmatpush1.msra.mxu0 0.0
  %890 = vmatprep.subr.mxu0 0.0
  %891 = vmatpush1.msra.mxu0 0.0
  %892 = vmatprep.subr.mxu0 0.0
  %893 = vmatpush1.msra.mxu0 0.0
  %894 = vmatprep.subr.mxu0 0.0
  %895 = vmatpush1.msra.mxu0 0.0
  %896 = vmatprep.subr.mxu0 0.0
  %897 = vmatpush1.msra.mxu0 0.0
  %898 = vmatprep.subr.mxu0 0.0
  %899 = vmatpush1.msra.mxu0 0.0
  %900 = vmatprep.subr.mxu0 0.0
  %901 = vmatpush1.msra.mxu0 0.0
  %902 = vmatprep.subr.mxu0 0.0
  %903 = vmatpush1.msra.mxu0 0.0
  %904 = vmatprep.subr.mxu0 0.0
  %905 = vmatpush1.msra.mxu0 0.0
  %906 = vmatprep.subr.mxu0 0.0
  %907 = vmatpush1.msra.mxu0 0.0
  %908 = vmatprep.mubr.f32.mxu0 0.0
  %909 = vmatmul.mubr.f32.gmra.mrb[0].mxu0 %v842
  %v910 = vpop.f32.mrb[0].mxu0
  %v911 = vadd.f32 0.0, %v910
  %v912 = vpop.f32.mrb[0].mxu0
  %v913 = vadd.f32 0.0, %v912
  %914 = vdwg.mxu0
  %v915 = vld [vmem:[#allocation2 + $0x30] sm:$0xff]
  %v916 = vadd.f32 %v915, %v911
  %v917 = vld [vmem:[#allocation2 + $0x48] sm:$0xff]
  %v918 = vadd.f32 %v917, %v913
  %v919 = vxor.u32 %v916, 2147483648
  %v920 = vmul.f32 %v919, 1.442695
  %v921 = vpow.pop %v920
  %v922 = vadd.f32 %v921, 1.0
  %v923 = vrcp.pop %v922
  %v924 = vmul.f32 1.0, %v923
  %v925 = vtanh.pop %v916
  %v926 = vmul.f32 %v924, %v799
  %928 = vrot.lane.b32.xlu0 %v925, 64
  %v929 = vpop.permute.xlu0 %928
  %v931 = vmul.f32 %v924, %v929
  %933 = vrot.lane.b32.xlu0 %v931, 32
  %v934 = vpop.permute.xlu0 %933
  %v936 = vadd.f32 %v926, %v934
  %v937 = vtanh.pop %v936
  %939 = vrot.lane.b32.xlu0 %v937, 64
  %v940 = vpop.permute.xlu0 %939
  %v942 = vmul.f32 %v924, %v940
  %v943 = vxor.u32 %v918, 2147483648
  %v944 = vmul.f32 %v943, 1.442695
  %v945 = vpow.pop %v944
  %v946 = vadd.f32 %v945, 1.0
  %v947 = vrcp.pop %v946
  %v948 = vmul.f32 1.0, %v947
  %v949 = vtanh.pop %v918
  %v950 = vmul.f32 %v948, %v823
  %952 = vrot.lane.b32.xlu0 %v949, 64
  %v953 = vpop.permute.xlu0 %952
  %v955 = vmul.f32 %v948, %v953
  %957 = vrot.lane.b32.xlu0 %v955, 32
  %v958 = vpop.permute.xlu0 %957
  %v960 = vadd.f32 %v950, %v958
  %v961 = vtanh.pop %v960
  %963 = vrot.lane.b32.xlu0 %v961, 64
  %v964 = vpop.permute.xlu0 %963
  %v966 = vmul.f32 %v948, %v964
  %968 = vrot.lane.b32.xlu0 %v942, 32
  %v969 = vpop.permute.xlu0 %968
  %971 = vst.msk [vmem:[#allocation3 + $0x18] sm:$0xff] %vm258, %v969
  %973 = vrot.lane.b32.xlu0 %v966, 64
  %v974 = vpop.permute.xlu0 %973
  %976 = vst.msk [vmem:[#allocation3 + $0x20] sm:$0xff] %vm564, %v974
  %v977 = vsel %vm258, %v969, %v974
  %v979 = vsel %vm428, %v977, 0
  %981 = vmatprep.subr.mxu0 %v413
  %982 = vmatpush1.msra.mxu0 %v412
  %983 = vmatprep.subr.mxu0 %v415
  %984 = vmatpush1.msra.mxu0 %v414
  %985 = vmatprep.subr.mxu0 %v417
  %986 = vmatpush1.msra.mxu0 %v416
  %987 = vmatprep.subr.mxu0 %v419
  %988 = vmatpush1.msra.mxu0 %v418
  %989 = vmatprep.subr.mxu0 %v421
  %990 = vmatpush1.msra.mxu0 %v420
  %991 = vmatprep.subr.mxu0 %v423
  %992 = vmatpush1.msra.mxu0 %v422
  %993 = vmatprep.subr.mxu0 %v425
  %994 = vmatpush1.msra.mxu0 %v424
  %995 = vmatprep.subr.mxu0 %v427
  %996 = vmatpush1.msra.mxu0 %v426
  %997 = vmatprep.subr.mxu0 0.0
  %998 = vmatpush1.msra.mxu0 0.0
  %999 = vmatprep.subr.mxu0 0.0
  %1000 = vmatpush1.msra.mxu0 0.0
  %1001 = vmatprep.subr.mxu0 0.0
  %1002 = vmatpush1.msra.mxu0 0.0
  %1003 = vmatprep.subr.mxu0 0.0
  %1004 = vmatpush1.msra.mxu0 0.0
  %1005 = vmatprep.subr.mxu0 0.0
  %1006 = vmatpush1.msra.mxu0 0.0
  %1007 = vmatprep.subr.mxu0 0.0
  %1008 = vmatpush1.msra.mxu0 0.0
  %1009 = vmatprep.subr.mxu0 0.0
  %1010 = vmatpush1.msra.mxu0 0.0
  %1011 = vmatprep.subr.mxu0 0.0
  %1012 = vmatpush1.msra.mxu0 0.0
  %1013 = vmatprep.subr.mxu0 0.0
  %1014 = vmatpush1.msra.mxu0 0.0
  %1015 = vmatprep.subr.mxu0 0.0
  %1016 = vmatpush1.msra.mxu0 0.0
  %1017 = vmatprep.subr.mxu0 0.0
  %1018 = vmatpush1.msra.mxu0 0.0
  %1019 = vmatprep.subr.mxu0 0.0
  %1020 = vmatpush1.msra.mxu0 0.0
  %1021 = vmatprep.subr.mxu0 0.0
  %1022 = vmatpush1.msra.mxu0 0.0
  %1023 = vmatprep.subr.mxu0 0.0
  %1024 = vmatpush1.msra.mxu0 0.0
  %1025 = vmatprep.subr.mxu0 0.0
  %1026 = vmatpush1.msra.mxu0 0.0
  %1027 = vmatprep.subr.mxu0 0.0
  %1028 = vmatpush1.msra.mxu0 0.0
  %1029 = vmatprep.subr.mxu0 0.0
  %1030 = vmatpush1.msra.mxu0 0.0
  %1031 = vmatprep.subr.mxu0 0.0
  %1032 = vmatpush1.msra.mxu0 0.0
  %1033 = vmatprep.subr.mxu0 0.0
  %1034 = vmatpush1.msra.mxu0 0.0
  %1035 = vmatprep.subr.mxu0 0.0
  %1036 = vmatpush1.msra.mxu0 0.0
  %1037 = vmatprep.subr.mxu0 0.0
  %1038 = vmatpush1.msra.mxu0 0.0
  %1039 = vmatprep.subr.mxu0 0.0
  %1040 = vmatpush1.msra.mxu0 0.0
  %1041 = vmatprep.subr.mxu0 0.0
  %1042 = vmatpush1.msra.mxu0 0.0
  %1043 = vmatprep.subr.mxu0 0.0
  %1044 = vmatpush1.msra.mxu0 0.0
  %1045 = vmatprep.mubr.f32.mxu0 0.0
  %1046 = vmatmul.mubr.f32.gmra.mrb[0].mxu0 %v979
  %v1047 = vpop.f32.mrb[0].mxu0
  %v1048 = vadd.f32 0.0, %v1047
  %v1049 = vpop.f32.mrb[0].mxu0
  %v1050 = vadd.f32 0.0, %v1049
  %1051 = vdwg.mxu0
  %v1052 = vld [vmem:[#allocation2 + $0x40] sm:$0xff]
  %v1053 = vadd.f32 %v1052, %v1048
  %v1054 = vld [vmem:[#allocation2 + $0x38] sm:$0xff]
  %v1055 = vadd.f32 %v1054, %v1050
  %v1056 = vxor.u32 %v1053, 2147483648
  %v1057 = vmul.f32 %v1056, 1.442695
  %v1058 = vpow.pop %v1057
  %v1059 = vadd.f32 %v1058, 1.0
  %v1060 = vrcp.pop %v1059
  %v1061 = vmul.f32 1.0, %v1060
  %v1062 = vtanh.pop %v1053
  %v1063 = vmul.f32 %v1061, %v936
  %1065 = vrot.lane.b32.xlu0 %v1062, 64
  %v1066 = vpop.permute.xlu0 %1065
  %v1068 = vmul.f32 %v1061, %v1066
  %1070 = vrot.lane.b32.xlu0 %v1068, 32
  %v1071 = vpop.permute.xlu0 %1070
  %v1073 = vadd.f32 %v1063, %v1071
  %v1074 = vtanh.pop %v1073
  %1076 = vrot.lane.b32.xlu0 %v1074, 64
  %v1077 = vpop.permute.xlu0 %1076
  %v1079 = vmul.f32 %v1061, %v1077
  %v1080 = vxor.u32 %v1055, 2147483648
  %v1081 = vmul.f32 %v1080, 1.442695
  %v1082 = vpow.pop %v1081
  %v1083 = vadd.f32 %v1082, 1.0
  %v1084 = vrcp.pop %v1083
  %v1085 = vmul.f32 1.0, %v1084
  %v1086 = vtanh.pop %v1055
  %v1087 = vmul.f32 %v1085, %v960
  %1089 = vrot.lane.b32.xlu0 %v1086, 64
  %v1090 = vpop.permute.xlu0 %1089
  %v1092 = vmul.f32 %v1085, %v1090
  %1094 = vrot.lane.b32.xlu0 %v1092, 32
  %v1095 = vpop.permute.xlu0 %1094
  %v1097 = vadd.f32 %v1087, %v1095
  %v1098 = vtanh.pop %v1097
  %1100 = vrot.lane.b32.xlu0 %v1098, 64
  %v1101 = vpop.permute.xlu0 %1100
  %v1103 = vmul.f32 %v1085, %v1101
  %1105 = vrot.lane.b32.xlu0 %v1079, 32
  %v1106 = vpop.permute.xlu0 %1105
  %1108 = vst.msk [vmem:[#allocation3 + $0x20] sm:$0xff] %vm258, %v1106
  %1110 = vrot.lane.b32.xlu0 %v1103, 64
  %v1111 = vpop.permute.xlu0 %1110
  %1113 = vst.msk [vmem:[#allocation3 + $0x18] sm:$0xff] %vm564, %v1111
  %v1114 = vsel %vm258, %v1106, %v1111
  %v1116 = vsel %vm428, %v1114, 0
  %1118 = vmatprep.subr.mxu0 %v413
  %1119 = vmatpush1.msra.mxu0 %v412
  %1120 = vmatprep.subr.mxu0 %v415
  %1121 = vmatpush1.msra.mxu0 %v414
  %1122 = vmatprep.subr.mxu0 %v417
  %1123 = vmatpush1.msra.mxu0 %v416
  %1124 = vmatprep.subr.mxu0 %v419
  %1125 = vmatpush1.msra.mxu0 %v418
  %1126 = vmatprep.subr.mxu0 %v421
  %1127 = vmatpush1.msra.mxu0 %v420
  %1128 = vmatprep.subr.mxu0 %v423
  %1129 = vmatpush1.msra.mxu0 %v422
  %1130 = vmatprep.subr.mxu0 %v425
  %1131 = vmatpush1.msra.mxu0 %v424
  %1132 = vmatprep.subr.mxu0 %v427
  %1133 = vmatpush1.msra.mxu0 %v426
  %1134 = vmatprep.subr.mxu0 0.0
  %1135 = vmatpush1.msra.mxu0 0.0
  %1136 = vmatprep.subr.mxu0 0.0
  %1137 = vmatpush1.msra.mxu0 0.0
  %1138 = vmatprep.subr.mxu0 0.0
  %1139 = vmatpush1.msra.mxu0 0.0
  %1140 = vmatprep.subr.mxu0 0.0
  %1141 = vmatpush1.msra.mxu0 0.0
  %1142 = vmatprep.subr.mxu0 0.0
  %1143 = vmatpush1.msra.mxu0 0.0
  %1144 = vmatprep.subr.mxu0 0.0
  %1145 = vmatpush1.msra.mxu0 0.0
  %1146 = vmatprep.subr.mxu0 0.0
  %1147 = vmatpush1.msra.mxu0 0.0
  %1148 = vmatprep.subr.mxu0 0.0
  %1149 = vmatpush1.msra.mxu0 0.0
  %1150 = vmatprep.subr.mxu0 0.0
  %1151 = vmatpush1.msra.mxu0 0.0
  %1152 = vmatprep.subr.mxu0 0.0
  %1153 = vmatpush1.msra.mxu0 0.0
  %1154 = vmatprep.subr.mxu0 0.0
  %1155 = vmatpush1.msra.mxu0 0.0
  %1156 = vmatprep.subr.mxu0 0.0
  %1157 = vmatpush1.msra.mxu0 0.0
  %1158 = vmatprep.subr.mxu0 0.0
  %1159 = vmatpush1.msra.mxu0 0.0
  %1160 = vmatprep.subr.mxu0 0.0
  %1161 = vmatpush1.msra.mxu0 0.0
  %1162 = vmatprep.subr.mxu0 0.0
  %1163 = vmatpush1.msra.mxu0 0.0
  %1164 = vmatprep.subr.mxu0 0.0
  %1165 = vmatpush1.msra.mxu0 0.0
  %1166 = vmatprep.subr.mxu0 0.0
  %1167 = vmatpush1.msra.mxu0 0.0
  %1168 = vmatprep.subr.mxu0 0.0
  %1169 = vmatpush1.msra.mxu0 0.0
  %1170 = vmatprep.subr.mxu0 0.0
  %1171 = vmatpush1.msra.mxu0 0.0
  %1172 = vmatprep.subr.mxu0 0.0
  %1173 = vmatpush1.msra.mxu0 0.0
  %1174 = vmatprep.subr.mxu0 0.0
  %1175 = vmatpush1.msra.mxu0 0.0
  %1176 = vmatprep.subr.mxu0 0.0
  %1177 = vmatpush1.msra.mxu0 0.0
  %1178 = vmatprep.subr.mxu0 0.0
  %1179 = vmatpush1.msra.mxu0 0.0
  %1180 = vmatprep.subr.mxu0 0.0
  %1181 = vmatpush1.msra.mxu0 0.0
  %1182 = vmatprep.mubr.f32.mxu0 0.0
  %1183 = vmatmul.mubr.f32.gmra.mrb[0].mxu0 %v1116
  %v1184 = vpop.f32.mrb[0].mxu0
  %v1185 = vadd.f32 0.0, %v1184
  %v1186 = vpop.f32.mrb[0].mxu0
  %v1187 = vadd.f32 0.0, %v1186
  %1188 = vdwg.mxu0
  %v1189 = vld [vmem:[#allocation2 + $0x50] sm:$0xff]
  %v1190 = vadd.f32 %v1189, %v1185
  %v1191 = vld [vmem:[#allocation2 + $0x28] sm:$0xff]
  %v1192 = vadd.f32 %v1191, %v1187
  %v1193 = vxor.u32 %v1190, 2147483648
  %v1194 = vmul.f32 %v1193, 1.442695
  %v1195 = vpow.pop %v1194
  %v1196 = vadd.f32 %v1195, 1.0
  %v1197 = vrcp.pop %v1196
  %v1198 = vmul.f32 1.0, %v1197
  %v1199 = vtanh.pop %v1190
  %v1200 = vmul.f32 %v1198, %v1073
  %1202 = vrot.lane.b32.xlu0 %v1199, 64
  %v1203 = vpop.permute.xlu0 %1202
  %v1205 = vmul.f32 %v1198, %v1203
  %1207 = vrot.lane.b32.xlu0 %v1205, 32
  %v1208 = vpop.permute.xlu0 %1207
  %v1210 = vadd.f32 %v1200, %v1208
  %v1211 = vtanh.pop %v1210
  %1213 = vrot.lane.b32.xlu0 %v1211, 64
  %v1214 = vpop.permute.xlu0 %1213
  %v1216 = vmul.f32 %v1198, %v1214
  %v1217 = vxor.u32 %v1192, 2147483648
  %v1218 = vmul.f32 %v1217, 1.442695
  %v1219 = vpow.pop %v1218
  %v1220 = vadd.f32 %v1219, 1.0
  %v1221 = vrcp.pop %v1220
  %v1222 = vmul.f32 1.0, %v1221
  %v1223 = vtanh.pop %v1192
  %v1224 = vmul.f32 %v1222, %v1097
  %1226 = vrot.lane.b32.xlu0 %v1223, 64
  %v1227 = vpop.permute.xlu0 %1226
  %v1229 = vmul.f32 %v1222, %v1227
  %1231 = vrot.lane.b32.xlu0 %v1229, 32
  %v1232 = vpop.permute.xlu0 %1231
  %v1234 = vadd.f32 %v1224, %v1232
  %v1235 = vtanh.pop %v1234
  %1237 = vrot.lane.b32.xlu0 %v1235, 64
  %v1238 = vpop.permute.xlu0 %1237
  %v1240 = vmul.f32 %v1222, %v1238
  %1242 = vrot.lane.b32.xlu0 %v1216, 32
  %v1243 = vpop.permute.xlu0 %1242
  %1245 = vst.msk [vmem:[#allocation3 + $0x28] sm:$0xff] %vm258, %v1243
  %1247 = vrot.lane.b32.xlu0 %v1240, 64
  %v1248 = vpop.permute.xlu0 %1247
  %1250 = vst.msk [vmem:[#allocation3 + $0x10] sm:$0xff] %vm564, %v1248
  %v1251 = vsel %vm258, %v1243, %v1248
  %v1253 = vsel %vm428, %v1251, 0
  %1255 = vmatprep.subr.mxu0 %v413
  %1256 = vmatpush1.msra.mxu0 %v412
  %1257 = vmatprep.subr.mxu0 %v415
  %1258 = vmatpush1.msra.mxu0 %v414
  %1259 = vmatprep.subr.mxu0 %v417
  %1260 = vmatpush1.msra.mxu0 %v416
  %1261 = vmatprep.subr.mxu0 %v419
  %1262 = vmatpush1.msra.mxu0 %v418
  %1263 = vmatprep.subr.mxu0 %v421
  %1264 = vmatpush1.msra.mxu0 %v420
  %1265 = vmatprep.subr.mxu0 %v423
  %1266 = vmatpush1.msra.mxu0 %v422
  %1267 = vmatprep.subr.mxu0 %v425
  %1268 = vmatpush1.msra.mxu0 %v424
  %1269 = vmatprep.subr.mxu0 %v427
  %1270 = vmatpush1.msra.mxu0 %v426
  %1271 = vmatprep.subr.mxu0 0.0
  %1272 = vmatpush1.msra.mxu0 0.0
  %1273 = vmatprep.subr.mxu0 0.0
  %1274 = vmatpush1.msra.mxu0 0.0
  %1275 = vmatprep.subr.mxu0 0.0
  %1276 = vmatpush1.msra.mxu0 0.0
  %1277 = vmatprep.subr.mxu0 0.0
  %1278 = vmatpush1.msra.mxu0 0.0
  %1279 = vmatprep.subr.mxu0 0.0
  %1280 = vmatpush1.msra.mxu0 0.0
  %1281 = vmatprep.subr.mxu0 0.0
  %1282 = vmatpush1.msra.mxu0 0.0
  %1283 = vmatprep.subr.mxu0 0.0
  %1284 = vmatpush1.msra.mxu0 0.0
  %1285 = vmatprep.subr.mxu0 0.0
  %1286 = vmatpush1.msra.mxu0 0.0
  %1287 = vmatprep.subr.mxu0 0.0
  %1288 = vmatpush1.msra.mxu0 0.0
  %1289 = vmatprep.subr.mxu0 0.0
  %1290 = vmatpush1.msra.mxu0 0.0
  %1291 = vmatprep.subr.mxu0 0.0
  %1292 = vmatpush1.msra.mxu0 0.0
  %1293 = vmatprep.subr.mxu0 0.0
  %1294 = vmatpush1.msra.mxu0 0.0
  %1295 = vmatprep.subr.mxu0 0.0
  %1296 = vmatpush1.msra.mxu0 0.0
  %1297 = vmatprep.subr.mxu0 0.0
  %1298 = vmatpush1.msra.mxu0 0.0
  %1299 = vmatprep.subr.mxu0 0.0
  %1300 = vmatpush1.msra.mxu0 0.0
  %1301 = vmatprep.subr.mxu0 0.0
  %1302 = vmatpush1.msra.mxu0 0.0
  %1303 = vmatprep.subr.mxu0 0.0
  %1304 = vmatpush1.msra.mxu0 0.0
  %1305 = vmatprep.subr.mxu0 0.0
  %1306 = vmatpush1.msra.mxu0 0.0
  %1307 = vmatprep.subr.mxu0 0.0
  %1308 = vmatpush1.msra.mxu0 0.0
  %1309 = vmatprep.subr.mxu0 0.0
  %1310 = vmatpush1.msra.mxu0 0.0
  %1311 = vmatprep.subr.mxu0 0.0
  %1312 = vmatpush1.msra.mxu0 0.0
  %1313 = vmatprep.subr.mxu0 0.0
  %1314 = vmatpush1.msra.mxu0 0.0
  %1315 = vmatprep.subr.mxu0 0.0
  %1316 = vmatpush1.msra.mxu0 0.0
  %1317 = vmatprep.subr.mxu0 0.0
  %1318 = vmatpush1.msra.mxu0 0.0
  %1319 = vmatprep.mubr.f32.mxu0 0.0
  %1320 = vmatmul.mubr.f32.gmra.mrb[0].mxu0 %v1253
  %v1321 = vpop.f32.mrb[0].mxu0
  %v1322 = vadd.f32 0.0, %v1321
  %v1323 = vpop.f32.mrb[0].mxu0
  %v1324 = vadd.f32 0.0, %v1323
  %1325 = vdwg.mxu0
  %v1326 = vld [vmem:[#allocation2 + $0x60] sm:$0xff]
  %v1327 = vadd.f32 %v1326, %v1322
  %v1328 = vld [vmem:[#allocation2 + $0x18] sm:$0xff]
  %v1329 = vadd.f32 %v1328, %v1324
  %v1330 = vxor.u32 %v1327, 2147483648
  %v1331 = vmul.f32 %v1330, 1.442695
  %v1332 = vpow.pop %v1331
  %v1333 = vadd.f32 %v1332, 1.0
  %v1334 = vrcp.pop %v1333
  %v1335 = vmul.f32 1.0, %v1334
  %v1336 = vtanh.pop %v1327
  %v1337 = vmul.f32 %v1335, %v1210
  %1339 = vrot.lane.b32.xlu0 %v1336, 64
  %v1340 = vpop.permute.xlu0 %1339
  %v1342 = vmul.f32 %v1335, %v1340
  %1344 = vrot.lane.b32.xlu0 %v1342, 32
  %v1345 = vpop.permute.xlu0 %1344
  %v1347 = vadd.f32 %v1337, %v1345
  %v1348 = vtanh.pop %v1347
  %1350 = vrot.lane.b32.xlu0 %v1348, 64
  %v1351 = vpop.permute.xlu0 %1350
  %v1353 = vmul.f32 %v1335, %v1351
  %v1354 = vxor.u32 %v1329, 2147483648
  %v1355 = vmul.f32 %v1354, 1.442695
  %v1356 = vpow.pop %v1355
  %v1357 = vadd.f32 %v1356, 1.0
  %v1358 = vrcp.pop %v1357
  %v1359 = vmul.f32 1.0, %v1358
  %v1360 = vtanh.pop %v1329
  %v1361 = vmul.f32 %v1359, %v1234
  %1363 = vrot.lane.b32.xlu0 %v1360, 64
  %v1364 = vpop.permute.xlu0 %1363
  %v1366 = vmul.f32 %v1359, %v1364
  %1368 = vrot.lane.b32.xlu0 %v1366, 32
  %v1369 = vpop.permute.xlu0 %1368
  %v1371 = vadd.f32 %v1361, %v1369
  %v1372 = vtanh.pop %v1371
  %1374 = vrot.lane.b32.xlu0 %v1372, 64
  %v1375 = vpop.permute.xlu0 %1374
  %v1377 = vmul.f32 %v1359, %v1375
  %1379 = vrot.lane.b32.xlu0 %v1353, 32
  %v1380 = vpop.permute.xlu0 %1379
  %1382 = vst.msk [vmem:[#allocation3 + $0x30] sm:$0xff] %vm258, %v1380
  %1384 = vrot.lane.b32.xlu0 %v1377, 64
  %v1385 = vpop.permute.xlu0 %1384
  %1387 = vst.msk [vmem:[#allocation3 + $0x8] sm:$0xff] %vm564, %v1385
  %v1388 = vsel %vm258, %v1380, %v1385
  %v1390 = vsel %vm428, %v1388, 0
  %1392 = vmatprep.subr.mxu0 %v413
  %1393 = vmatpush1.msra.mxu0 %v412
  %1394 = vmatprep.subr.mxu0 %v415
  %1395 = vmatpush1.msra.mxu0 %v414
  %1396 = vmatprep.subr.mxu0 %v417
  %1397 = vmatpush1.msra.mxu0 %v416
  %1398 = vmatprep.subr.mxu0 %v419
  %1399 = vmatpush1.msra.mxu0 %v418
  %1400 = vmatprep.subr.mxu0 %v421
  %1401 = vmatpush1.msra.mxu0 %v420
  %1402 = vmatprep.subr.mxu0 %v423
  %1403 = vmatpush1.msra.mxu0 %v422
  %1404 = vmatprep.subr.mxu0 %v425
  %1405 = vmatpush1.msra.mxu0 %v424
  %1406 = vmatprep.subr.mxu0 %v427
  %1407 = vmatpush1.msra.mxu0 %v426
  %1408 = vmatprep.subr.mxu0 0.0
  %1409 = vmatpush1.msra.mxu0 0.0
  %1410 = vmatprep.subr.mxu0 0.0
  %1411 = vmatpush1.msra.mxu0 0.0
  %1412 = vmatprep.subr.mxu0 0.0
  %1413 = vmatpush1.msra.mxu0 0.0
  %1414 = vmatprep.subr.mxu0 0.0
  %1415 = vmatpush1.msra.mxu0 0.0
  %1416 = vmatprep.subr.mxu0 0.0
  %1417 = vmatpush1.msra.mxu0 0.0
  %1418 = vmatprep.subr.mxu0 0.0
  %1419 = vmatpush1.msra.mxu0 0.0
  %1420 = vmatprep.subr.mxu0 0.0
  %1421 = vmatpush1.msra.mxu0 0.0
  %1422 = vmatprep.subr.mxu0 0.0
  %1423 = vmatpush1.msra.mxu0 0.0
  %1424 = vmatprep.subr.mxu0 0.0
  %1425 = vmatpush1.msra.mxu0 0.0
  %1426 = vmatprep.subr.mxu0 0.0
  %1427 = vmatpush1.msra.mxu0 0.0
  %1428 = vmatprep.subr.mxu0 0.0
  %1429 = vmatpush1.msra.mxu0 0.0
  %1430 = vmatprep.subr.mxu0 0.0
  %1431 = vmatpush1.msra.mxu0 0.0
  %1432 = vmatprep.subr.mxu0 0.0
  %1433 = vmatpush1.msra.mxu0 0.0
  %1434 = vmatprep.subr.mxu0 0.0
  %1435 = vmatpush1.msra.mxu0 0.0
  %1436 = vmatprep.subr.mxu0 0.0
  %1437 = vmatpush1.msra.mxu0 0.0
  %1438 = vmatprep.subr.mxu0 0.0
  %1439 = vmatpush1.msra.mxu0 0.0
  %1440 = vmatprep.subr.mxu0 0.0
  %1441 = vmatpush1.msra.mxu0 0.0
  %1442 = vmatprep.subr.mxu0 0.0
  %1443 = vmatpush1.msra.mxu0 0.0
  %1444 = vmatprep.subr.mxu0 0.0
  %1445 = vmatpush1.msra.mxu0 0.0
  %1446 = vmatprep.subr.mxu0 0.0
  %1447 = vmatpush1.msra.mxu0 0.0
  %1448 = vmatprep.subr.mxu0 0.0
  %1449 = vmatpush1.msra.mxu0 0.0
  %1450 = vmatprep.subr.mxu0 0.0
  %1451 = vmatpush1.msra.mxu0 0.0
  %1452 = vmatprep.subr.mxu0 0.0
  %1453 = vmatpush1.msra.mxu0 0.0
  %1454 = vmatprep.subr.mxu0 0.0
  %1455 = vmatpush1.msra.mxu0 0.0
  %1456 = vmatprep.mubr.f32.mxu0 0.0
  %1457 = vmatmul.mubr.f32.gmra.mrb[0].mxu0 %v1390
  %v1458 = vpop.f32.mrb[0].mxu0
  %v1459 = vadd.f32 0.0, %v1458
  %v1460 = vpop.f32.mrb[0].mxu0
  %v1461 = vadd.f32 0.0, %v1460
  %1462 = vdwg.mxu0
  %v1463 = vld [vmem:[#allocation2 + $0x70] sm:$0xff]
  %v1464 = vadd.f32 %v1463, %v1459
  %v1465 = vld [vmem:[#allocation2 + $0x8] sm:$0xff]
  %v1466 = vadd.f32 %v1465, %v1461
  %v1467 = vxor.u32 %v1464, 2147483648
  %v1468 = vmul.f32 %v1467, 1.442695
  %v1469 = vpow.pop %v1468
  %v1470 = vadd.f32 %v1469, 1.0
  %v1471 = vrcp.pop %v1470
  %v1472 = vmul.f32 1.0, %v1471
  %v1473 = vtanh.pop %v1464
  %v1474 = vmul.f32 %v1472, %v1347
  %1476 = vrot.lane.b32.xlu0 %v1473, 64
  %v1477 = vpop.permute.xlu0 %1476
  %v1479 = vmul.f32 %v1472, %v1477
  %1481 = vrot.lane.b32.xlu0 %v1479, 32
  %v1482 = vpop.permute.xlu0 %1481
  %v1484 = vadd.f32 %v1474, %v1482
  %v1485 = vtanh.pop %v1484
  %1487 = vrot.lane.b32.xlu0 %v1485, 64
  %v1488 = vpop.permute.xlu0 %1487
  %v1490 = vmul.f32 %v1472, %v1488
  %v1491 = vxor.u32 %v1466, 2147483648
  %v1492 = vmul.f32 %v1491, 1.442695
  %v1493 = vpow.pop %v1492
  %v1494 = vadd.f32 %v1493, 1.0
  %v1495 = vrcp.pop %v1494
  %v1496 = vmul.f32 1.0, %v1495
  %v1497 = vtanh.pop %v1466
  %v1498 = vmul.f32 %v1496, %v1371
  %1500 = vrot.lane.b32.xlu0 %v1497, 64
  %v1501 = vpop.permute.xlu0 %1500
  %v1503 = vmul.f32 %v1496, %v1501
  %1505 = vrot.lane.b32.xlu0 %v1503, 32
  %v1506 = vpop.permute.xlu0 %1505
  %v1508 = vadd.f32 %v1498, %v1506
  %v1509 = vtanh.pop %v1508
  %1511 = vrot.lane.b32.xlu0 %v1509, 64
  %v1512 = vpop.permute.xlu0 %1511
  %v1514 = vmul.f32 %v1496, %v1512
  %1516 = vrot.lane.b32.xlu0 %v1490, 32
  %v1517 = vpop.permute.xlu0 %1516
  %1519 = vst.msk [vmem:[#allocation3 + $0x38] sm:$0xff] %vm258, %v1517
  %1521 = vrot.lane.b32.xlu0 %v1514, 64
  %v1522 = vpop.permute.xlu0 %1521
  %1524 = vst.msk [vmem:[#allocation3] sm:$0xff] %vm564, %v1522
  %v1525 = vld [vmem:[#allocation3] sm:$0xff]
  %v1526 = vld [vmem:[#allocation3 + $0x8] sm:$0xff]
  %v1527 = vld [vmem:[#allocation3 + $0x10] sm:$0xff]
  %v1528 = vld [vmem:[#allocation3 + $0x18] sm:$0xff]
  %v1529 = vld [vmem:[#allocation3 + $0x20] sm:$0xff]
  %v1530 = vld [vmem:[#allocation3 + $0x28] sm:$0xff]
  %v1531 = vld [vmem:[#allocation3 + $0x30] sm:$0xff]
  %v1532 = vld [vmem:[#allocation3 + $0x38] sm:$0xff]
  %v1533 = vld [vmem:[%s5] sm:$0xff]
  %v1534 = vld [vmem:[%s5 + $0x8] sm:$0xff]
  %v1535 = vld [vmem:[%s5 + $0x10] sm:$0xff]
  %v1536 = vld [vmem:[%s5 + $0x18] sm:$0xff]
  %v1537 = vld [vmem:[%s5 + $0x20] sm:$0xff]
  %v1538 = vld [vmem:[%s5 + $0x28] sm:$0xff]
  %v1539 = vld [vmem:[%s5 + $0x30] sm:$0xff]
  %v1540 = vld [vmem:[%s5 + $0x38] sm:$0xff]
  %v1541 = vld [vmem:[%s5 + $0x40] sm:$0xff]
  %v1542 = vld [vmem:[%s5 + $0x48] sm:$0xff]
  %v1543 = vld [vmem:[%s5 + $0x50] sm:$0xff]
  %v1544 = vld [vmem:[%s5 + $0x58] sm:$0xff]
  %v1545 = vld [vmem:[%s5 + $0x60] sm:$0xff]
  %v1546 = vld [vmem:[%s5 + $0x68] sm:$0xff]
  %v1547 = vld [vmem:[%s5 + $0x70] sm:$0xff]
  %v1548 = vld [vmem:[%s5 + $0x78] sm:$0xff]
  %v1549 = vld [vmem:[%s7] sm:$0x3]
  %v1551 = vlaneseq
  %v1552 = vshrl.u32 %v1551, 7
  %v1553 = vsub.s32 0, %v1552
  %v1554 = vrot.slane %v1549, %v1553
  %v1555 = vlaneseq
  %v1556 = vshrl.u32 %v1555, 7
  %v1557 = vsub.s32 1, %v1556
  %v1558 = vrot.slane %v1549, %v1557
  %v1562 = vsel %vm428, %v1525, 0
  %v1565 = vsel %vm428, %v1526, 0
  %v1568 = vsel %vm428, %v1527, 0
  %v1571 = vsel %vm428, %v1528, 0
  %v1574 = vsel %vm428, %v1529, 0
  %v1577 = vsel %vm428, %v1530, 0
  %v1580 = vsel %vm428, %v1531, 0
  %v1583 = vsel %vm428, %v1532, 0
  %1585 = vmatprep.subr.mxu0 %v1534
  %1586 = vmatpush1.msra.mxu0 %v1533
  %1587 = vmatprep.subr.mxu0 %v1536
  %1588 = vmatpush1.msra.mxu0 %v1535
  %1589 = vmatprep.subr.mxu0 %v1538
  %1590 = vmatpush1.msra.mxu0 %v1537
  %1591 = vmatprep.subr.mxu0 %v1540
  %1592 = vmatpush1.msra.mxu0 %v1539
  %1593 = vmatprep.subr.mxu0 %v1542
  %1594 = vmatpush1.msra.mxu0 %v1541
  %1595 = vmatprep.subr.mxu0 %v1544
  %1596 = vmatpush1.msra.mxu0 %v1543
  %1597 = vmatprep.subr.mxu0 %v1546
  %1598 = vmatpush1.msra.mxu0 %v1545
  %1599 = vmatprep.subr.mxu0 %v1548
  %1600 = vmatpush1.msra.mxu0 %v1547
  %1601 = vmatprep.subr.mxu0 0.0
  %1602 = vmatpush1.msra.mxu0 0.0
  %1603 = vmatprep.subr.mxu0 0.0
  %1604 = vmatpush1.msra.mxu0 0.0
  %1605 = vmatprep.subr.mxu0 0.0
  %1606 = vmatpush1.msra.mxu0 0.0
  %1607 = vmatprep.subr.mxu0 0.0
  %1608 = vmatpush1.msra.mxu0 0.0
  %1609 = vmatprep.subr.mxu0 0.0
  %1610 = vmatpush1.msra.mxu0 0.0
  %1611 = vmatprep.subr.mxu0 0.0
  %1612 = vmatpush1.msra.mxu0 0.0
  %1613 = vmatprep.subr.mxu0 0.0
  %1614 = vmatpush1.msra.mxu0 0.0
  %1615 = vmatprep.subr.mxu0 0.0
  %1616 = vmatpush1.msra.mxu0 0.0
  %1617 = vmatprep.subr.mxu0 0.0
  %1618 = vmatpush1.msra.mxu0 0.0
  %1619 = vmatprep.subr.mxu0 0.0
  %1620 = vmatpush1.msra.mxu0 0.0
  %1621 = vmatprep.subr.mxu0 0.0
  %1622 = vmatpush1.msra.mxu0 0.0
  %1623 = vmatprep.subr.mxu0 0.0
  %1624 = vmatpush1.msra.mxu0 0.0
  %1625 = vmatprep.subr.mxu0 0.0
  %1626 = vmatpush1.msra.mxu0 0.0
  %1627 = vmatprep.subr.mxu0 0.0
  %1628 = vmatpush1.msra.mxu0 0.0
  %1629 = vmatprep.subr.mxu0 0.0
  %1630 = vmatpush1.msra.mxu0 0.0
  %1631 = vmatprep.subr.mxu0 0.0
  %1632 = vmatpush1.msra.mxu0 0.0
  %1633 = vmatprep.subr.mxu0 0.0
  %1634 = vmatpush1.msra.mxu0 0.0
  %1635 = vmatprep.subr.mxu0 0.0
  %1636 = vmatpush1.msra.mxu0 0.0
  %1637 = vmatprep.subr.mxu0 0.0
  %1638 = vmatpush1.msra.mxu0 0.0
  %1639 = vmatprep.subr.mxu0 0.0
  %1640 = vmatpush1.msra.mxu0 0.0
  %1641 = vmatprep.subr.mxu0 0.0
  %1642 = vmatpush1.msra.mxu0 0.0
  %1643 = vmatprep.subr.mxu0 0.0
  %1644 = vmatpush1.msra.mxu0 0.0
  %1645 = vmatprep.subr.mxu0 0.0
  %1646 = vmatpush1.msra.mxu0 0.0
  %1647 = vmatprep.subr.mxu0 0.0
  %1648 = vmatpush1.msra.mxu0 0.0
  %1649 = vmatprep.mubr.f32.mxu0 0.0
  %1650 = vmatmul.mubr.f32.gmra.mrb[0].mxu0 %v1562
  %v1651 = vpop.f32.mrb[0].mxu0
  %v1652 = vadd.f32 %v1554, %v1651
  %v1653 = vpop.f32.mrb[0].mxu0
  %v1654 = vadd.f32 %v1558, %v1653
  %1655 = vmatprep.mubr.f32.mxu0 0.0
  %1656 = vmatmul.mubr.f32.gmra.mrb[0].mxu0 %v1565
  %v1657 = vpop.f32.mrb[0].mxu0
  %v1658 = vadd.f32 %v1554, %v1657
  %v1659 = vpop.f32.mrb[0].mxu0
  %v1660 = vadd.f32 %v1558, %v1659
  %1661 = vmatprep.mubr.f32.mxu0 0.0
  %1662 = vmatmul.mubr.f32.gmra.mrb[0].mxu0 %v1568
  %v1663 = vpop.f32.mrb[0].mxu0
  %v1664 = vadd.f32 %v1554, %v1663
  %v1665 = vpop.f32.mrb[0].mxu0
  %v1666 = vadd.f32 %v1558, %v1665
  %1667 = vmatprep.mubr.f32.mxu0 0.0
  %1668 = vmatmul.mubr.f32.gmra.mrb[0].mxu0 %v1571
  %v1669 = vpop.f32.mrb[0].mxu0
  %v1670 = vadd.f32 %v1554, %v1669
  %v1671 = vpop.f32.mrb[0].mxu0
  %v1672 = vadd.f32 %v1558, %v1671
  %1673 = vmatprep.mubr.f32.mxu0 0.0
  %1674 = vmatmul.mubr.f32.gmra.mrb[0].mxu0 %v1574
  %v1675 = vpop.f32.mrb[0].mxu0
  %v1676 = vadd.f32 %v1554, %v1675
  %v1677 = vpop.f32.mrb[0].mxu0
  %v1678 = vadd.f32 %v1558, %v1677
  %1679 = vmatprep.mubr.f32.mxu0 0.0
  %1680 = vmatmul.mubr.f32.gmra.mrb[0].mxu0 %v1577
  %v1681 = vpop.f32.mrb[0].mxu0
  %v1682 = vadd.f32 %v1554, %v1681
  %v1683 = vpop.f32.mrb[0].mxu0
  %v1684 = vadd.f32 %v1558, %v1683
  %1685 = vmatprep.mubr.f32.mxu0 0.0
  %1686 = vmatmul.mubr.f32.gmra.mrb[0].mxu0 %v1580
  %v1687 = vpop.f32.mrb[0].mxu0
  %v1688 = vadd.f32 %v1554, %v1687
  %v1689 = vpop.f32.mrb[0].mxu0
  %v1690 = vadd.f32 %v1558, %v1689
  %1691 = vmatprep.mubr.f32.mxu0 0.0
  %1692 = vmatmul.mubr.f32.gmra.mrb[0].mxu0 %v1583
  %v1693 = vpop.f32.mrb[0].mxu0
  %v1694 = vadd.f32 %v1554, %v1693
  %v1695 = vpop.f32.mrb[0].mxu0
  %v1696 = vadd.f32 %v1558, %v1695
  %1697 = vdwg.mxu0
  %1698 = vst [vmem:[#allocation2] sm:$0xff] %v1652
  %1699 = vst [vmem:[#allocation2 + $0x8] sm:$0xff] %v1654
  %1700 = vst [vmem:[#allocation2 + $0x10] sm:$0xff] %v1658
  %1701 = vst [vmem:[#allocation2 + $0x18] sm:$0xff] %v1660
  %1702 = vst [vmem:[#allocation2 + $0x20] sm:$0xff] %v1664
  %1703 = vst [vmem:[#allocation2 + $0x28] sm:$0xff] %v1666
  %1704 = vst [vmem:[#allocation2 + $0x30] sm:$0xff] %v1670
  %1705 = vst [vmem:[#allocation2 + $0x38] sm:$0xff] %v1672
  %1706 = vst [vmem:[#allocation2 + $0x40] sm:$0xff] %v1676
  %1707 = vst [vmem:[#allocation2 + $0x48] sm:$0xff] %v1678
  %1708 = vst [vmem:[#allocation2 + $0x50] sm:$0xff] %v1682
  %1709 = vst [vmem:[#allocation2 + $0x58] sm:$0xff] %v1684
  %1710 = vst [vmem:[#allocation2 + $0x60] sm:$0xff] %v1688
  %1711 = vst [vmem:[#allocation2 + $0x68] sm:$0xff] %v1690
  %1712 = vst [vmem:[#allocation2 + $0x70] sm:$0xff] %v1694
  %1713 = vst [vmem:[#allocation2 + $0x78] sm:$0xff] %v1696
  %v1714 = vld [vmem:[%s6] sm:$0xff]
  %v1715 = vld [vmem:[%s6 + $0x8] sm:$0xff]
  %v1716 = vld [vmem:[%s6 + $0x10] sm:$0xff]
  %v1717 = vld [vmem:[%s6 + $0x18] sm:$0xff]
  %v1718 = vld [vmem:[%s6 + $0x20] sm:$0xff]
  %v1719 = vld [vmem:[%s6 + $0x28] sm:$0xff]
  %v1720 = vld [vmem:[%s6 + $0x30] sm:$0xff]
  %v1721 = vld [vmem:[%s6 + $0x38] sm:$0xff]
  %v1722 = vld [vmem:[%s6 + $0x40] sm:$0xff]
  %v1723 = vld [vmem:[%s6 + $0x48] sm:$0xff]
  %v1724 = vld [vmem:[%s6 + $0x50] sm:$0xff]
  %v1725 = vld [vmem:[%s6 + $0x58] sm:$0xff]
  %v1726 = vld [vmem:[%s6 + $0x60] sm:$0xff]
  %v1727 = vld [vmem:[%s6 + $0x68] sm:$0xff]
  %v1728 = vld [vmem:[%s6 + $0x70] sm:$0xff]
  %v1729 = vld [vmem:[%s6 + $0x78] sm:$0xff]
  %1730 = vmatprep.subr.mxu0 %v1715
  %1731 = vmatpush1.msra.mxu0 %v1714
  %1732 = vmatprep.subr.mxu0 %v1717
  %1733 = vmatpush1.msra.mxu0 %v1716
  %1734 = vmatprep.subr.mxu0 %v1719
  %1735 = vmatpush1.msra.mxu0 %v1718
  %1736 = vmatprep.subr.mxu0 %v1721
  %1737 = vmatpush1.msra.mxu0 %v1720
  %1738 = vmatprep.subr.mxu0 %v1723
  %1739 = vmatpush1.msra.mxu0 %v1722
  %1740 = vmatprep.subr.mxu0 %v1725
  %1741 = vmatpush1.msra.mxu0 %v1724
  %1742 = vmatprep.subr.mxu0 %v1727
  %1743 = vmatpush1.msra.mxu0 %v1726
  %1744 = vmatprep.subr.mxu0 %v1729
  %1745 = vmatpush1.msra.mxu0 %v1728
  %1746 = vmatprep.subr.mxu0 0.0
  %1747 = vmatpush1.msra.mxu0 0.0
  %1748 = vmatprep.subr.mxu0 0.0
  %1749 = vmatpush1.msra.mxu0 0.0
  %1750 = vmatprep.subr.mxu0 0.0
  %1751 = vmatpush1.msra.mxu0 0.0
  %1752 = vmatprep.subr.mxu0 0.0
  %1753 = vmatpush1.msra.mxu0 0.0
  %1754 = vmatprep.subr.mxu0 0.0
  %1755 = vmatpush1.msra.mxu0 0.0
  %1756 = vmatprep.subr.mxu0 0.0
  %1757 = vmatpush1.msra.mxu0 0.0
  %1758 = vmatprep.subr.mxu0 0.0
  %1759 = vmatpush1.msra.mxu0 0.0
  %1760 = vmatprep.subr.mxu0 0.0
  %1761 = vmatpush1.msra.mxu0 0.0
  %1762 = vmatprep.subr.mxu0 0.0
  %1763 = vmatpush1.msra.mxu0 0.0
  %1764 = vmatprep.subr.mxu0 0.0
  %1765 = vmatpush1.msra.mxu0 0.0
  %1766 = vmatprep.subr.mxu0 0.0
  %1767 = vmatpush1.msra.mxu0 0.0
  %1768 = vmatprep.subr.mxu0 0.0
  %1769 = vmatpush1.msra.mxu0 0.0
  %1770 = vmatprep.subr.mxu0 0.0
  %1771 = vmatpush1.msra.mxu0 0.0
  %1772 = vmatprep.subr.mxu0 0.0
  %1773 = vmatpush1.msra.mxu0 0.0
  %1774 = vmatprep.subr.mxu0 0.0
  %1775 = vmatpush1.msra.mxu0 0.0
  %1776 = vmatprep.subr.mxu0 0.0
  %1777 = vmatpush1.msra.mxu0 0.0
  %1778 = vmatprep.subr.mxu0 0.0
  %1779 = vmatpush1.msra.mxu0 0.0
  %1780 = vmatprep.subr.mxu0 0.0
  %1781 = vmatpush1.msra.mxu0 0.0
  %1782 = vmatprep.subr.mxu0 0.0
  %1783 = vmatpush1.msra.mxu0 0.0
  %1784 = vmatprep.subr.mxu0 0.0
  %1785 = vmatpush1.msra.mxu0 0.0
  %1786 = vmatprep.subr.mxu0 0.0
  %1787 = vmatpush1.msra.mxu0 0.0
  %1788 = vmatprep.subr.mxu0 0.0
  %1789 = vmatpush1.msra.mxu0 0.0
  %1790 = vmatprep.subr.mxu0 0.0
  %1791 = vmatpush1.msra.mxu0 0.0
  %1792 = vmatprep.subr.mxu0 0.0
  %1793 = vmatpush1.msra.mxu0 0.0
  %1794 = vmatprep.mubr.f32.mxu0 0.0
  %1795 = vmatmul.mubr.f32.gmra.mrb[0].mxu0 %v430
  %v1796 = vpop.f32.mrb[0].mxu0
  %v1797 = vadd.f32 0.0, %v1796
  %v1798 = vpop.f32.mrb[0].mxu0
  %v1799 = vadd.f32 0.0, %v1798
  %1800 = vdwg.mxu0
  %v1801 = vld [vmem:[#allocation2] sm:$0xff]
  %v1802 = vadd.f32 %v1801, %v1797
  %v1803 = vld [vmem:[#allocation2 + $0x78] sm:$0xff]
  %v1804 = vadd.f32 %v1803, %v1799
  %v1805 = vxor.u32 %v1802, 2147483648
  %v1806 = vmul.f32 %v1805, 1.442695
  %v1807 = vpow.pop %v1806
  %v1808 = vadd.f32 %v1807, 1.0
  %v1809 = vrcp.pop %v1808
  %v1810 = vmul.f32 1.0, %v1809
  %v1811 = vtanh.pop %v1802
  %v1812 = vmul.f32 %v1810, 0.0
  %1814 = vrot.lane.b32.xlu0 %v1811, 64
  %v1815 = vpop.permute.xlu0 %1814
  %v1817 = vmul.f32 %v1810, %v1815
  %1819 = vrot.lane.b32.xlu0 %v1817, 32
  %v1820 = vpop.permute.xlu0 %1819
  %v1822 = vadd.f32 %v1812, %v1820
  %v1823 = vtanh.pop %v1822
  %1825 = vrot.lane.b32.xlu0 %v1823, 64
  %v1826 = vpop.permute.xlu0 %1825
  %v1828 = vmul.f32 %v1810, %v1826
  %v1829 = vxor.u32 %v1804, 2147483648
  %v1830 = vmul.f32 %v1829, 1.442695
  %v1831 = vpow.pop %v1830
  %v1832 = vadd.f32 %v1831, 1.0
  %v1833 = vrcp.pop %v1832
  %v1834 = vmul.f32 1.0, %v1833
  %v1835 = vtanh.pop %v1804
  %v1836 = vmul.f32 %v1834, 0.0
  %1838 = vrot.lane.b32.xlu0 %v1835, 64
  %v1839 = vpop.permute.xlu0 %1838
  %v1841 = vmul.f32 %v1834, %v1839
  %1843 = vrot.lane.b32.xlu0 %v1841, 32
  %v1844 = vpop.permute.xlu0 %1843
  %v1846 = vadd.f32 %v1836, %v1844
  %v1847 = vtanh.pop %v1846
  %1849 = vrot.lane.b32.xlu0 %v1847, 64
  %v1850 = vpop.permute.xlu0 %1849
  %v1852 = vmul.f32 %v1834, %v1850
  %1854 = vrot.lane.b32.xlu0 %v1828, 32
  %v1855 = vpop.permute.xlu0 %1854
  %1857 = vst.msk [vmem:[#allocation4] sm:$0xff] %vm258, %v1855
  %1859 = vrot.lane.b32.xlu0 %v1852, 64
  %v1860 = vpop.permute.xlu0 %1859
  %1862 = vst.msk [vmem:[#allocation4 + $0x38] sm:$0xff] %vm564, %v1860
  %v1863 = vsel %vm258, %v1855, %v1860
  %v1865 = vsel %vm428, %v1863, 0
  %1867 = vmatprep.subr.mxu0 %v1715
  %1868 = vmatpush1.msra.mxu0 %v1714
  %1869 = vmatprep.subr.mxu0 %v1717
  %1870 = vmatpush1.msra.mxu0 %v1716
  %1871 = vmatprep.subr.mxu0 %v1719
  %1872 = vmatpush1.msra.mxu0 %v1718
  %1873 = vmatprep.subr.mxu0 %v1721
  %1874 = vmatpush1.msra.mxu0 %v1720
  %1875 = vmatprep.subr.mxu0 %v1723
  %1876 = vmatpush1.msra.mxu0 %v1722
  %1877 = vmatprep.subr.mxu0 %v1725
  %1878 = vmatpush1.msra.mxu0 %v1724
  %1879 = vmatprep.subr.mxu0 %v1727
  %1880 = vmatpush1.msra.mxu0 %v1726
  %1881 = vmatprep.subr.mxu0 %v1729
  %1882 = vmatpush1.msra.mxu0 %v1728
  %1883 = vmatprep.subr.mxu0 0.0
  %1884 = vmatpush1.msra.mxu0 0.0
  %1885 = vmatprep.subr.mxu0 0.0
  %1886 = vmatpush1.msra.mxu0 0.0
  %1887 = vmatprep.subr.mxu0 0.0
  %1888 = vmatpush1.msra.mxu0 0.0
  %1889 = vmatprep.subr.mxu0 0.0
  %1890 = vmatpush1.msra.mxu0 0.0
  %1891 = vmatprep.subr.mxu0 0.0
  %1892 = vmatpush1.msra.mxu0 0.0
  %1893 = vmatprep.subr.mxu0 0.0
  %1894 = vmatpush1.msra.mxu0 0.0
  %1895 = vmatprep.subr.mxu0 0.0
  %1896 = vmatpush1.msra.mxu0 0.0
  %1897 = vmatprep.subr.mxu0 0.0
  %1898 = vmatpush1.msra.mxu0 0.0
  %1899 = vmatprep.subr.mxu0 0.0
  %1900 = vmatpush1.msra.mxu0 0.0
  %1901 = vmatprep.subr.mxu0 0.0
  %1902 = vmatpush1.msra.mxu0 0.0
  %1903 = vmatprep.subr.mxu0 0.0
  %1904 = vmatpush1.msra.mxu0 0.0
  %1905 = vmatprep.subr.mxu0 0.0
  %1906 = vmatpush1.msra.mxu0 0.0
  %1907 = vmatprep.subr.mxu0 0.0
  %1908 = vmatpush1.msra.mxu0 0.0
  %1909 = vmatprep.subr.mxu0 0.0
  %1910 = vmatpush1.msra.mxu0 0.0
  %1911 = vmatprep.subr.mxu0 0.0
  %1912 = vmatpush1.msra.mxu0 0.0
  %1913 = vmatprep.subr.mxu0 0.0
  %1914 = vmatpush1.msra.mxu0 0.0
  %1915 = vmatprep.subr.mxu0 0.0
  %1916 = vmatpush1.msra.mxu0 0.0
  %1917 = vmatprep.subr.mxu0 0.0
  %1918 = vmatpush1.msra.mxu0 0.0
  %1919 = vmatprep.subr.mxu0 0.0
  %1920 = vmatpush1.msra.mxu0 0.0
  %1921 = vmatprep.subr.mxu0 0.0
  %1922 = vmatpush1.msra.mxu0 0.0
  %1923 = vmatprep.subr.mxu0 0.0
  %1924 = vmatpush1.msra.mxu0 0.0
  %1925 = vmatprep.subr.mxu0 0.0
  %1926 = vmatpush1.msra.mxu0 0.0
  %1927 = vmatprep.subr.mxu0 0.0
  %1928 = vmatpush1.msra.mxu0 0.0
  %1929 = vmatprep.subr.mxu0 0.0
  %1930 = vmatpush1.msra.mxu0 0.0
  %1931 = vmatprep.mubr.f32.mxu0 0.0
  %1932 = vmatmul.mubr.f32.gmra.mrb[0].mxu0 %v1865
  %v1933 = vpop.f32.mrb[0].mxu0
  %v1934 = vadd.f32 0.0, %v1933
  %v1935 = vpop.f32.mrb[0].mxu0
  %v1936 = vadd.f32 0.0, %v1935
  %1937 = vdwg.mxu0
  %v1938 = vld [vmem:[#allocation2 + $0x10] sm:$0xff]
  %v1939 = vadd.f32 %v1938, %v1934
  %v1940 = vld [vmem:[#allocation2 + $0x68] sm:$0xff]
  %v1941 = vadd.f32 %v1940, %v1936
  %v1942 = vxor.u32 %v1939, 2147483648
  %v1943 = vmul.f32 %v1942, 1.442695
  %v1944 = vpow.pop %v1943
  %v1945 = vadd.f32 %v1944, 1.0
  %v1946 = vrcp.pop %v1945
  %v1947 = vmul.f32 1.0, %v1946
  %v1948 = vtanh.pop %v1939
  %v1949 = vmul.f32 %v1947, %v1822
  %1951 = vrot.lane.b32.xlu0 %v1948, 64
  %v1952 = vpop.permute.xlu0 %1951
  %v1954 = vmul.f32 %v1947, %v1952
  %1956 = vrot.lane.b32.xlu0 %v1954, 32
  %v1957 = vpop.permute.xlu0 %1956
  %v1959 = vadd.f32 %v1949, %v1957
  %v1960 = vtanh.pop %v1959
  %1962 = vrot.lane.b32.xlu0 %v1960, 64
  %v1963 = vpop.permute.xlu0 %1962
  %v1965 = vmul.f32 %v1947, %v1963
  %v1966 = vxor.u32 %v1941, 2147483648
  %v1967 = vmul.f32 %v1966, 1.442695
  %v1968 = vpow.pop %v1967
  %v1969 = vadd.f32 %v1968, 1.0
  %v1970 = vrcp.pop %v1969
  %v1971 = vmul.f32 1.0, %v1970
  %v1972 = vtanh.pop %v1941
  %v1973 = vmul.f32 %v1971, %v1846
  %1975 = vrot.lane.b32.xlu0 %v1972, 64
  %v1976 = vpop.permute.xlu0 %1975
  %v1978 = vmul.f32 %v1971, %v1976
  %1980 = vrot.lane.b32.xlu0 %v1978, 32
  %v1981 = vpop.permute.xlu0 %1980
  %v1983 = vadd.f32 %v1973, %v1981
  %v1984 = vtanh.pop %v1983
  %1986 = vrot.lane.b32.xlu0 %v1984, 64
  %v1987 = vpop.permute.xlu0 %1986
  %v1989 = vmul.f32 %v1971, %v1987
  %1991 = vrot.lane.b32.xlu0 %v1965, 32
  %v1992 = vpop.permute.xlu0 %1991
  %1994 = vst.msk [vmem:[#allocation4 + $0x8] sm:$0xff] %vm258, %v1992
  %1996 = vrot.lane.b32.xlu0 %v1989, 64
  %v1997 = vpop.permute.xlu0 %1996
  %1999 = vst.msk [vmem:[#allocation4 + $0x30] sm:$0xff] %vm564, %v1997
  %v2000 = vsel %vm258, %v1992, %v1997
  %v2002 = vsel %vm428, %v2000, 0
  %2004 = vmatprep.subr.mxu0 %v1715
  %2005 = vmatpush1.msra.mxu0 %v1714
  %2006 = vmatprep.subr.mxu0 %v1717
  %2007 = vmatpush1.msra.mxu0 %v1716
  %2008 = vmatprep.subr.mxu0 %v1719
  %2009 = vmatpush1.msra.mxu0 %v1718
  %2010 = vmatprep.subr.mxu0 %v1721
  %2011 = vmatpush1.msra.mxu0 %v1720
  %2012 = vmatprep.subr.mxu0 %v1723
  %2013 = vmatpush1.msra.mxu0 %v1722
  %2014 = vmatprep.subr.mxu0 %v1725
  %2015 = vmatpush1.msra.mxu0 %v1724
  %2016 = vmatprep.subr.mxu0 %v1727
  %2017 = vmatpush1.msra.mxu0 %v1726
  %2018 = vmatprep.subr.mxu0 %v1729
  %2019 = vmatpush1.msra.mxu0 %v1728
  %2020 = vmatprep.subr.mxu0 0.0
  %2021 = vmatpush1.msra.mxu0 0.0
  %2022 = vmatprep.subr.mxu0 0.0
  %2023 = vmatpush1.msra.mxu0 0.0
  %2024 = vmatprep.subr.mxu0 0.0
  %2025 = vmatpush1.msra.mxu0 0.0
  %2026 = vmatprep.subr.mxu0 0.0
  %2027 = vmatpush1.msra.mxu0 0.0
  %2028 = vmatprep.subr.mxu0 0.0
  %2029 = vmatpush1.msra.mxu0 0.0
  %2030 = vmatprep.subr.mxu0 0.0
  %2031 = vmatpush1.msra.mxu0 0.0
  %2032 = vmatprep.subr.mxu0 0.0
  %2033 = vmatpush1.msra.mxu0 0.0
  %2034 = vmatprep.subr.mxu0 0.0
  %2035 = vmatpush1.msra.mxu0 0.0
  %2036 = vmatprep.subr.mxu0 0.0
  %2037 = vmatpush1.msra.mxu0 0.0
  %2038 = vmatprep.subr.mxu0 0.0
  %2039 = vmatpush1.msra.mxu0 0.0
  %2040 = vmatprep.subr.mxu0 0.0
  %2041 = vmatpush1.msra.mxu0 0.0
  %2042 = vmatprep.subr.mxu0 0.0
  %2043 = vmatpush1.msra.mxu0 0.0
  %2044 = vmatprep.subr.mxu0 0.0
  %2045 = vmatpush1.msra.mxu0 0.0
  %2046 = vmatprep.subr.mxu0 0.0
  %2047 = vmatpush1.msra.mxu0 0.0
  %2048 = vmatprep.subr.mxu0 0.0
  %2049 = vmatpush1.msra.mxu0 0.0
  %2050 = vmatprep.subr.mxu0 0.0
  %2051 = vmatpush1.msra.mxu0 0.0
  %2052 = vmatprep.subr.mxu0 0.0
  %2053 = vmatpush1.msra.mxu0 0.0
  %2054 = vmatprep.subr.mxu0 0.0
  %2055 = vmatpush1.msra.mxu0 0.0
  %2056 = vmatprep.subr.mxu0 0.0
  %2057 = vmatpush1.msra.mxu0 0.0
  %2058 = vmatprep.subr.mxu0 0.0
  %2059 = vmatpush1.msra.mxu0 0.0
  %2060 = vmatprep.subr.mxu0 0.0
  %2061 = vmatpush1.msra.mxu0 0.0
  %2062 = vmatprep.subr.mxu0 0.0
  %2063 = vmatpush1.msra.mxu0 0.0
  %2064 = vmatprep.subr.mxu0 0.0
  %2065 = vmatpush1.msra.mxu0 0.0
  %2066 = vmatprep.subr.mxu0 0.0
  %2067 = vmatpush1.msra.mxu0 0.0
  %2068 = vmatprep.mubr.f32.mxu0 0.0
  %2069 = vmatmul.mubr.f32.gmra.mrb[0].mxu0 %v2002
  %v2070 = vpop.f32.mrb[0].mxu0
  %v2071 = vadd.f32 0.0, %v2070
  %v2072 = vpop.f32.mrb[0].mxu0
  %v2073 = vadd.f32 0.0, %v2072
  %2074 = vdwg.mxu0
  %v2075 = vld [vmem:[#allocation2 + $0x20] sm:$0xff]
  %v2076 = vadd.f32 %v2075, %v2071
  %v2077 = vld [vmem:[#allocation2 + $0x58] sm:$0xff]
  %v2078 = vadd.f32 %v2077, %v2073
  %v2079 = vxor.u32 %v2076, 2147483648
  %v2080 = vmul.f32 %v2079, 1.442695
  %v2081 = vpow.pop %v2080
  %v2082 = vadd.f32 %v2081, 1.0
  %v2083 = vrcp.pop %v2082
  %v2084 = vmul.f32 1.0, %v2083
  %v2085 = vtanh.pop %v2076
  %v2086 = vmul.f32 %v2084, %v1959
  %2088 = vrot.lane.b32.xlu0 %v2085, 64
  %v2089 = vpop.permute.xlu0 %2088
  %v2091 = vmul.f32 %v2084, %v2089
  %2093 = vrot.lane.b32.xlu0 %v2091, 32
  %v2094 = vpop.permute.xlu0 %2093
  %v2096 = vadd.f32 %v2086, %v2094
  %v2097 = vtanh.pop %v2096
  %2099 = vrot.lane.b32.xlu0 %v2097, 64
  %v2100 = vpop.permute.xlu0 %2099
  %v2102 = vmul.f32 %v2084, %v2100
  %v2103 = vxor.u32 %v2078, 2147483648
  %v2104 = vmul.f32 %v2103, 1.442695
  %v2105 = vpow.pop %v2104
  %v2106 = vadd.f32 %v2105, 1.0
  %v2107 = vrcp.pop %v2106
  %v2108 = vmul.f32 1.0, %v2107
  %v2109 = vtanh.pop %v2078
  %v2110 = vmul.f32 %v2108, %v1983
  %2112 = vrot.lane.b32.xlu0 %v2109, 64
  %v2113 = vpop.permute.xlu0 %2112
  %v2115 = vmul.f32 %v2108, %v2113
  %2117 = vrot.lane.b32.xlu0 %v2115, 32
  %v2118 = vpop.permute.xlu0 %2117
  %v2120 = vadd.f32 %v2110, %v2118
  %v2121 = vtanh.pop %v2120
  %2123 = vrot.lane.b32.xlu0 %v2121, 64
  %v2124 = vpop.permute.xlu0 %2123
  %v2126 = vmul.f32 %v2108, %v2124
  %2128 = vrot.lane.b32.xlu0 %v2102, 32
  %v2129 = vpop.permute.xlu0 %2128
  %2131 = vst.msk [vmem:[#allocation4 + $0x10] sm:$0xff] %vm258, %v2129
  %2133 = vrot.lane.b32.xlu0 %v2126, 64
  %v2134 = vpop.permute.xlu0 %2133
  %2136 = vst.msk [vmem:[#allocation4 + $0x28] sm:$0xff] %vm564, %v2134
  %v2137 = vsel %vm258, %v2129, %v2134
  %v2139 = vsel %vm428, %v2137, 0
  %2141 = vmatprep.subr.mxu0 %v1715
  %2142 = vmatpush1.msra.mxu0 %v1714
  %2143 = vmatprep.subr.mxu0 %v1717
  %2144 = vmatpush1.msra.mxu0 %v1716
  %2145 = vmatprep.subr.mxu0 %v1719
  %2146 = vmatpush1.msra.mxu0 %v1718
  %2147 = vmatprep.subr.mxu0 %v1721
  %2148 = vmatpush1.msra.mxu0 %v1720
  %2149 = vmatprep.subr.mxu0 %v1723
  %2150 = vmatpush1.msra.mxu0 %v1722
  %2151 = vmatprep.subr.mxu0 %v1725
  %2152 = vmatpush1.msra.mxu0 %v1724
  %2153 = vmatprep.subr.mxu0 %v1727
  %2154 = vmatpush1.msra.mxu0 %v1726
  %2155 = vmatprep.subr.mxu0 %v1729
  %2156 = vmatpush1.msra.mxu0 %v1728
  %2157 = vmatprep.subr.mxu0 0.0
  %2158 = vmatpush1.msra.mxu0 0.0
  %2159 = vmatprep.subr.mxu0 0.0
  %2160 = vmatpush1.msra.mxu0 0.0
  %2161 = vmatprep.subr.mxu0 0.0
  %2162 = vmatpush1.msra.mxu0 0.0
  %2163 = vmatprep.subr.mxu0 0.0
  %2164 = vmatpush1.msra.mxu0 0.0
  %2165 = vmatprep.subr.mxu0 0.0
  %2166 = vmatpush1.msra.mxu0 0.0
  %2167 = vmatprep.subr.mxu0 0.0
  %2168 = vmatpush1.msra.mxu0 0.0
  %2169 = vmatprep.subr.mxu0 0.0
  %2170 = vmatpush1.msra.mxu0 0.0
  %2171 = vmatprep.subr.mxu0 0.0
  %2172 = vmatpush1.msra.mxu0 0.0
  %2173 = vmatprep.subr.mxu0 0.0
  %2174 = vmatpush1.msra.mxu0 0.0
  %2175 = vmatprep.subr.mxu0 0.0
  %2176 = vmatpush1.msra.mxu0 0.0
  %2177 = vmatprep.subr.mxu0 0.0
  %2178 = vmatpush1.msra.mxu0 0.0
  %2179 = vmatprep.subr.mxu0 0.0
  %2180 = vmatpush1.msra.mxu0 0.0
  %2181 = vmatprep.subr.mxu0 0.0
  %2182 = vmatpush1.msra.mxu0 0.0
  %2183 = vmatprep.subr.mxu0 0.0
  %2184 = vmatpush1.msra.mxu0 0.0
  %2185 = vmatprep.subr.mxu0 0.0
  %2186 = vmatpush1.msra.mxu0 0.0
  %2187 = vmatprep.subr.mxu0 0.0
  %2188 = vmatpush1.msra.mxu0 0.0
  %2189 = vmatprep.subr.mxu0 0.0
  %2190 = vmatpush1.msra.mxu0 0.0
  %2191 = vmatprep.subr.mxu0 0.0
  %2192 = vmatpush1.msra.mxu0 0.0
  %2193 = vmatprep.subr.mxu0 0.0
  %2194 = vmatpush1.msra.mxu0 0.0
  %2195 = vmatprep.subr.mxu0 0.0
  %2196 = vmatpush1.msra.mxu0 0.0
  %2197 = vmatprep.subr.mxu0 0.0
  %2198 = vmatpush1.msra.mxu0 0.0
  %2199 = vmatprep.subr.mxu0 0.0
  %2200 = vmatpush1.msra.mxu0 0.0
  %2201 = vmatprep.subr.mxu0 0.0
  %2202 = vmatpush1.msra.mxu0 0.0
  %2203 = vmatprep.subr.mxu0 0.0
  %2204 = vmatpush1.msra.mxu0 0.0
  %2205 = vmatprep.mubr.f32.mxu0 0.0
  %2206 = vmatmul.mubr.f32.gmra.mrb[0].mxu0 %v2139
  %v2207 = vpop.f32.mrb[0].mxu0
  %v2208 = vadd.f32 0.0, %v2207
  %v2209 = vpop.f32.mrb[0].mxu0
  %v2210 = vadd.f32 0.0, %v2209
  %2211 = vdwg.mxu0
  %v2212 = vld [vmem:[#allocation2 + $0x30] sm:$0xff]
  %v2213 = vadd.f32 %v2212, %v2208
  %v2214 = vld [vmem:[#allocation2 + $0x48] sm:$0xff]
  %v2215 = vadd.f32 %v2214, %v2210
  %v2216 = vxor.u32 %v2213, 2147483648
  %v2217 = vmul.f32 %v2216, 1.442695
  %v2218 = vpow.pop %v2217
  %v2219 = vadd.f32 %v2218, 1.0
  %v2220 = vrcp.pop %v2219
  %v2221 = vmul.f32 1.0, %v2220
  %v2222 = vtanh.pop %v2213
  %v2223 = vmul.f32 %v2221, %v2096
  %2225 = vrot.lane.b32.xlu0 %v2222, 64
  %v2226 = vpop.permute.xlu0 %2225
  %v2228 = vmul.f32 %v2221, %v2226
  %2230 = vrot.lane.b32.xlu0 %v2228, 32
  %v2231 = vpop.permute.xlu0 %2230
  %v2233 = vadd.f32 %v2223, %v2231
  %v2234 = vtanh.pop %v2233
  %2236 = vrot.lane.b32.xlu0 %v2234, 64
  %v2237 = vpop.permute.xlu0 %2236
  %v2239 = vmul.f32 %v2221, %v2237
  %v2240 = vxor.u32 %v2215, 2147483648
  %v2241 = vmul.f32 %v2240, 1.442695
  %v2242 = vpow.pop %v2241
  %v2243 = vadd.f32 %v2242, 1.0
  %v2244 = vrcp.pop %v2243
  %v2245 = vmul.f32 1.0, %v2244
  %v2246 = vtanh.pop %v2215
  %v2247 = vmul.f32 %v2245, %v2120
  %2249 = vrot.lane.b32.xlu0 %v2246, 64
  %v2250 = vpop.permute.xlu0 %2249
  %v2252 = vmul.f32 %v2245, %v2250
  %2254 = vrot.lane.b32.xlu0 %v2252, 32
  %v2255 = vpop.permute.xlu0 %2254
  %v2257 = vadd.f32 %v2247, %v2255
  %v2258 = vtanh.pop %v2257
  %2260 = vrot.lane.b32.xlu0 %v2258, 64
  %v2261 = vpop.permute.xlu0 %2260
  %v2263 = vmul.f32 %v2245, %v2261
  %2265 = vrot.lane.b32.xlu0 %v2239, 32
  %v2266 = vpop.permute.xlu0 %2265
  %2268 = vst.msk [vmem:[#allocation4 + $0x18] sm:$0xff] %vm258, %v2266
  %2270 = vrot.lane.b32.xlu0 %v2263, 64
  %v2271 = vpop.permute.xlu0 %2270
  %2273 = vst.msk [vmem:[#allocation4 + $0x20] sm:$0xff] %vm564, %v2271
  %v2274 = vsel %vm258, %v2266, %v2271
  %v2276 = vsel %vm428, %v2274, 0
  %2278 = vmatprep.subr.mxu0 %v1715
  %2279 = vmatpush1.msra.mxu0 %v1714
  %2280 = vmatprep.subr.mxu0 %v1717
  %2281 = vmatpush1.msra.mxu0 %v1716
  %2282 = vmatprep.subr.mxu0 %v1719
  %2283 = vmatpush1.msra.mxu0 %v1718
  %2284 = vmatprep.subr.mxu0 %v1721
  %2285 = vmatpush1.msra.mxu0 %v1720
  %2286 = vmatprep.subr.mxu0 %v1723
  %2287 = vmatpush1.msra.mxu0 %v1722
  %2288 = vmatprep.subr.mxu0 %v1725
  %2289 = vmatpush1.msra.mxu0 %v1724
  %2290 = vmatprep.subr.mxu0 %v1727
  %2291 = vmatpush1.msra.mxu0 %v1726
  %2292 = vmatprep.subr.mxu0 %v1729
  %2293 = vmatpush1.msra.mxu0 %v1728
  %2294 = vmatprep.subr.mxu0 0.0
  %2295 = vmatpush1.msra.mxu0 0.0
  %2296 = vmatprep.subr.mxu0 0.0
  %2297 = vmatpush1.msra.mxu0 0.0
  %2298 = vmatprep.subr.mxu0 0.0
  %2299 = vmatpush1.msra.mxu0 0.0
  %2300 = vmatprep.subr.mxu0 0.0
  %2301 = vmatpush1.msra.mxu0 0.0
  %2302 = vmatprep.subr.mxu0 0.0
  %2303 = vmatpush1.msra.mxu0 0.0
  %2304 = vmatprep.subr.mxu0 0.0
  %2305 = vmatpush1.msra.mxu0 0.0
  %2306 = vmatprep.subr.mxu0 0.0
  %2307 = vmatpush1.msra.mxu0 0.0
  %2308 = vmatprep.subr.mxu0 0.0
  %2309 = vmatpush1.msra.mxu0 0.0
  %2310 = vmatprep.subr.mxu0 0.0
  %2311 = vmatpush1.msra.mxu0 0.0
  %2312 = vmatprep.subr.mxu0 0.0
  %2313 = vmatpush1.msra.mxu0 0.0
  %2314 = vmatprep.subr.mxu0 0.0
  %2315 = vmatpush1.msra.mxu0 0.0
  %2316 = vmatprep.subr.mxu0 0.0
  %2317 = vmatpush1.msra.mxu0 0.0
  %2318 = vmatprep.subr.mxu0 0.0
  %2319 = vmatpush1.msra.mxu0 0.0
  %2320 = vmatprep.subr.mxu0 0.0
  %2321 = vmatpush1.msra.mxu0 0.0
  %2322 = vmatprep.subr.mxu0 0.0
  %2323 = vmatpush1.msra.mxu0 0.0
  %2324 = vmatprep.subr.mxu0 0.0
  %2325 = vmatpush1.msra.mxu0 0.0
  %2326 = vmatprep.subr.mxu0 0.0
  %2327 = vmatpush1.msra.mxu0 0.0
  %2328 = vmatprep.subr.mxu0 0.0
  %2329 = vmatpush1.msra.mxu0 0.0
  %2330 = vmatprep.subr.mxu0 0.0
  %2331 = vmatpush1.msra.mxu0 0.0
  %2332 = vmatprep.subr.mxu0 0.0
  %2333 = vmatpush1.msra.mxu0 0.0
  %2334 = vmatprep.subr.mxu0 0.0
  %2335 = vmatpush1.msra.mxu0 0.0
  %2336 = vmatprep.subr.mxu0 0.0
  %2337 = vmatpush1.msra.mxu0 0.0
  %2338 = vmatprep.subr.mxu0 0.0
  %2339 = vmatpush1.msra.mxu0 0.0
  %2340 = vmatprep.subr.mxu0 0.0
  %2341 = vmatpush1.msra.mxu0 0.0
  %2342 = vmatprep.mubr.f32.mxu0 0.0
  %2343 = vmatmul.mubr.f32.gmra.mrb[0].mxu0 %v2276
  %v2344 = vpop.f32.mrb[0].mxu0
  %v2345 = vadd.f32 0.0, %v2344
  %v2346 = vpop.f32.mrb[0].mxu0
  %v2347 = vadd.f32 0.0, %v2346
  %2348 = vdwg.mxu0
  %v2349 = vld [vmem:[#allocation2 + $0x40] sm:$0xff]
  %v2350 = vadd.f32 %v2349, %v2345
  %v2351 = vld [vmem:[#allocation2 + $0x38] sm:$0xff]
  %v2352 = vadd.f32 %v2351, %v2347
  %v2353 = vxor.u32 %v2350, 2147483648
  %v2354 = vmul.f32 %v2353, 1.442695
  %v2355 = vpow.pop %v2354
  %v2356 = vadd.f32 %v2355, 1.0
  %v2357 = vrcp.pop %v2356
  %v2358 = vmul.f32 1.0, %v2357
  %v2359 = vtanh.pop %v2350
  %v2360 = vmul.f32 %v2358, %v2233
  %2362 = vrot.lane.b32.xlu0 %v2359, 64
  %v2363 = vpop.permute.xlu0 %2362
  %v2365 = vmul.f32 %v2358, %v2363
  %2367 = vrot.lane.b32.xlu0 %v2365, 32
  %v2368 = vpop.permute.xlu0 %2367
  %v2370 = vadd.f32 %v2360, %v2368
  %v2371 = vtanh.pop %v2370
  %2373 = vrot.lane.b32.xlu0 %v2371, 64
  %v2374 = vpop.permute.xlu0 %2373
  %v2376 = vmul.f32 %v2358, %v2374
  %v2377 = vxor.u32 %v2352, 2147483648
  %v2378 = vmul.f32 %v2377, 1.442695
  %v2379 = vpow.pop %v2378
  %v2380 = vadd.f32 %v2379, 1.0
  %v2381 = vrcp.pop %v2380
  %v2382 = vmul.f32 1.0, %v2381
  %v2383 = vtanh.pop %v2352
  %v2384 = vmul.f32 %v2382, %v2257
  %2386 = vrot.lane.b32.xlu0 %v2383, 64
  %v2387 = vpop.permute.xlu0 %2386
  %v2389 = vmul.f32 %v2382, %v2387
  %2391 = vrot.lane.b32.xlu0 %v2389, 32
  %v2392 = vpop.permute.xlu0 %2391
  %v2394 = vadd.f32 %v2384, %v2392
  %v2395 = vtanh.pop %v2394
  %2397 = vrot.lane.b32.xlu0 %v2395, 64
  %v2398 = vpop.permute.xlu0 %2397
  %v2400 = vmul.f32 %v2382, %v2398
  %2402 = vrot.lane.b32.xlu0 %v2376, 32
  %v2403 = vpop.permute.xlu0 %2402
  %2405 = vst.msk [vmem:[#allocation4 + $0x20] sm:$0xff] %vm258, %v2403
  %2407 = vrot.lane.b32.xlu0 %v2400, 64
  %v2408 = vpop.permute.xlu0 %2407
  %2410 = vst.msk [vmem:[#allocation4 + $0x18] sm:$0xff] %vm564, %v2408
  %v2411 = vsel %vm258, %v2403, %v2408
  %v2413 = vsel %vm428, %v2411, 0
  %2415 = vmatprep.subr.mxu0 %v1715
  %2416 = vmatpush1.msra.mxu0 %v1714
  %2417 = vmatprep.subr.mxu0 %v1717
  %2418 = vmatpush1.msra.mxu0 %v1716
  %2419 = vmatprep.subr.mxu0 %v1719
  %2420 = vmatpush1.msra.mxu0 %v1718
  %2421 = vmatprep.subr.mxu0 %v1721
  %2422 = vmatpush1.msra.mxu0 %v1720
  %2423 = vmatprep.subr.mxu0 %v1723
  %2424 = vmatpush1.msra.mxu0 %v1722
  %2425 = vmatprep.subr.mxu0 %v1725
  %2426 = vmatpush1.msra.mxu0 %v1724
  %2427 = vmatprep.subr.mxu0 %v1727
  %2428 = vmatpush1.msra.mxu0 %v1726
  %2429 = vmatprep.subr.mxu0 %v1729
  %2430 = vmatpush1.msra.mxu0 %v1728
  %2431 = vmatprep.subr.mxu0 0.0
  %2432 = vmatpush1.msra.mxu0 0.0
  %2433 = vmatprep.subr.mxu0 0.0
  %2434 = vmatpush1.msra.mxu0 0.0
  %2435 = vmatprep.subr.mxu0 0.0
  %2436 = vmatpush1.msra.mxu0 0.0
  %2437 = vmatprep.subr.mxu0 0.0
  %2438 = vmatpush1.msra.mxu0 0.0
  %2439 = vmatprep.subr.mxu0 0.0
  %2440 = vmatpush1.msra.mxu0 0.0
  %2441 = vmatprep.subr.mxu0 0.0
  %2442 = vmatpush1.msra.mxu0 0.0
  %2443 = vmatprep.subr.mxu0 0.0
  %2444 = vmatpush1.msra.mxu0 0.0
  %2445 = vmatprep.subr.mxu0 0.0
  %2446 = vmatpush1.msra.mxu0 0.0
  %2447 = vmatprep.subr.mxu0 0.0
  %2448 = vmatpush1.msra.mxu0 0.0
  %2449 = vmatprep.subr.mxu0 0.0
  %2450 = vmatpush1.msra.mxu0 0.0
  %2451 = vmatprep.subr.mxu0 0.0
  %2452 = vmatpush1.msra.mxu0 0.0
  %2453 = vmatprep.subr.mxu0 0.0
  %2454 = vmatpush1.msra.mxu0 0.0
  %2455 = vmatprep.subr.mxu0 0.0
  %2456 = vmatpush1.msra.mxu0 0.0
  %2457 = vmatprep.subr.mxu0 0.0
  %2458 = vmatpush1.msra.mxu0 0.0
  %2459 = vmatprep.subr.mxu0 0.0
  %2460 = vmatpush1.msra.mxu0 0.0
  %2461 = vmatprep.subr.mxu0 0.0
  %2462 = vmatpush1.msra.mxu0 0.0
  %2463 = vmatprep.subr.mxu0 0.0
  %2464 = vmatpush1.msra.mxu0 0.0
  %2465 = vmatprep.subr.mxu0 0.0
  %2466 = vmatpush1.msra.mxu0 0.0
  %2467 = vmatprep.subr.mxu0 0.0
  %2468 = vmatpush1.msra.mxu0 0.0
  %2469 = vmatprep.subr.mxu0 0.0
  %2470 = vmatpush1.msra.mxu0 0.0
  %2471 = vmatprep.subr.mxu0 0.0
  %2472 = vmatpush1.msra.mxu0 0.0
  %2473 = vmatprep.subr.mxu0 0.0
  %2474 = vmatpush1.msra.mxu0 0.0
  %2475 = vmatprep.subr.mxu0 0.0
  %2476 = vmatpush1.msra.mxu0 0.0
  %2477 = vmatprep.subr.mxu0 0.0
  %2478 = vmatpush1.msra.mxu0 0.0
  %2479 = vmatprep.mubr.f32.mxu0 0.0
  %2480 = vmatmul.mubr.f32.gmra.mrb[0].mxu0 %v2413
  %v2481 = vpop.f32.mrb[0].mxu0
  %v2482 = vadd.f32 0.0, %v2481
  %v2483 = vpop.f32.mrb[0].mxu0
  %v2484 = vadd.f32 0.0, %v2483
  %2485 = vdwg.mxu0
  %v2486 = vld [vmem:[#allocation2 + $0x50] sm:$0xff]
  %v2487 = vadd.f32 %v2486, %v2482
  %v2488 = vld [vmem:[#allocation2 + $0x28] sm:$0xff]
  %v2489 = vadd.f32 %v2488, %v2484
  %v2490 = vxor.u32 %v2487, 2147483648
  %v2491 = vmul.f32 %v2490, 1.442695
  %v2492 = vpow.pop %v2491
  %v2493 = vadd.f32 %v2492, 1.0
  %v2494 = vrcp.pop %v2493
  %v2495 = vmul.f32 1.0, %v2494
  %v2496 = vtanh.pop %v2487
  %v2497 = vmul.f32 %v2495, %v2370
  %2499 = vrot.lane.b32.xlu0 %v2496, 64
  %v2500 = vpop.permute.xlu0 %2499
  %v2502 = vmul.f32 %v2495, %v2500
  %2504 = vrot.lane.b32.xlu0 %v2502, 32
  %v2505 = vpop.permute.xlu0 %2504
  %v2507 = vadd.f32 %v2497, %v2505
  %v2508 = vtanh.pop %v2507
  %2510 = vrot.lane.b32.xlu0 %v2508, 64
  %v2511 = vpop.permute.xlu0 %2510
  %v2513 = vmul.f32 %v2495, %v2511
  %v2514 = vxor.u32 %v2489, 2147483648
  %v2515 = vmul.f32 %v2514, 1.442695
  %v2516 = vpow.pop %v2515
  %v2517 = vadd.f32 %v2516, 1.0
  %v2518 = vrcp.pop %v2517
  %v2519 = vmul.f32 1.0, %v2518
  %v2520 = vtanh.pop %v2489
  %v2521 = vmul.f32 %v2519, %v2394
  %2523 = vrot.lane.b32.xlu0 %v2520, 64
  %v2524 = vpop.permute.xlu0 %2523
  %v2526 = vmul.f32 %v2519, %v2524
  %2528 = vrot.lane.b32.xlu0 %v2526, 32
  %v2529 = vpop.permute.xlu0 %2528
  %v2531 = vadd.f32 %v2521, %v2529
  %v2532 = vtanh.pop %v2531
  %2534 = vrot.lane.b32.xlu0 %v2532, 64
  %v2535 = vpop.permute.xlu0 %2534
  %v2537 = vmul.f32 %v2519, %v2535
  %2539 = vrot.lane.b32.xlu0 %v2513, 32
  %v2540 = vpop.permute.xlu0 %2539
  %2542 = vst.msk [vmem:[#allocation4 + $0x28] sm:$0xff] %vm258, %v2540
  %2544 = vrot.lane.b32.xlu0 %v2537, 64
  %v2545 = vpop.permute.xlu0 %2544
  %2547 = vst.msk [vmem:[#allocation4 + $0x10] sm:$0xff] %vm564, %v2545
  %v2548 = vsel %vm258, %v2540, %v2545
  %v2550 = vsel %vm428, %v2548, 0
  %2552 = vmatprep.subr.mxu0 %v1715
  %2553 = vmatpush1.msra.mxu0 %v1714
  %2554 = vmatprep.subr.mxu0 %v1717
  %2555 = vmatpush1.msra.mxu0 %v1716
  %2556 = vmatprep.subr.mxu0 %v1719
  %2557 = vmatpush1.msra.mxu0 %v1718
  %2558 = vmatprep.subr.mxu0 %v1721
  %2559 = vmatpush1.msra.mxu0 %v1720
  %2560 = vmatprep.subr.mxu0 %v1723
  %2561 = vmatpush1.msra.mxu0 %v1722
  %2562 = vmatprep.subr.mxu0 %v1725
  %2563 = vmatpush1.msra.mxu0 %v1724
  %2564 = vmatprep.subr.mxu0 %v1727
  %2565 = vmatpush1.msra.mxu0 %v1726
  %2566 = vmatprep.subr.mxu0 %v1729
  %2567 = vmatpush1.msra.mxu0 %v1728
  %2568 = vmatprep.subr.mxu0 0.0
  %2569 = vmatpush1.msra.mxu0 0.0
  %2570 = vmatprep.subr.mxu0 0.0
  %2571 = vmatpush1.msra.mxu0 0.0
  %2572 = vmatprep.subr.mxu0 0.0
  %2573 = vmatpush1.msra.mxu0 0.0
  %2574 = vmatprep.subr.mxu0 0.0
  %2575 = vmatpush1.msra.mxu0 0.0
  %2576 = vmatprep.subr.mxu0 0.0
  %2577 = vmatpush1.msra.mxu0 0.0
  %2578 = vmatprep.subr.mxu0 0.0
  %2579 = vmatpush1.msra.mxu0 0.0
  %2580 = vmatprep.subr.mxu0 0.0
  %2581 = vmatpush1.msra.mxu0 0.0
  %2582 = vmatprep.subr.mxu0 0.0
  %2583 = vmatpush1.msra.mxu0 0.0
  %2584 = vmatprep.subr.mxu0 0.0
  %2585 = vmatpush1.msra.mxu0 0.0
  %2586 = vmatprep.subr.mxu0 0.0
  %2587 = vmatpush1.msra.mxu0 0.0
  %2588 = vmatprep.subr.mxu0 0.0
  %2589 = vmatpush1.msra.mxu0 0.0
  %2590 = vmatprep.subr.mxu0 0.0
  %2591 = vmatpush1.msra.mxu0 0.0
  %2592 = vmatprep.subr.mxu0 0.0
  %2593 = vmatpush1.msra.mxu0 0.0
  %2594 = vmatprep.subr.mxu0 0.0
  %2595 = vmatpush1.msra.mxu0 0.0
  %2596 = vmatprep.subr.mxu0 0.0
  %2597 = vmatpush1.msra.mxu0 0.0
  %2598 = vmatprep.subr.mxu0 0.0
  %2599 = vmatpush1.msra.mxu0 0.0
  %2600 = vmatprep.subr.mxu0 0.0
  %2601 = vmatpush1.msra.mxu0 0.0
  %2602 = vmatprep.subr.mxu0 0.0
  %2603 = vmatpush1.msra.mxu0 0.0
  %2604 = vmatprep.subr.mxu0 0.0
  %2605 = vmatpush1.msra.mxu0 0.0
  %2606 = vmatprep.subr.mxu0 0.0
  %2607 = vmatpush1.msra.mxu0 0.0
  %2608 = vmatprep.subr.mxu0 0.0
  %2609 = vmatpush1.msra.mxu0 0.0
  %2610 = vmatprep.subr.mxu0 0.0
  %2611 = vmatpush1.msra.mxu0 0.0
  %2612 = vmatprep.subr.mxu0 0.0
  %2613 = vmatpush1.msra.mxu0 0.0
  %2614 = vmatprep.subr.mxu0 0.0
  %2615 = vmatpush1.msra.mxu0 0.0
  %2616 = vmatprep.mubr.f32.mxu0 0.0
  %2617 = vmatmul.mubr.f32.gmra.mrb[0].mxu0 %v2550
  %v2618 = vpop.f32.mrb[0].mxu0
  %v2619 = vadd.f32 0.0, %v2618
  %v2620 = vpop.f32.mrb[0].mxu0
  %v2621 = vadd.f32 0.0, %v2620
  %2622 = vdwg.mxu0
  %v2623 = vld [vmem:[#allocation2 + $0x60] sm:$0xff]
  %v2624 = vadd.f32 %v2623, %v2619
  %v2625 = vld [vmem:[#allocation2 + $0x18] sm:$0xff]
  %v2626 = vadd.f32 %v2625, %v2621
  %v2627 = vxor.u32 %v2624, 2147483648
  %v2628 = vmul.f32 %v2627, 1.442695
  %v2629 = vpow.pop %v2628
  %v2630 = vadd.f32 %v2629, 1.0
  %v2631 = vrcp.pop %v2630
  %v2632 = vmul.f32 1.0, %v2631
  %v2633 = vtanh.pop %v2624
  %v2634 = vmul.f32 %v2632, %v2507
  %2636 = vrot.lane.b32.xlu0 %v2633, 64
  %v2637 = vpop.permute.xlu0 %2636
  %v2639 = vmul.f32 %v2632, %v2637
  %2641 = vrot.lane.b32.xlu0 %v2639, 32
  %v2642 = vpop.permute.xlu0 %2641
  %v2644 = vadd.f32 %v2634, %v2642
  %v2645 = vtanh.pop %v2644
  %2647 = vrot.lane.b32.xlu0 %v2645, 64
  %v2648 = vpop.permute.xlu0 %2647
  %v2650 = vmul.f32 %v2632, %v2648
  %v2651 = vxor.u32 %v2626, 2147483648
  %v2652 = vmul.f32 %v2651, 1.442695
  %v2653 = vpow.pop %v2652
  %v2654 = vadd.f32 %v2653, 1.0
  %v2655 = vrcp.pop %v2654
  %v2656 = vmul.f32 1.0, %v2655
  %v2657 = vtanh.pop %v2626
  %v2658 = vmul.f32 %v2656, %v2531
  %2660 = vrot.lane.b32.xlu0 %v2657, 64
  %v2661 = vpop.permute.xlu0 %2660
  %v2663 = vmul.f32 %v2656, %v2661
  %2665 = vrot.lane.b32.xlu0 %v2663, 32
  %v2666 = vpop.permute.xlu0 %2665
  %v2668 = vadd.f32 %v2658, %v2666
  %v2669 = vtanh.pop %v2668
  %2671 = vrot.lane.b32.xlu0 %v2669, 64
  %v2672 = vpop.permute.xlu0 %2671
  %v2674 = vmul.f32 %v2656, %v2672
  %2676 = vrot.lane.b32.xlu0 %v2650, 32
  %v2677 = vpop.permute.xlu0 %2676
  %2679 = vst.msk [vmem:[#allocation4 + $0x30] sm:$0xff] %vm258, %v2677
  %2681 = vrot.lane.b32.xlu0 %v2674, 64
  %v2682 = vpop.permute.xlu0 %2681
  %2684 = vst.msk [vmem:[#allocation4 + $0x8] sm:$0xff] %vm564, %v2682
  %v2685 = vsel %vm258, %v2677, %v2682
  %v2687 = vsel %vm428, %v2685, 0
  %2689 = vmatprep.subr.mxu0 %v1715
  %2690 = vmatpush1.msra.mxu0 %v1714
  %2691 = vmatprep.subr.mxu0 %v1717
  %2692 = vmatpush1.msra.mxu0 %v1716
  %2693 = vmatprep.subr.mxu0 %v1719
  %2694 = vmatpush1.msra.mxu0 %v1718
  %2695 = vmatprep.subr.mxu0 %v1721
  %2696 = vmatpush1.msra.mxu0 %v1720
  %2697 = vmatprep.subr.mxu0 %v1723
  %2698 = vmatpush1.msra.mxu0 %v1722
  %2699 = vmatprep.subr.mxu0 %v1725
  %2700 = vmatpush1.msra.mxu0 %v1724
  %2701 = vmatprep.subr.mxu0 %v1727
  %2702 = vmatpush1.msra.mxu0 %v1726
  %2703 = vmatprep.subr.mxu0 %v1729
  %2704 = vmatpush1.msra.mxu0 %v1728
  %2705 = vmatprep.subr.mxu0 0.0
  %2706 = vmatpush1.msra.mxu0 0.0
  %2707 = vmatprep.subr.mxu0 0.0
  %2708 = vmatpush1.msra.mxu0 0.0
  %2709 = vmatprep.subr.mxu0 0.0
  %2710 = vmatpush1.msra.mxu0 0.0
  %2711 = vmatprep.subr.mxu0 0.0
  %2712 = vmatpush1.msra.mxu0 0.0
  %2713 = vmatprep.subr.mxu0 0.0
  %2714 = vmatpush1.msra.mxu0 0.0
  %2715 = vmatprep.subr.mxu0 0.0
  %2716 = vmatpush1.msra.mxu0 0.0
  %2717 = vmatprep.subr.mxu0 0.0
  %2718 = vmatpush1.msra.mxu0 0.0
  %2719 = vmatprep.subr.mxu0 0.0
  %2720 = vmatpush1.msra.mxu0 0.0
  %2721 = vmatprep.subr.mxu0 0.0
  %2722 = vmatpush1.msra.mxu0 0.0
  %2723 = vmatprep.subr.mxu0 0.0
  %2724 = vmatpush1.msra.mxu0 0.0
  %2725 = vmatprep.subr.mxu0 0.0
  %2726 = vmatpush1.msra.mxu0 0.0
  %2727 = vmatprep.subr.mxu0 0.0
  %2728 = vmatpush1.msra.mxu0 0.0
  %2729 = vmatprep.subr.mxu0 0.0
  %2730 = vmatpush1.msra.mxu0 0.0
  %2731 = vmatprep.subr.mxu0 0.0
  %2732 = vmatpush1.msra.mxu0 0.0
  %2733 = vmatprep.subr.mxu0 0.0
  %2734 = vmatpush1.msra.mxu0 0.0
  %2735 = vmatprep.subr.mxu0 0.0
  %2736 = vmatpush1.msra.mxu0 0.0
  %2737 = vmatprep.subr.mxu0 0.0
  %2738 = vmatpush1.msra.mxu0 0.0
  %2739 = vmatprep.subr.mxu0 0.0
  %2740 = vmatpush1.msra.mxu0 0.0
  %2741 = vmatprep.subr.mxu0 0.0
  %2742 = vmatpush1.msra.mxu0 0.0
  %2743 = vmatprep.subr.mxu0 0.0
  %2744 = vmatpush1.msra.mxu0 0.0
  %2745 = vmatprep.subr.mxu0 0.0
  %2746 = vmatpush1.msra.mxu0 0.0
  %2747 = vmatprep.subr.mxu0 0.0
  %2748 = vmatpush1.msra.mxu0 0.0
  %2749 = vmatprep.subr.mxu0 0.0
  %2750 = vmatpush1.msra.mxu0 0.0
  %2751 = vmatprep.subr.mxu0 0.0
  %2752 = vmatpush1.msra.mxu0 0.0
  %2753 = vmatprep.mubr.f32.mxu0 0.0
  %2754 = vmatmul.mubr.f32.gmra.mrb[0].mxu0 %v2687
  %v2755 = vpop.f32.mrb[0].mxu0
  %v2756 = vadd.f32 0.0, %v2755
  %v2757 = vpop.f32.mrb[0].mxu0
  %v2758 = vadd.f32 0.0, %v2757
  %2759 = vdwg.mxu0
  %v2760 = vld [vmem:[#allocation2 + $0x70] sm:$0xff]
  %v2761 = vadd.f32 %v2760, %v2756
  %v2762 = vld [vmem:[#allocation2 + $0x8] sm:$0xff]
  %v2763 = vadd.f32 %v2762, %v2758
  %v2764 = vxor.u32 %v2761, 2147483648
  %v2765 = vmul.f32 %v2764, 1.442695
  %v2766 = vpow.pop %v2765
  %v2767 = vadd.f32 %v2766, 1.0
  %v2768 = vrcp.pop %v2767
  %v2769 = vmul.f32 1.0, %v2768
  %v2770 = vtanh.pop %v2761
  %v2771 = vmul.f32 %v2769, %v2644
  %2773 = vrot.lane.b32.xlu0 %v2770, 64
  %v2774 = vpop.permute.xlu0 %2773
  %v2776 = vmul.f32 %v2769, %v2774
  %2778 = vrot.lane.b32.xlu0 %v2776, 32
  %v2779 = vpop.permute.xlu0 %2778
  %v2781 = vadd.f32 %v2771, %v2779
  %v2782 = vtanh.pop %v2781
  %2784 = vrot.lane.b32.xlu0 %v2782, 64
  %v2785 = vpop.permute.xlu0 %2784
  %v2787 = vmul.f32 %v2769, %v2785
  %v2788 = vxor.u32 %v2763, 2147483648
  %v2789 = vmul.f32 %v2788, 1.442695
  %v2790 = vpow.pop %v2789
  %v2791 = vadd.f32 %v2790, 1.0
  %v2792 = vrcp.pop %v2791
  %v2793 = vmul.f32 1.0, %v2792
  %v2794 = vtanh.pop %v2763
  %v2795 = vmul.f32 %v2793, %v2668
  %2797 = vrot.lane.b32.xlu0 %v2794, 64
  %v2798 = vpop.permute.xlu0 %2797
  %v2800 = vmul.f32 %v2793, %v2798
  %2802 = vrot.lane.b32.xlu0 %v2800, 32
  %v2803 = vpop.permute.xlu0 %2802
  %v2805 = vadd.f32 %v2795, %v2803
  %v2806 = vtanh.pop %v2805
  %2808 = vrot.lane.b32.xlu0 %v2806, 64
  %v2809 = vpop.permute.xlu0 %2808
  %v2811 = vmul.f32 %v2793, %v2809
  %2813 = vrot.lane.b32.xlu0 %v2787, 32
  %v2814 = vpop.permute.xlu0 %2813
  %2816 = vst.msk [vmem:[#allocation4 + $0x38] sm:$0xff] %vm258, %v2814
  %2818 = vrot.lane.b32.xlu0 %v2811, 64
  %v2819 = vpop.permute.xlu0 %2818
  %2821 = vst.msk [vmem:[#allocation4] sm:$0xff] %vm564, %v2819
  %v2822 = vld [vmem:[#allocation4] sm:$0xff]
  %v2823 = vld [vmem:[#allocation4 + $0x8] sm:$0xff]
  %v2824 = vld [vmem:[#allocation4 + $0x10] sm:$0xff]
  %v2825 = vld [vmem:[#allocation4 + $0x18] sm:$0xff]
  %v2826 = vld [vmem:[#allocation4 + $0x20] sm:$0xff]
  %v2827 = vld [vmem:[#allocation4 + $0x28] sm:$0xff]
  %v2828 = vld [vmem:[#allocation4 + $0x30] sm:$0xff]
  %v2829 = vld [vmem:[#allocation4 + $0x38] sm:$0xff]
  %v2830 = vmax.f32 %v2822, %v2823
  %v2831 = vmax.f32 %v2830, %v2824
  %v2832 = vmax.f32 %v2831, %v2825
  %v2833 = vmax.f32 %v2832, %v2826
  %v2834 = vmax.f32 %v2833, %v2827
  %v2835 = vmax.f32 %v2834, %v2828
  %v2836 = vmax.f32 %v2835, %v2829
  %v2837 = vtanh.pop %v2829
  %v2838 = vtanh.pop %v2836
  %2840 = vrot.lane.b32.xlu0 %v2838, 64
  %v2841 = vpop.permute.xlu0 %2840
  %v2843 = vsel %vm428, %v2837, %v2841
  %v2844 = vld [vmem:[%s8] sm:$0xff]
  %v2845 = vld [vmem:[%s8 + $0x8] sm:$0xff]
  %v2846 = vld [vmem:[%s8 + $0x10] sm:$0xff]
  %v2847 = vld [vmem:[%s8 + $0x18] sm:$0xff]
  %v2848 = vld [vmem:[%s8 + $0x20] sm:$0xff]
  %v2849 = vld [vmem:[%s8 + $0x28] sm:$0xff]
  %v2850 = vld [vmem:[%s8 + $0x30] sm:$0xff]
  %v2851 = vld [vmem:[%s8 + $0x38] sm:$0xff]
  %v2852 = vld [vmem:[%s8 + $0x40] sm:$0xff]
  %v2853 = vld [vmem:[%s8 + $0x48] sm:$0xff]
  %v2854 = vld [vmem:[%s8 + $0x50] sm:$0xff]
  %v2855 = vld [vmem:[%s8 + $0x58] sm:$0xff]
  %v2856 = vld [vmem:[%s8 + $0x60] sm:$0xff]
  %v2857 = vld [vmem:[%s8 + $0x68] sm:$0xff]
  %v2858 = vld [vmem:[%s8 + $0x70] sm:$0xff]
  %v2859 = vld [vmem:[%s8 + $0x78] sm:$0xff]
  %v2860 = vld [vmem:[%s9] sm:$0x1]
  %v2862 = vlaneseq
  %v2863 = vshrl.u32 %v2862, 7
  %v2864 = vsub.s32 0, %v2863
  %v2865 = vrot.slane %v2860, %v2864
  %2867 = vmatprep.subr.mxu0 0.0
  %2868 = vmatpush1.msra.mxu0 %v2844
  %2869 = vmatprep.subr.mxu0 0.0
  %2870 = vmatpush1.msra.mxu0 %v2845
  %2871 = vmatprep.subr.mxu0 0.0
  %2872 = vmatpush1.msra.mxu0 %v2846
  %2873 = vmatprep.subr.mxu0 0.0
  %2874 = vmatpush1.msra.mxu0 %v2847
  %2875 = vmatprep.subr.mxu0 0.0
  %2876 = vmatpush1.msra.mxu0 %v2848
  %2877 = vmatprep.subr.mxu0 0.0
  %2878 = vmatpush1.msra.mxu0 %v2849
  %2879 = vmatprep.subr.mxu0 0.0
  %2880 = vmatpush1.msra.mxu0 %v2850
  %2881 = vmatprep.subr.mxu0 0.0
  %2882 = vmatpush1.msra.mxu0 %v2851
  %2883 = vmatprep.subr.mxu0 0.0
  %2884 = vmatpush1.msra.mxu0 %v2852
  %2885 = vmatprep.subr.mxu0 0.0
  %2886 = vmatpush1.msra.mxu0 %v2853
  %2887 = vmatprep.subr.mxu0 0.0
  %2888 = vmatpush1.msra.mxu0 %v2854
  %2889 = vmatprep.subr.mxu0 0.0
  %2890 = vmatpush1.msra.mxu0 %v2855
  %2891 = vmatprep.subr.mxu0 0.0
  %2892 = vmatpush1.msra.mxu0 %v2856
  %2893 = vmatprep.subr.mxu0 0.0
  %2894 = vmatpush1.msra.mxu0 %v2857
  %2895 = vmatprep.subr.mxu0 0.0
  %2896 = vmatpush1.msra.mxu0 %v2858
  %2897 = vmatprep.subr.mxu0 0.0
  %2898 = vmatpush1.msra.mxu0 %v2859
  %2899 = vmatprep.subr.mxu0 0.0
  %2900 = vmatpush1.msra.mxu0 0.0
  %2901 = vmatprep.subr.mxu0 0.0
  %2902 = vmatpush1.msra.mxu0 0.0
  %2903 = vmatprep.subr.mxu0 0.0
  %2904 = vmatpush1.msra.mxu0 0.0
  %2905 = vmatprep.subr.mxu0 0.0
  %2906 = vmatpush1.msra.mxu0 0.0
  %2907 = vmatprep.subr.mxu0 0.0
  %2908 = vmatpush1.msra.mxu0 0.0
  %2909 = vmatprep.subr.mxu0 0.0
  %2910 = vmatpush1.msra.mxu0 0.0
  %2911 = vmatprep.subr.mxu0 0.0
  %2912 = vmatpush1.msra.mxu0 0.0
  %2913 = vmatprep.subr.mxu0 0.0
  %2914 = vmatpush1.msra.mxu0 0.0
  %2915 = vmatprep.subr.mxu0 0.0
  %2916 = vmatpush1.msra.mxu0 0.0
  %2917 = vmatprep.subr.mxu0 0.0
  %2918 = vmatpush1.msra.mxu0 0.0
  %2919 = vmatprep.subr.mxu0 0.0
  %2920 = vmatpush1.msra.mxu0 0.0
  %2921 = vmatprep.subr.mxu0 0.0
  %2922 = vmatpush1.msra.mxu0 0.0
  %2923 = vmatprep.subr.mxu0 0.0
  %2924 = vmatpush1.msra.mxu0 0.0
  %2925 = vmatprep.subr.mxu0 0.0
  %2926 = vmatpush1.msra.mxu0 0.0
  %2927 = vmatprep.subr.mxu0 0.0
  %2928 = vmatpush1.msra.mxu0 0.0
  %2929 = vmatprep.subr.mxu0 0.0
  %2930 = vmatpush1.msra.mxu0 0.0
  %2931 = vmatprep.mubr.f32.mxu0 0.0
  %2932 = vmatmul.mubr.f32.gmra.mrb[0].mxu0 %v2843
  %v2933 = vpop.f32.mrb[0].mxu0
  %v2934 = vadd.f32 %v2865, %v2933
  %v2935 = vpop.f32.mrb[0].mxu0
  %2936 = vdwg.mxu0
  %v2937 = vld [vmem:[%s10] sm:$0x1]
  %v2939 = vlaneseq
  %v2940 = vshrl.u32 %v2939, 7
  %v2941 = vsub.s32 0, %v2940
  %v2942 = vrot.slane %v2937, %v2941
  %v2944 = vmul.f32 %v2934, %v2942
  %v2945 = vld [vmem:[%s11] sm:$0x1]
  %v2947 = vlaneseq
  %v2948 = vshrl.u32 %v2947, 7
  %v2949 = vsub.s32 0, %v2948
  %v2950 = vrot.slane %v2945, %v2949
  %v2952 = vadd.f32 %v2944, %v2950
  %v2953 = vtanh.pop %v2952
  %v2954 = vld [vmem:[%s12] sm:$0xff]
  %v2955 = vld [vmem:[%s12 + $0x8] sm:$0xff]
  %v2956 = vld [vmem:[%s12 + $0x10] sm:$0xff]
  %v2957 = vld [vmem:[%s12 + $0x18] sm:$0xff]
  %v2958 = vld [vmem:[%s13] sm:$0x1]
  %v2960 = vlaneseq
  %v2961 = vshrl.u32 %v2960, 7
  %v2962 = vsub.s32 0, %v2961
  %v2963 = vrot.slane %v2958, %v2962
  %v2966 = vsel %vm258, %v2953, 0
  %2968 = vmatprep.subr.mxu0 0.0
  %2969 = vmatpush1.msra.mxu0 %v2954
  %2970 = vmatprep.subr.mxu0 0.0
  %2971 = vmatpush1.msra.mxu0 %v2955
  %2972 = vmatprep.subr.mxu0 0.0
  %2973 = vmatpush1.msra.mxu0 %v2956
  %2974 = vmatprep.subr.mxu0 0.0
  %2975 = vmatpush1.msra.mxu0 %v2957
  %2976 = vmatprep.subr.mxu0 0.0
  %2977 = vmatpush1.msra.mxu0 0.0
  %2978 = vmatprep.subr.mxu0 0.0
  %2979 = vmatpush1.msra.mxu0 0.0
  %2980 = vmatprep.subr.mxu0 0.0
  %2981 = vmatpush1.msra.mxu0 0.0
  %2982 = vmatprep.subr.mxu0 0.0
  %2983 = vmatpush1.msra.mxu0 0.0
  %2984 = vmatprep.subr.mxu0 0.0
  %2985 = vmatpush1.msra.mxu0 0.0
  %2986 = vmatprep.subr.mxu0 0.0
  %2987 = vmatpush1.msra.mxu0 0.0
  %2988 = vmatprep.subr.mxu0 0.0
  %2989 = vmatpush1.msra.mxu0 0.0
  %2990 = vmatprep.subr.mxu0 0.0
  %2991 = vmatpush1.msra.mxu0 0.0
  %2992 = vmatprep.subr.mxu0 0.0
  %2993 = vmatpush1.msra.mxu0 0.0
  %2994 = vmatprep.subr.mxu0 0.0
  %2995 = vmatpush1.msra.mxu0 0.0
  %2996 = vmatprep.subr.mxu0 0.0
  %2997 = vmatpush1.msra.mxu0 0.0
  %2998 = vmatprep.subr.mxu0 0.0
  %2999 = vmatpush1.msra.mxu0 0.0
  %3000 = vmatprep.subr.mxu0 0.0
  %3001 = vmatpush1.msra.mxu0 0.0
  %3002 = vmatprep.subr.mxu0 0.0
  %3003 = vmatpush1.msra.mxu0 0.0
  %3004 = vmatprep.subr.mxu0 0.0
  %3005 = vmatpush1.msra.mxu0 0.0
  %3006 = vmatprep.subr.mxu0 0.0
  %3007 = vmatpush1.msra.mxu0 0.0
  %3008 = vmatprep.subr.mxu0 0.0
  %3009 = vmatpush1.msra.mxu0 0.0
  %3010 = vmatprep.subr.mxu0 0.0
  %3011 = vmatpush1.msra.mxu0 0.0
  %3012 = vmatprep.subr.mxu0 0.0
  %3013 = vmatpush1.msra.mxu0 0.0
  %3014 = vmatprep.subr.mxu0 0.0
  %3015 = vmatpush1.msra.mxu0 0.0
  %3016 = vmatprep.subr.mxu0 0.0
  %3017 = vmatpush1.msra.mxu0 0.0
  %3018 = vmatprep.subr.mxu0 0.0
  %3019 = vmatpush1.msra.mxu0 0.0
  %3020 = vmatprep.subr.mxu0 0.0
  %3021 = vmatpush1.msra.mxu0 0.0
  %3022 = vmatprep.subr.mxu0 0.0
  %3023 = vmatpush1.msra.mxu0 0.0
  %3024 = vmatprep.subr.mxu0 0.0
  %3025 = vmatpush1.msra.mxu0 0.0
  %3026 = vmatprep.subr.mxu0 0.0
  %3027 = vmatpush1.msra.mxu0 0.0
  %3028 = vmatprep.subr.mxu0 0.0
  %3029 = vmatpush1.msra.mxu0 0.0
  %3030 = vmatprep.subr.mxu0 0.0
  %3031 = vmatpush1.msra.mxu0 0.0
  %3032 = vmatprep.mubr.f32.mxu0 0.0
  %3033 = vmatmul.mubr.f32.gmra.mrb[0].mxu0 %v2966
  %v3034 = vpop.f32.mrb[0].mxu0
  %v3035 = vadd.f32 %v2963, %v3034
  %v3036 = vpop.f32.mrb[0].mxu0
  %3037 = vdwg.mxu0
  %3038 = vst [vmem:[%s14] sm:$0xff] %v3035
  // Predicated region
  $region58: #{rnn_classiff_max_forward.1} parent=0 // pred_check
    _
  $region59: #{rnn_classiff_max_forward.1} parent=0 // pred_check_branch
    %3040 = sbr.rel (0) target = $region61
  $region60: #{rnn_classiff_max_forward.1} parent=0 // pred_region
    _
  $region61: #{rnn_classiff_max_forward.1} parent=0 // pred_fallthru
    _
  // Predicated region
  $region62: #{rnn_classiff_max_forward.1} parent=0 // pred_check
    _
  $region63: #{rnn_classiff_max_forward.1} parent=0 // pred_check_branch
    %3042 = sbr.rel (0) target = $region65
  $region64: #{rnn_classiff_max_forward.1} parent=0 // pred_region
    _
  $region65: #{rnn_classiff_max_forward.1} parent=0 // pred_fallthru
    _

</llo_original>
